<compile_context>
chip_gen: v7x
topology: tpu7x:2x2x1
jax: 0.10.0
libtpu: 0.0.40
codegen_flags: <defaults>
</compile_context>

<pallas_src>
import jax
import jax.numpy as jnp
from jax.experimental import pallas as pl
from jax.experimental.pallas import tpu as pltpu

# Logical dims (PyTorch module) and lane-padded dims (multiples of 128).
D_IN, D_H, D_Z = 784, 400, 20
D_IN_P, D_H_P, D_Z_P = 896, 512, 128          # 7*128, 4*128, 1*128
D_HEADS = 2 * D_Z_P                           # fused mu|logvar head width (256)


def _round_up(n, m):
    return ((n + m - 1) // m) * m


def _pad2(a, rows, cols):
    return jnp.pad(a, ((0, rows - a.shape[0]), (0, cols - a.shape[1])))


def vae_kernel(x_ref, eps_ref,
               w1_ref, b1_ref,
               wh_ref, bh_ref,      # fused (mu | logvar) head
               w3_ref, b3_ref,
               w4_ref, b4_ref,
               recon_ref, heads_ref):
    f32 = jnp.float32
    bf16 = jnp.bfloat16

    # encode: h1 = relu(x @ W1 + b1)   -- bf16 x bf16 on the MXU, f32 accumulate
    h1 = jnp.dot(x_ref[...], w1_ref[...], preferred_element_type=f32)
    h1 = jnp.maximum(h1 + b1_ref[...], 0.0)

    # fused heads: one (512, 256) matmul; mu = [:, :128], logvar = [:, 128:]
    heads = jnp.dot(h1.astype(bf16), wh_ref[...], preferred_element_type=f32)
    heads = heads + bh_ref[...]
    mu = heads[:, :D_Z_P]
    logvar = heads[:, D_Z_P:]

    # reparametrize (f32): z = eps * exp(0.5 * logvar) + mu
    # padded lanes: logvar==0 -> std==1, eps==0, mu==0 -> z==0 (harmless)
    z = eps_ref[...].astype(f32) * jnp.exp(0.5 * logvar) + mu

    # decode: tanh(relu(z @ W3 + b3) @ W4 + b4)
    h3 = jnp.dot(z.astype(bf16), w3_ref[...], preferred_element_type=f32)
    h3 = jnp.maximum(h3 + b3_ref[...], 0.0)
    out = jnp.dot(h3.astype(bf16), w4_ref[...], preferred_element_type=f32)

    recon_ref[...] = jnp.tanh(out + b4_ref[...]).astype(recon_ref.dtype)
    heads_ref[...] = heads


def pack_params(p):
    """Zero-pad to lane-dense shapes, fuse the mu/logvar heads, store the
    weight matrices as bf16 (MXU-native) and the biases as f32 (tiny)."""
    bf16, f32 = jnp.bfloat16, jnp.float32
    w1 = _pad2(p["w1"], D_IN_P, D_H_P).astype(bf16)
    b1 = _pad2(p["b1"], 1, D_H_P).astype(f32)
    wh = jnp.zeros((D_H_P, D_HEADS), f32)
    wh = wh.at[:D_H, :D_Z].set(p["w21"]).at[:D_H, D_Z_P:D_Z_P + D_Z].set(p["w22"])
    wh = wh.astype(bf16)
    bh = jnp.zeros((1, D_HEADS), f32)
    bh = bh.at[:, :D_Z].set(p["b21"]).at[:, D_Z_P:D_Z_P + D_Z].set(p["b22"])
    w3 = _pad2(p["w3"], D_Z_P, D_H_P).astype(bf16)
    b3 = _pad2(p["b3"], 1, D_H_P).astype(f32)
    w4 = _pad2(p["w4"], D_H_P, D_IN_P).astype(bf16)
    b4 = _pad2(p["b4"], 1, D_IN_P).astype(f32)
    return w1, b1, wh, bh, w3, b3, w4, b4


def vae_forward(x, eps, params, *, tb=512):
    """x: (B, 784) f32, eps: (B, 20) f32. Returns (recon, mu, logvar) in f32."""
    B = x.shape[0]
    # Adaptive batch tile: never over-pad small batches, keep bf16-friendly
    # (multiple of 16) sublane counts.
    tb = max(16, min(tb, _round_up(B, 16)))
    B_p = _round_up(B, tb)
    # v7x: if the whole (large) batch fits in one tile, split it so both
    # TensorCores get a grid step.
    if B_p // tb < 2 and tb >= 256:
        tb = _round_up(tb // 2, 16)
        B_p = _round_up(B, tb)

    x_p = _pad2(x.astype(jnp.bfloat16), B_p, D_IN_P)
    eps_p = _pad2(eps.astype(jnp.bfloat16), B_p, D_Z_P)
    packed = pack_params(params)
    (w1, b1, wh, bh, w3, b3, w4, b4) = packed

    grid = (pl.cdiv(B_p, tb),)
    batch_map = lambda i: (i, 0)
    const_map = lambda i: (0, 0)           # weights resident across batch tiles

    in_specs = [
        pl.BlockSpec((tb, D_IN_P), batch_map),          # x (bf16)
        pl.BlockSpec((tb, D_Z_P), batch_map),           # eps (bf16)
        pl.BlockSpec((D_IN_P, D_H_P), const_map),       # w1 (bf16)
        pl.BlockSpec((1, D_H_P), const_map),            # b1 (f32)
        pl.BlockSpec((D_H_P, D_HEADS), const_map),      # w_heads (bf16)
        pl.BlockSpec((1, D_HEADS), const_map),          # b_heads (f32)
        pl.BlockSpec((D_Z_P, D_H_P), const_map),        # w3 (bf16)
        pl.BlockSpec((1, D_H_P), const_map),            # b3 (f32)
        pl.BlockSpec((D_H_P, D_IN_P), const_map),       # w4 (bf16)
        pl.BlockSpec((1, D_IN_P), const_map),           # b4 (f32)
    ]
    out_specs = (
        pl.BlockSpec((tb, D_IN_P), batch_map),          # recon
        pl.BlockSpec((tb, D_HEADS), batch_map),         # fused mu|logvar
    )
    out_shape = (
        jax.ShapeDtypeStruct((B_p, D_IN_P), jnp.float32),
        jax.ShapeDtypeStruct((B_p, D_HEADS), jnp.float32),
    )

    # Advisory cost estimate for XLA scheduling.
    flops_per_row = 2 * (D_IN_P * D_H_P + D_H_P * D_HEADS
                         + D_Z_P * D_H_P + D_H_P * D_IN_P)
    weight_bytes = sum(int(a.size) * a.dtype.itemsize for a in packed)
    act_bytes = (B_p * 2 * (D_IN_P + D_Z_P)          # bf16 inputs
                 + B_p * 4 * (D_IN_P + D_HEADS))     # f32 outputs
    cost = pl.CostEstimate(
        flops=B_p * flops_per_row,
        transcendentals=B_p * (D_Z_P + D_IN_P),      # exp + tanh
        bytes_accessed=weight_bytes + act_bytes,
    )

    recon_p, heads_p = pl.pallas_call(
        vae_kernel,
        out_shape=out_shape,
        grid=grid,
        in_specs=in_specs,
        out_specs=out_specs,
        compiler_params=pltpu.CompilerParams(
            dimension_semantics=(pltpu.PARALLEL,),   # batch axis across v7x TCs
            vmem_limit_bytes=48 * 1024 * 1024,       # > v5e 16MiB default, < v7x 64MiB
        ),
        cost_estimate=cost,
    )(x_p, eps_p, *packed)

    recon = recon_p[:B, :D_IN]
    mu = heads_p[:B, :D_Z]
    logvar = heads_p[:B, D_Z_P:D_Z_P + D_Z]
    return recon, mu, logvar


def init_params(key):
    """Deterministic PyTorch-style Linear init (uniform(-1/sqrt(fan_in), ...)).
    Weights stored as (in_features, out_features); biases as (1, out)."""
    dims = {
        "1": (D_IN, D_H),
        "21": (D_H, D_Z),
        "22": (D_H, D_Z),
        "3": (D_Z, D_H),
        "4": (D_H, D_IN),
    }
    params = {}
    keys = jax.random.split(key, 2 * len(dims))
    for i, (name, (fin, fout)) in enumerate(dims.items()):
        bound = 1.0 / (fin ** 0.5)
        params[f"w{name}"] = jax.random.uniform(
            keys[2 * i], (fin, fout), jnp.float32, -bound, bound)
        params[f"b{name}"] = jax.random.uniform(
            keys[2 * i + 1], (1, fout), jnp.float32, -bound, bound)
    return params


def vae_reference(x, eps, p):
    """Pure-JAX f32 reference using the SAME bf16-rounded weights/x/eps that the
    kernel sees; residual difference vs. the kernel is bf16 activation rounding
    inside the MXU feeds and accumulation order only."""
    f32 = jnp.float32
    bf = lambda a: a.astype(jnp.bfloat16).astype(f32)
    hi = jax.lax.Precision.HIGHEST
    xq, epsq = bf(x), bf(eps)
    h1 = jnp.maximum(jnp.dot(xq, bf(p["w1"]), precision=hi) + p["b1"], 0.0)
    mu = jnp.dot(h1, bf(p["w21"]), precision=hi) + p["b21"]
    logvar = jnp.dot(h1, bf(p["w22"]), precision=hi) + p["b22"]
    z = epsq * jnp.exp(0.5 * logvar) + mu
    h3 = jnp.maximum(jnp.dot(z, bf(p["w3"]), precision=hi) + p["b3"], 0.0)
    recon = jnp.tanh(jnp.dot(h3, bf(p["w4"]), precision=hi) + p["b4"])
    return recon, mu, logvar


if __name__ == "__main__":
    key = jax.random.PRNGKey(0)
    k_param, k_x, k_eps = jax.random.split(key, 3)

    B = 8
    params = init_params(k_param)
    x = jax.random.uniform(k_x, (B, D_IN), jnp.float32)     # MNIST-like in [0,1)
    eps = jax.random.normal(k_eps, (B, D_Z), jnp.float32)   # reparam noise

    recon, mu, logvar = jax.block_until_ready(vae_forward(x, eps, params))

    r_ref, mu_ref, lv_ref = vae_reference(x, eps, params)
    assert recon.shape == (B, D_IN) and mu.shape == (B, D_Z) and logvar.shape == (B, D_Z)
    # Tolerance reflects bf16 weight storage + bf16 activation feeds to the MXU
    # (all accumulation and the reparametrization/exp/tanh stay f32).
    assert jnp.allclose(recon, r_ref, atol=3e-2, rtol=3e-2)
    assert jnp.allclose(mu, mu_ref, atol=3e-2, rtol=3e-2)
    assert jnp.allclose(logvar, lv_ref, atol=3e-2, rtol=3e-2)
    assert bool(jnp.all(jnp.isfinite(recon)))

    print("KERNEL_OK")
</pallas_src>

<mosaic_0001>
module attributes {stable_mosaic.version = 11 : i64} {
  func.func @vae_kernel(%arg0: i32, %arg1: memref<16x896xbf16, #tpu.memory_space<vmem>>, %arg2: memref<16x128xbf16, #tpu.memory_space<vmem>>, %arg3: memref<896x512xbf16, #tpu.memory_space<vmem>>, %arg4: memref<1x512xf32, #tpu.memory_space<vmem>>, %arg5: memref<512x256xbf16, #tpu.memory_space<vmem>>, %arg6: memref<1x256xf32, #tpu.memory_space<vmem>>, %arg7: memref<128x512xbf16, #tpu.memory_space<vmem>>, %arg8: memref<1x512xf32, #tpu.memory_space<vmem>>, %arg9: memref<512x896xbf16, #tpu.memory_space<vmem>>, %arg10: memref<1x896xf32, #tpu.memory_space<vmem>>, %arg11: memref<16x896xf32, #tpu.memory_space<vmem>>, %arg12: memref<16x256xf32, #tpu.memory_space<vmem>>) attributes {dimension_semantics = [#tpu.dimension_semantics<parallel>], iteration_bounds = array<i64: 1>, scalar_prefetch = 0 : i64, scratch_operands = 0 : i64, tpu.core_type = #tpu.core_type<tc>, window_params = [{transform_indices = @transform_0, window_bounds = array<i64: 16, 896>}, {transform_indices = @transform_1, window_bounds = array<i64: 16, 128>}, {pipeline_mode = #tpu.pipeline_mode<synchronous>, transform_indices = @transform_2, window_bounds = array<i64: 896, 512>}, {pipeline_mode = #tpu.pipeline_mode<synchronous>, transform_indices = @transform_3, window_bounds = array<i64: 1, 512>}, {pipeline_mode = #tpu.pipeline_mode<synchronous>, transform_indices = @transform_4, window_bounds = array<i64: 512, 256>}, {pipeline_mode = #tpu.pipeline_mode<synchronous>, transform_indices = @transform_5, window_bounds = array<i64: 1, 256>}, {pipeline_mode = #tpu.pipeline_mode<synchronous>, transform_indices = @transform_6, window_bounds = array<i64: 128, 512>}, {pipeline_mode = #tpu.pipeline_mode<synchronous>, transform_indices = @transform_7, window_bounds = array<i64: 1, 512>}, {pipeline_mode = #tpu.pipeline_mode<synchronous>, transform_indices = @transform_8, window_bounds = array<i64: 512, 896>}, {pipeline_mode = #tpu.pipeline_mode<synchronous>, transform_indices = @transform_9, window_bounds = array<i64: 1, 896>}, {transform_indices = @transform_10, window_bounds = array<i64: 16, 896>}, {transform_indices = @transform_11, window_bounds = array<i64: 16, 256>}]} {
    %c0 = arith.constant 0 : index
    %c0_0 = arith.constant 0 : index
    %0 = vector.load %arg1[%c0, %c0_0] : memref<16x896xbf16, #tpu.memory_space<vmem>>, vector<16x896xbf16>
    %c0_1 = arith.constant 0 : index
    %c0_2 = arith.constant 0 : index
    %1 = vector.load %arg3[%c0_1, %c0_2] : memref<896x512xbf16, #tpu.memory_space<vmem>>, vector<896x512xbf16>
    %cst = arith.constant dense<0.000000e+00> : vector<16x512xf32>
    %2 = tpu.matmul %0, %1, %cst {dimension_numbers = #tpu.dot_dimension_numbers<[1], [0], [0], [1], [0, 0, 1, 1], [], []>} : vector<16x896xbf16>, vector<896x512xbf16>, vector<16x512xf32> -> vector<16x512xf32>
    %c0_3 = arith.constant 0 : index
    %c0_4 = arith.constant 0 : index
    %3 = vector.load %arg4[%c0_3, %c0_4] : memref<1x512xf32, #tpu.memory_space<vmem>>, vector<1x512xf32>
    %4 = vector.broadcast %3 : vector<1x512xf32> to vector<16x512xf32>
    %5 = arith.addf %2, %4 : vector<16x512xf32>
    %cst_5 = arith.constant 0.000000e+00 : f32
    %6 = vector.broadcast %cst_5 : f32 to vector<16x512xf32>
    %7 = arith.maximumf %5, %6 : vector<16x512xf32>
    %8 = arith.truncf %7 : vector<16x512xf32> to vector<16x512xbf16>
    %c0_6 = arith.constant 0 : index
    %c0_7 = arith.constant 0 : index
    %9 = vector.load %arg5[%c0_6, %c0_7] : memref<512x256xbf16, #tpu.memory_space<vmem>>, vector<512x256xbf16>
    %cst_8 = arith.constant dense<0.000000e+00> : vector<16x256xf32>
    %10 = tpu.matmul %8, %9, %cst_8 {dimension_numbers = #tpu.dot_dimension_numbers<[1], [0], [0], [1], [0, 0, 1, 1], [], []>} : vector<16x512xbf16>, vector<512x256xbf16>, vector<16x256xf32> -> vector<16x256xf32>
    %c0_9 = arith.constant 0 : index
    %c0_10 = arith.constant 0 : index
    %11 = vector.load %arg6[%c0_9, %c0_10] : memref<1x256xf32, #tpu.memory_space<vmem>>, vector<1x256xf32>
    %12 = vector.broadcast %11 : vector<1x256xf32> to vector<16x256xf32>
    %13 = arith.addf %10, %12 : vector<16x256xf32>
    %14 = vector.extract_strided_slice %13 {offsets = [0, 0], sizes = [16, 128], strides = [1, 1]} : vector<16x256xf32> to vector<16x128xf32>
    %15 = vector.extract_strided_slice %13 {offsets = [0, 128], sizes = [16, 128], strides = [1, 1]} : vector<16x256xf32> to vector<16x128xf32>
    %c0_11 = arith.constant 0 : index
    %c0_12 = arith.constant 0 : index
    %16 = vector.load %arg2[%c0_11, %c0_12] : memref<16x128xbf16, #tpu.memory_space<vmem>>, vector<16x128xbf16>
    %17 = arith.extf %16 : vector<16x128xbf16> to vector<16x128xf32>
    %cst_13 = arith.constant 5.000000e-01 : f32
    %18 = vector.broadcast %cst_13 : f32 to vector<16x128xf32>
    %19 = arith.mulf %18, %15 : vector<16x128xf32>
    %20 = math.exp %19 : vector<16x128xf32>
    %21 = arith.mulf %17, %20 : vector<16x128xf32>
    %22 = arith.addf %21, %14 : vector<16x128xf32>
    %23 = arith.truncf %22 : vector<16x128xf32> to vector<16x128xbf16>
    %c0_14 = arith.constant 0 : index
    %c0_15 = arith.constant 0 : index
    %24 = vector.load %arg7[%c0_14, %c0_15] : memref<128x512xbf16, #tpu.memory_space<vmem>>, vector<128x512xbf16>
    %cst_16 = arith.constant dense<0.000000e+00> : vector<16x512xf32>
    %25 = tpu.matmul %23, %24, %cst_16 {dimension_numbers = #tpu.dot_dimension_numbers<[1], [0], [0], [1], [0, 0, 1, 1], [], []>} : vector<16x128xbf16>, vector<128x512xbf16>, vector<16x512xf32> -> vector<16x512xf32>
    %c0_17 = arith.constant 0 : index
    %c0_18 = arith.constant 0 : index
    %26 = vector.load %arg8[%c0_17, %c0_18] : memref<1x512xf32, #tpu.memory_space<vmem>>, vector<1x512xf32>
    %27 = vector.broadcast %26 : vector<1x512xf32> to vector<16x512xf32>
    %28 = arith.addf %25, %27 : vector<16x512xf32>
    %cst_19 = arith.constant 0.000000e+00 : f32
    %29 = vector.broadcast %cst_19 : f32 to vector<16x512xf32>
    %30 = arith.maximumf %28, %29 : vector<16x512xf32>
    %31 = arith.truncf %30 : vector<16x512xf32> to vector<16x512xbf16>
    %c0_20 = arith.constant 0 : index
    %c0_21 = arith.constant 0 : index
    %32 = vector.load %arg9[%c0_20, %c0_21] : memref<512x896xbf16, #tpu.memory_space<vmem>>, vector<512x896xbf16>
    %cst_22 = arith.constant dense<0.000000e+00> : vector<16x896xf32>
    %33 = tpu.matmul %31, %32, %cst_22 {dimension_numbers = #tpu.dot_dimension_numbers<[1], [0], [0], [1], [0, 0, 1, 1], [], []>} : vector<16x512xbf16>, vector<512x896xbf16>, vector<16x896xf32> -> vector<16x896xf32>
    %c0_23 = arith.constant 0 : index
    %c0_24 = arith.constant 0 : index
    %34 = vector.load %arg10[%c0_23, %c0_24] : memref<1x896xf32, #tpu.memory_space<vmem>>, vector<1x896xf32>
    %35 = vector.broadcast %34 : vector<1x896xf32> to vector<16x896xf32>
    %36 = arith.addf %33, %35 : vector<16x896xf32>
    %37 = math.tanh %36 : vector<16x896xf32>
    %c0_25 = arith.constant 0 : index
    %c0_26 = arith.constant 0 : index
    %38 = vector.load %arg11[%c0_25, %c0_26] : memref<16x896xf32, #tpu.memory_space<vmem>>, vector<16x896xf32>
    tpu.vector_store %arg11[%c0_25, %c0_26], %37 {strides = array<i32>} : memref<16x896xf32, #tpu.memory_space<vmem>>, vector<16x896xf32>,
    %c0_27 = arith.constant 0 : index
    %c0_28 = arith.constant 0 : index
    %39 = vector.load %arg12[%c0_27, %c0_28] : memref<16x256xf32, #tpu.memory_space<vmem>>, vector<16x256xf32>
    tpu.vector_store %arg12[%c0_27, %c0_28], %13 {strides = array<i32>} : memref<16x256xf32, #tpu.memory_space<vmem>>, vector<16x256xf32>,
    return
  }
  func.func @transform_0(%arg0: i32) -> (i32, i32) {
    %c0_i32 = arith.constant 0 : i32
    %c0_i32_0 = arith.constant 0 : i32
    return %arg0, %c0_i32 : i32, i32
  }
  func.func @transform_1(%arg0: i32) -> (i32, i32) {
    %c0_i32 = arith.constant 0 : i32
    %c0_i32_0 = arith.constant 0 : i32
    return %arg0, %c0_i32 : i32, i32
  }
  func.func @transform_2(%arg0: i32) -> (i32, i32) {
    %c0_i32 = arith.constant 0 : i32
    %c0_i32_0 = arith.constant 0 : i32
    %c0_i32_1 = arith.constant 0 : i32
    return %c0_i32, %c0_i32_0 : i32, i32
  }
  func.func @transform_3(%arg0: i32) -> (i32, i32) {
    %c0_i32 = arith.constant 0 : i32
    %c0_i32_0 = arith.constant 0 : i32
    %c0_i32_1 = arith.constant 0 : i32
    return %c0_i32, %c0_i32_0 : i32, i32
  }
  func.func @transform_4(%arg0: i32) -> (i32, i32) {
    %c0_i32 = arith.constant 0 : i32
    %c0_i32_0 = arith.constant 0 : i32
    %c0_i32_1 = arith.constant 0 : i32
    return %c0_i32, %c0_i32_0 : i32, i32
  }
  func.func @transform_5(%arg0: i32) -> (i32, i32) {
    %c0_i32 = arith.constant 0 : i32
    %c0_i32_0 = arith.constant 0 : i32
    %c0_i32_1 = arith.constant 0 : i32
    return %c0_i32, %c0_i32_0 : i32, i32
  }
  func.func @transform_6(%arg0: i32) -> (i32, i32) {
    %c0_i32 = arith.constant 0 : i32
    %c0_i32_0 = arith.constant 0 : i32
    %c0_i32_1 = arith.constant 0 : i32
    return %c0_i32, %c0_i32_0 : i32, i32
  }
  func.func @transform_7(%arg0: i32) -> (i32, i32) {
    %c0_i32 = arith.constant 0 : i32
    %c0_i32_0 = arith.constant 0 : i32
    %c0_i32_1 = arith.constant 0 : i32
    return %c0_i32, %c0_i32_0 : i32, i32
  }
  func.func @transform_8(%arg0: i32) -> (i32, i32) {
    %c0_i32 = arith.constant 0 : i32
    %c0_i32_0 = arith.constant 0 : i32
    %c0_i32_1 = arith.constant 0 : i32
    return %c0_i32, %c0_i32_0 : i32, i32
  }
  func.func @transform_9(%arg0: i32) -> (i32, i32) {
    %c0_i32 = arith.constant 0 : i32
    %c0_i32_0 = arith.constant 0 : i32
    %c0_i32_1 = arith.constant 0 : i32
    return %c0_i32, %c0_i32_0 : i32, i32
  }
  func.func @transform_10(%arg0: i32) -> (i32, i32) {
    %c0_i32 = arith.constant 0 : i32
    %c0_i32_0 = arith.constant 0 : i32
    return %arg0, %c0_i32 : i32, i32
  }
  func.func @transform_11(%arg0: i32) -> (i32, i32) {
    %c0_i32 = arith.constant 0 : i32
    %c0_i32_0 = arith.constant 0 : i32
    return %arg0, %c0_i32 : i32, i32
  }
}

</mosaic_0001>

<llo_original>
// kernel: tpu_custom_call.1
$region0: #{tpu_custom_call.1}
  #allocation0 [shape = 'u32[]', space=smem, size = 0x4, offset = 0x4, fixed_abs, tag = 'smem constant byte address 0x4 - core index']
  #allocation1 [shape = 'u32[144,128]{1,0:T(1,128)}', space=vmem, size = 0x12000, scoped, tag = 'internal scratch']
  %s0 = inlined_call_operand.hbm [shape: bf16[16,896], index: 0, kind: input, shape index: {}]
  %s1 = inlined_call_operand.hbm [shape: bf16[16,128], index: 1, kind: input, shape index: {}]
  %s2 = inlined_call_operand.hbm [shape: bf16[896,512], index: 2, kind: input, shape index: {}]
  %s3 = inlined_call_operand.vmem [shape: f32[1,512], index: 3, kind: input, shape index: {}]
  %s4 = inlined_call_operand.hbm [shape: bf16[512,256], index: 4, kind: input, shape index: {}]
  %s5 = inlined_call_operand.vmem [shape: f32[1,256], index: 5, kind: input, shape index: {}]
  %s6 = inlined_call_operand.hbm [shape: bf16[128,512], index: 6, kind: input, shape index: {}]
  %s7 = inlined_call_operand.vmem [shape: f32[1,512], index: 7, kind: input, shape index: {}]
  %s8 = inlined_call_operand.hbm [shape: bf16[512,896], index: 8, kind: input, shape index: {}]
  %s9 = inlined_call_operand.vmem [shape: f32[1,896], index: 9, kind: input, shape index: {}]
  %s10 = inlined_call_operand.hbm [shape: f32[16,896], index: 10, kind: output, shape index: {0}]
  %s11 = inlined_call_operand.hbm [shape: f32[16,256], index: 11, kind: output, shape index: {1}]
  %12 = xla_tuple %s10, %s11
  %s13 = sld [smem:[#allocation0]]
  $region82: #{tpu_custom_call.1} parent=0
    _
  %s15 = ssub.s32 1, %s13
  %s16 = scalar_select 0, %s15, %s13
  $region1: #{tpu_custom_call.1} parent=0
    #allocation2 [shape = 'u8[28672]{0}', space=vmem, size = 0x7000, scoped, tag = 'input window, operand 0, single buffered']
    #allocation3 [shape = 's32[1]{0}', space=sflag, size = 0x4, scoped, tag = 'scoped memory for tpu_custom_call.1']
    #allocation4 [shape = 's32[1]{0}', space=sflag, size = 0x4, scoped, tag = 'scoped memory for tpu_custom_call.1']
    #allocation5 [shape = 'u8[4096]{0}', space=vmem, size = 0x1000, scoped, tag = 'input window, operand 1, single buffered']
    #allocation6 [shape = 's32[1]{0}', space=sflag, size = 0x4, scoped, tag = 'scoped memory for tpu_custom_call.1']
    #allocation7 [shape = 'u8[917504]{0}', space=vmem, size = 0xe0000, scoped, tag = 'input window, operand 2, single buffered']
    #allocation8 [shape = 'u8[262144]{0}', space=vmem, size = 0x40000, scoped, tag = 'input window, operand 4, single buffered']
    #allocation9 [shape = 's32[1]{0}', space=sflag, size = 0x4, scoped, tag = 'scoped memory for tpu_custom_call.1']
    #allocation10 [shape = 'u8[131072]{0}', space=vmem, size = 0x20000, scoped, tag = 'input window, operand 6, single buffered']
    #allocation11 [shape = 'u8[917504]{0}', space=vmem, size = 0xe0000, scoped, tag = 'input window, operand 8, single buffered']
    #allocation12 [shape = 's32[1]{0}', space=sflag, size = 0x4, scoped, tag = 'scoped memory for tpu_custom_call.1']
    #allocation13 [shape = 'u8[57344]{0}', space=vmem, size = 0xe000, scoped, tag = 'output window, operand 0, single buffered']
    #allocation14 [shape = 'u8[16384]{0}', space=vmem, size = 0x4000, scoped, tag = 'output window, operand 1, single buffered']
    #allocation15 [shape = 's32[1]{0}', space=sflag, size = 0x4, scoped, tag = 'scoped memory for tpu_custom_call.1']
    %17 = vsyncpa [#allocation3], 0
    %18 = vsyncpa [#allocation6], 0
    %19 = vsyncpa [#allocation9], 0
    %20 = vsyncpa [#allocation12], 0
    %21 = vsyncpa [#allocation4], 0
    %22 = vsyncpa [#allocation15], 0
    // Predicated region
    $region2: #{tpu_custom_call.1} parent=1 // pred_check
      _
    $region3: #{tpu_custom_call.1} parent=1 // pred_check_branch
      %24 = sbr.rel (0) target = $region5
    $region4: #{tpu_custom_call.1} parent=1 // pred_region
      %s26 = ssub.s32 896, 896
      %27 = vsyncadd [#allocation3], %s26
      %s28 = sshll.u32 [#allocation2], 4
      %s29 = int_to_ptr.vmem [resolvable:$true] %s28
      %34 = dma.hbm_to_vmem [thread:$0]  %s0, 896, %s29, [#allocation3], 448, 448, 28
    $region5: #{tpu_custom_call.1} parent=1 // pred_fallthru
      _
    // Predicated region
    $region6: #{tpu_custom_call.1} parent=1 // pred_check
      _
    $region7: #{tpu_custom_call.1} parent=1 // pred_check_branch
      %36 = sbr.rel (0) target = $region9
    $region8: #{tpu_custom_call.1} parent=1 // pred_region
      %s38 = ssub.s32 128, 128
      %39 = vsyncadd [#allocation6], %s38
      %s40 = sshll.u32 [#allocation5], 4
      %s41 = int_to_ptr.vmem [resolvable:$true] %s40
      %46 = dma.hbm_to_vmem [thread:$0]  %s1, 128, %s41, [#allocation6], 64, 64, 4
    $region9: #{tpu_custom_call.1} parent=1 // pred_fallthru
      _
    // Predicated region
    $region10: #{tpu_custom_call.1} parent=1 // pred_check
      _
    $region11: #{tpu_custom_call.1} parent=1 // pred_check_branch
      %48 = sbr.rel (0) target = $region13
    $region12: #{tpu_custom_call.1} parent=1 // pred_region
      %s50 = ssub.s32 28672, 28672
      %51 = vsyncadd [#allocation6], %s50
      %s52 = sshll.u32 [#allocation7], 4
      %s53 = int_to_ptr.vmem [resolvable:$true] %s52
      %58 = dma.hbm_to_vmem [thread:$0]  %s2, 28672, %s53, [#allocation6], 256, 256, 16
    $region13: #{tpu_custom_call.1} parent=1 // pred_fallthru
      _
    // Predicated region
    $region14: #{tpu_custom_call.1} parent=1 // pred_check
      _
    $region15: #{tpu_custom_call.1} parent=1 // pred_check_branch
      %60 = sbr.rel (0) target = $region17
    $region16: #{tpu_custom_call.1} parent=1 // pred_region
      _
    $region17: #{tpu_custom_call.1} parent=1 // pred_fallthru
      _
    // Predicated region
    $region18: #{tpu_custom_call.1} parent=1 // pred_check
      _
    $region19: #{tpu_custom_call.1} parent=1 // pred_check_branch
      %62 = sbr.rel (0) target = $region21
    $region20: #{tpu_custom_call.1} parent=1 // pred_region
      %s64 = ssub.s32 8192, 8192
      %65 = vsyncadd [#allocation9], %s64
      %s66 = sshll.u32 [#allocation8], 4
      %s67 = int_to_ptr.vmem [resolvable:$true] %s66
      %72 = dma.hbm_to_vmem [thread:$0]  %s4, 8192, %s67, [#allocation9], 128, 128, 8
    $region21: #{tpu_custom_call.1} parent=1 // pred_fallthru
      _
    // Predicated region
    $region22: #{tpu_custom_call.1} parent=1 // pred_check
      _
    $region23: #{tpu_custom_call.1} parent=1 // pred_check_branch
      %74 = sbr.rel (0) target = $region25
    $region24: #{tpu_custom_call.1} parent=1 // pred_region
      _
    $region25: #{tpu_custom_call.1} parent=1 // pred_fallthru
      _
    // Predicated region
    $region26: #{tpu_custom_call.1} parent=1 // pred_check
      _
    $region27: #{tpu_custom_call.1} parent=1 // pred_check_branch
      %76 = sbr.rel (0) target = $region29
    $region28: #{tpu_custom_call.1} parent=1 // pred_region
      %s78 = ssub.s32 4096, 4096
      %79 = vsyncadd [#allocation9], %s78
      %s80 = sshll.u32 [#allocation10], 4
      %s81 = int_to_ptr.vmem [resolvable:$true] %s80
      %86 = dma.hbm_to_vmem [thread:$0]  %s6, 4096, %s81, [#allocation9], 256, 256, 16
    $region29: #{tpu_custom_call.1} parent=1 // pred_fallthru
      _
    // Predicated region
    $region30: #{tpu_custom_call.1} parent=1 // pred_check
      _
    $region31: #{tpu_custom_call.1} parent=1 // pred_check_branch
      %88 = sbr.rel (0) target = $region33
    $region32: #{tpu_custom_call.1} parent=1 // pred_region
      _
    $region33: #{tpu_custom_call.1} parent=1 // pred_fallthru
      _
    // Predicated region
    $region34: #{tpu_custom_call.1} parent=1 // pred_check
      _
    $region35: #{tpu_custom_call.1} parent=1 // pred_check_branch
      %90 = sbr.rel (0) target = $region37
    $region36: #{tpu_custom_call.1} parent=1 // pred_region
      %s92 = ssub.s32 28672, 28672
      %93 = vsyncadd [#allocation12], %s92
      %s94 = sshll.u32 [#allocation11], 4
      %s95 = int_to_ptr.vmem [resolvable:$true] %s94
      %100 = dma.hbm_to_vmem [thread:$0]  %s8, 28672, %s95, [#allocation12], 448, 448, 28
    $region37: #{tpu_custom_call.1} parent=1 // pred_fallthru
      _
    // Predicated region
    $region38: #{tpu_custom_call.1} parent=1 // pred_check
      _
    $region39: #{tpu_custom_call.1} parent=1 // pred_check_branch
      %102 = sbr.rel (0) target = $region41
    $region40: #{tpu_custom_call.1} parent=1 // pred_region
      _
    $region41: #{tpu_custom_call.1} parent=1 // pred_fallthru
      _
    // Predicated region
    $region42: #{tpu_custom_call.1} parent=1 // pred_check
      _
    $region43: #{tpu_custom_call.1} parent=1 // pred_check_branch
      %104 = sbr.rel (0) target = $region45
    $region44: #{tpu_custom_call.1} parent=1 // pred_region
      %105 = dma.done [#allocation3], 896
    $region45: #{tpu_custom_call.1} parent=1 // pred_fallthru
      _
    // Predicated region
    $region46: #{tpu_custom_call.1} parent=1 // pred_check
      _
    $region47: #{tpu_custom_call.1} parent=1 // pred_check_branch
      %107 = sbr.rel (0) target = $region49
    $region48: #{tpu_custom_call.1} parent=1 // pred_region
      %108 = dma.done [#allocation6], 128
    $region49: #{tpu_custom_call.1} parent=1 // pred_fallthru
      _
    // Predicated region
    $region50: #{tpu_custom_call.1} parent=1 // pred_check
      _
    $region51: #{tpu_custom_call.1} parent=1 // pred_check_branch
      %110 = sbr.rel (0) target = $region53
    $region52: #{tpu_custom_call.1} parent=1 // pred_region
      %111 = dma.done [#allocation6], 28672
    $region53: #{tpu_custom_call.1} parent=1 // pred_fallthru
      _
    // Predicated region
    $region54: #{tpu_custom_call.1} parent=1 // pred_check
      _
    $region55: #{tpu_custom_call.1} parent=1 // pred_check_branch
      %113 = sbr.rel (0) target = $region57
    $region56: #{tpu_custom_call.1} parent=1 // pred_region
      %114 = dma.done [#allocation9], 8192
    $region57: #{tpu_custom_call.1} parent=1 // pred_fallthru
      _
    // Predicated region
    $region58: #{tpu_custom_call.1} parent=1 // pred_check
      _
    $region59: #{tpu_custom_call.1} parent=1 // pred_check_branch
      %116 = sbr.rel (0) target = $region61
    $region60: #{tpu_custom_call.1} parent=1 // pred_region
      %117 = dma.done [#allocation9], 4096
    $region61: #{tpu_custom_call.1} parent=1 // pred_fallthru
      _
    // Predicated region
    $region62: #{tpu_custom_call.1} parent=1 // pred_check
      _
    $region63: #{tpu_custom_call.1} parent=1 // pred_check_branch
      %119 = sbr.rel (0) target = $region65
    $region64: #{tpu_custom_call.1} parent=1 // pred_region
      %120 = dma.done [#allocation12], 28672
    $region65: #{tpu_custom_call.1} parent=1 // pred_fallthru
      _
    %v122 = vld [vmem:[#allocation2] sm:$0xff]
    %v123 = vld [vmem:[#allocation2 + $0x8] sm:$0xff]
    %v124 = vld [vmem:[#allocation2 + $0x10] sm:$0xff]
    %v125 = vld [vmem:[#allocation2 + $0x18] sm:$0xf]
    %v126 = vld [vmem:[#allocation2 + $0x1c] sm:$0xff]
    %v127 = vld [vmem:[#allocation2 + $0x24] sm:$0xff]
    %v128 = vld [vmem:[#allocation2 + $0x2c] sm:$0xff]
    %v129 = vld [vmem:[#allocation2 + $0x34] sm:$0xf]
    %v130 = vld [vmem:[#allocation7] sm:$0xff]
    %v131 = vld [vmem:[#allocation7 + $0x8] sm:$0xff]
    %v132 = vld [vmem:[#allocation7 + $0x10] sm:$0xff]
    %v133 = vld [vmem:[#allocation7 + $0x18] sm:$0xff]
    %v134 = vld [vmem:[#allocation7 + $0x20] sm:$0xff]
    %v135 = vld [vmem:[#allocation7 + $0x28] sm:$0xff]
    %v136 = vld [vmem:[#allocation7 + $0x30] sm:$0xff]
    %v137 = vld [vmem:[#allocation7 + $0x38] sm:$0xff]
    %v138 = vld [vmem:[#allocation7 + $0x40] sm:$0xff]
    %v139 = vld [vmem:[#allocation7 + $0x48] sm:$0xff]
    %v140 = vld [vmem:[#allocation7 + $0x50] sm:$0xff]
    %v141 = vld [vmem:[#allocation7 + $0x58] sm:$0xff]
    %v142 = vld [vmem:[#allocation7 + $0x60] sm:$0xff]
    %v143 = vld [vmem:[#allocation7 + $0x68] sm:$0xff]
    %v144 = vld [vmem:[#allocation7 + $0x70] sm:$0xff]
    %v145 = vld [vmem:[#allocation7 + $0x78] sm:$0xff]
    %v146 = vld [vmem:[#allocation7 + $0x80] sm:$0xff]
    %v147 = vld [vmem:[#allocation7 + $0x88] sm:$0xff]
    %v148 = vld [vmem:[#allocation7 + $0x90] sm:$0xff]
    %v149 = vld [vmem:[#allocation7 + $0x98] sm:$0xff]
    %v150 = vld [vmem:[#allocation7 + $0xa0] sm:$0xff]
    %v151 = vld [vmem:[#allocation7 + $0xa8] sm:$0xff]
    %v152 = vld [vmem:[#allocation7 + $0xb0] sm:$0xff]
    %v153 = vld [vmem:[#allocation7 + $0xb8] sm:$0xff]
    %v154 = vld [vmem:[#allocation7 + $0xc0] sm:$0xff]
    %v155 = vld [vmem:[#allocation7 + $0xc8] sm:$0xff]
    %v156 = vld [vmem:[#allocation7 + $0xd0] sm:$0xff]
    %v157 = vld [vmem:[#allocation7 + $0xd8] sm:$0xff]
    %v158 = vld [vmem:[#allocation7 + $0xe0] sm:$0xff]
    %v159 = vld [vmem:[#allocation7 + $0xe8] sm:$0xff]
    %v160 = vld [vmem:[#allocation7 + $0xf0] sm:$0xff]
    %v161 = vld [vmem:[#allocation7 + $0xf8] sm:$0xff]
    %v162 = vld [vmem:[#allocation7 + $0x100] sm:$0xff]
    %v163 = vld [vmem:[#allocation7 + $0x108] sm:$0xff]
    %v164 = vld [vmem:[#allocation7 + $0x110] sm:$0xff]
    %v165 = vld [vmem:[#allocation7 + $0x118] sm:$0xff]
    %v166 = vld [vmem:[#allocation7 + $0x120] sm:$0xff]
    %v167 = vld [vmem:[#allocation7 + $0x128] sm:$0xff]
    %v168 = vld [vmem:[#allocation7 + $0x130] sm:$0xff]
    %v169 = vld [vmem:[#allocation7 + $0x138] sm:$0xff]
    %v170 = vld [vmem:[#allocation7 + $0x140] sm:$0xff]
    %v171 = vld [vmem:[#allocation7 + $0x148] sm:$0xff]
    %v172 = vld [vmem:[#allocation7 + $0x150] sm:$0xff]
    %v173 = vld [vmem:[#allocation7 + $0x158] sm:$0xff]
    %v174 = vld [vmem:[#allocation7 + $0x160] sm:$0xff]
    %v175 = vld [vmem:[#allocation7 + $0x168] sm:$0xff]
    %v176 = vld [vmem:[#allocation7 + $0x170] sm:$0xff]
    %v177 = vld [vmem:[#allocation7 + $0x178] sm:$0xff]
    %v178 = vld [vmem:[#allocation7 + $0x180] sm:$0xff]
    %v179 = vld [vmem:[#allocation7 + $0x188] sm:$0xff]
    %v180 = vld [vmem:[#allocation7 + $0x190] sm:$0xff]
    %v181 = vld [vmem:[#allocation7 + $0x198] sm:$0xff]
    %v182 = vld [vmem:[#allocation7 + $0x1a0] sm:$0xff]
    %v183 = vld [vmem:[#allocation7 + $0x1a8] sm:$0xff]
    %v184 = vld [vmem:[#allocation7 + $0x1b0] sm:$0xff]
    %v185 = vld [vmem:[#allocation7 + $0x1b8] sm:$0xff]
    %v186 = vld [vmem:[#allocation7 + $0x1c0] sm:$0xff]
    %v187 = vld [vmem:[#allocation7 + $0x1c8] sm:$0xff]
    %v188 = vld [vmem:[#allocation7 + $0x1d0] sm:$0xff]
    %v189 = vld [vmem:[#allocation7 + $0x1d8] sm:$0xff]
    %v190 = vld [vmem:[#allocation7 + $0x1e0] sm:$0xff]
    %v191 = vld [vmem:[#allocation7 + $0x1e8] sm:$0xff]
    %v192 = vld [vmem:[#allocation7 + $0x1f0] sm:$0xff]
    %v193 = vld [vmem:[#allocation7 + $0x1f8] sm:$0xff]
    %v194 = vld [vmem:[#allocation7 + $0x200] sm:$0xff]
    %v195 = vld [vmem:[#allocation7 + $0x208] sm:$0xff]
    %v196 = vld [vmem:[#allocation7 + $0x210] sm:$0xff]
    %v197 = vld [vmem:[#allocation7 + $0x218] sm:$0xff]
    %v198 = vld [vmem:[#allocation7 + $0x220] sm:$0xff]
    %v199 = vld [vmem:[#allocation7 + $0x228] sm:$0xff]
    %v200 = vld [vmem:[#allocation7 + $0x230] sm:$0xff]
    %v201 = vld [vmem:[#allocation7 + $0x238] sm:$0xff]
    %v202 = vld [vmem:[#allocation7 + $0x240] sm:$0xff]
    %v203 = vld [vmem:[#allocation7 + $0x248] sm:$0xff]
    %v204 = vld [vmem:[#allocation7 + $0x250] sm:$0xff]
    %v205 = vld [vmem:[#allocation7 + $0x258] sm:$0xff]
    %v206 = vld [vmem:[#allocation7 + $0x260] sm:$0xff]
    %v207 = vld [vmem:[#allocation7 + $0x268] sm:$0xff]
    %v208 = vld [vmem:[#allocation7 + $0x270] sm:$0xff]
    %v209 = vld [vmem:[#allocation7 + $0x278] sm:$0xff]
    %v210 = vld [vmem:[#allocation7 + $0x280] sm:$0xff]
    %v211 = vld [vmem:[#allocation7 + $0x288] sm:$0xff]
    %v212 = vld [vmem:[#allocation7 + $0x290] sm:$0xff]
    %v213 = vld [vmem:[#allocation7 + $0x298] sm:$0xff]
    %v214 = vld [vmem:[#allocation7 + $0x2a0] sm:$0xff]
    %v215 = vld [vmem:[#allocation7 + $0x2a8] sm:$0xff]
    %v216 = vld [vmem:[#allocation7 + $0x2b0] sm:$0xff]
    %v217 = vld [vmem:[#allocation7 + $0x2b8] sm:$0xff]
    %v218 = vld [vmem:[#allocation7 + $0x2c0] sm:$0xff]
    %v219 = vld [vmem:[#allocation7 + $0x2c8] sm:$0xff]
    %v220 = vld [vmem:[#allocation7 + $0x2d0] sm:$0xff]
    %v221 = vld [vmem:[#allocation7 + $0x2d8] sm:$0xff]
    %v222 = vld [vmem:[#allocation7 + $0x2e0] sm:$0xff]
    %v223 = vld [vmem:[#allocation7 + $0x2e8] sm:$0xff]
    %v224 = vld [vmem:[#allocation7 + $0x2f0] sm:$0xff]
    %v225 = vld [vmem:[#allocation7 + $0x2f8] sm:$0xff]
    %v226 = vld [vmem:[#allocation7 + $0x300] sm:$0xff]
    %v227 = vld [vmem:[#allocation7 + $0x308] sm:$0xff]
    %v228 = vld [vmem:[#allocation7 + $0x310] sm:$0xff]
    %v229 = vld [vmem:[#allocation7 + $0x318] sm:$0xff]
    %v230 = vld [vmem:[#allocation7 + $0x320] sm:$0xff]
    %v231 = vld [vmem:[#allocation7 + $0x328] sm:$0xff]
    %v232 = vld [vmem:[#allocation7 + $0x330] sm:$0xff]
    %v233 = vld [vmem:[#allocation7 + $0x338] sm:$0xff]
    %v234 = vld [vmem:[#allocation7 + $0x340] sm:$0xff]
    %v235 = vld [vmem:[#allocation7 + $0x348] sm:$0xff]
    %v236 = vld [vmem:[#allocation7 + $0x350] sm:$0xff]
    %v237 = vld [vmem:[#allocation7 + $0x358] sm:$0xff]
    %v238 = vld [vmem:[#allocation7 + $0x360] sm:$0xff]
    %v239 = vld [vmem:[#allocation7 + $0x368] sm:$0xff]
    %v240 = vld [vmem:[#allocation7 + $0x370] sm:$0xff]
    %v241 = vld [vmem:[#allocation7 + $0x378] sm:$0xff]
    %v242 = vld [vmem:[#allocation7 + $0x380] sm:$0xff]
    %v243 = vld [vmem:[#allocation7 + $0x388] sm:$0xff]
    %v244 = vld [vmem:[#allocation7 + $0x390] sm:$0xff]
    %v245 = vld [vmem:[#allocation7 + $0x398] sm:$0xff]
    %v246 = vld [vmem:[#allocation7 + $0x3a0] sm:$0xff]
    %v247 = vld [vmem:[#allocation7 + $0x3a8] sm:$0xff]
    %v248 = vld [vmem:[#allocation7 + $0x3b0] sm:$0xff]
    %v249 = vld [vmem:[#allocation7 + $0x3b8] sm:$0xff]
    %v250 = vld [vmem:[#allocation7 + $0x3c0] sm:$0xff]
    %v251 = vld [vmem:[#allocation7 + $0x3c8] sm:$0xff]
    %v252 = vld [vmem:[#allocation7 + $0x3d0] sm:$0xff]
    %v253 = vld [vmem:[#allocation7 + $0x3d8] sm:$0xff]
    %v254 = vld [vmem:[#allocation7 + $0x3e0] sm:$0xff]
    %v255 = vld [vmem:[#allocation7 + $0x3e8] sm:$0xff]
    %v256 = vld [vmem:[#allocation7 + $0x3f0] sm:$0xff]
    %v257 = vld [vmem:[#allocation7 + $0x3f8] sm:$0xff]
    %v258 = vld [vmem:[#allocation7 + $0x400] sm:$0xff]
    %v259 = vld [vmem:[#allocation7 + $0x408] sm:$0xff]
    %v260 = vld [vmem:[#allocation7 + $0x410] sm:$0xff]
    %v261 = vld [vmem:[#allocation7 + $0x418] sm:$0xff]
    %v262 = vld [vmem:[#allocation7 + $0x420] sm:$0xff]
    %v263 = vld [vmem:[#allocation7 + $0x428] sm:$0xff]
    %v264 = vld [vmem:[#allocation7 + $0x430] sm:$0xff]
    %v265 = vld [vmem:[#allocation7 + $0x438] sm:$0xff]
    %v266 = vld [vmem:[#allocation7 + $0x440] sm:$0xff]
    %v267 = vld [vmem:[#allocation7 + $0x448] sm:$0xff]
    %v268 = vld [vmem:[#allocation7 + $0x450] sm:$0xff]
    %v269 = vld [vmem:[#allocation7 + $0x458] sm:$0xff]
    %v270 = vld [vmem:[#allocation7 + $0x460] sm:$0xff]
    %v271 = vld [vmem:[#allocation7 + $0x468] sm:$0xff]
    %v272 = vld [vmem:[#allocation7 + $0x470] sm:$0xff]
    %v273 = vld [vmem:[#allocation7 + $0x478] sm:$0xff]
    %v274 = vld [vmem:[#allocation7 + $0x480] sm:$0xff]
    %v275 = vld [vmem:[#allocation7 + $0x488] sm:$0xff]
    %v276 = vld [vmem:[#allocation7 + $0x490] sm:$0xff]
    %v277 = vld [vmem:[#allocation7 + $0x498] sm:$0xff]
    %v278 = vld [vmem:[#allocation7 + $0x4a0] sm:$0xff]
    %v279 = vld [vmem:[#allocation7 + $0x4a8] sm:$0xff]
    %v280 = vld [vmem:[#allocation7 + $0x4b0] sm:$0xff]
    %v281 = vld [vmem:[#allocation7 + $0x4b8] sm:$0xff]
    %v282 = vld [vmem:[#allocation7 + $0x4c0] sm:$0xff]
    %v283 = vld [vmem:[#allocation7 + $0x4c8] sm:$0xff]
    %v284 = vld [vmem:[#allocation7 + $0x4d0] sm:$0xff]
    %v285 = vld [vmem:[#allocation7 + $0x4d8] sm:$0xff]
    %v286 = vld [vmem:[#allocation7 + $0x4e0] sm:$0xff]
    %v287 = vld [vmem:[#allocation7 + $0x4e8] sm:$0xff]
    %v288 = vld [vmem:[#allocation7 + $0x4f0] sm:$0xff]
    %v289 = vld [vmem:[#allocation7 + $0x4f8] sm:$0xff]
    %v290 = vld [vmem:[#allocation7 + $0x500] sm:$0xff]
    %v291 = vld [vmem:[#allocation7 + $0x508] sm:$0xff]
    %v292 = vld [vmem:[#allocation7 + $0x510] sm:$0xff]
    %v293 = vld [vmem:[#allocation7 + $0x518] sm:$0xff]
    %v294 = vld [vmem:[#allocation7 + $0x520] sm:$0xff]
    %v295 = vld [vmem:[#allocation7 + $0x528] sm:$0xff]
    %v296 = vld [vmem:[#allocation7 + $0x530] sm:$0xff]
    %v297 = vld [vmem:[#allocation7 + $0x538] sm:$0xff]
    %v298 = vld [vmem:[#allocation7 + $0x540] sm:$0xff]
    %v299 = vld [vmem:[#allocation7 + $0x548] sm:$0xff]
    %v300 = vld [vmem:[#allocation7 + $0x550] sm:$0xff]
    %v301 = vld [vmem:[#allocation7 + $0x558] sm:$0xff]
    %v302 = vld [vmem:[#allocation7 + $0x560] sm:$0xff]
    %v303 = vld [vmem:[#allocation7 + $0x568] sm:$0xff]
    %v304 = vld [vmem:[#allocation7 + $0x570] sm:$0xff]
    %v305 = vld [vmem:[#allocation7 + $0x578] sm:$0xff]
    %v306 = vld [vmem:[#allocation7 + $0x580] sm:$0xff]
    %v307 = vld [vmem:[#allocation7 + $0x588] sm:$0xff]
    %v308 = vld [vmem:[#allocation7 + $0x590] sm:$0xff]
    %v309 = vld [vmem:[#allocation7 + $0x598] sm:$0xff]
    %v310 = vld [vmem:[#allocation7 + $0x5a0] sm:$0xff]
    %v311 = vld [vmem:[#allocation7 + $0x5a8] sm:$0xff]
    %v312 = vld [vmem:[#allocation7 + $0x5b0] sm:$0xff]
    %v313 = vld [vmem:[#allocation7 + $0x5b8] sm:$0xff]
    %v314 = vld [vmem:[#allocation7 + $0x5c0] sm:$0xff]
    %v315 = vld [vmem:[#allocation7 + $0x5c8] sm:$0xff]
    %v316 = vld [vmem:[#allocation7 + $0x5d0] sm:$0xff]
    %v317 = vld [vmem:[#allocation7 + $0x5d8] sm:$0xff]
    %v318 = vld [vmem:[#allocation7 + $0x5e0] sm:$0xff]
    %v319 = vld [vmem:[#allocation7 + $0x5e8] sm:$0xff]
    %v320 = vld [vmem:[#allocation7 + $0x5f0] sm:$0xff]
    %v321 = vld [vmem:[#allocation7 + $0x5f8] sm:$0xff]
    %v322 = vld [vmem:[#allocation7 + $0x600] sm:$0xff]
    %v323 = vld [vmem:[#allocation7 + $0x608] sm:$0xff]
    %v324 = vld [vmem:[#allocation7 + $0x610] sm:$0xff]
    %v325 = vld [vmem:[#allocation7 + $0x618] sm:$0xff]
    %v326 = vld [vmem:[#allocation7 + $0x620] sm:$0xff]
    %v327 = vld [vmem:[#allocation7 + $0x628] sm:$0xff]
    %v328 = vld [vmem:[#allocation7 + $0x630] sm:$0xff]
    %v329 = vld [vmem:[#allocation7 + $0x638] sm:$0xff]
    %v330 = vld [vmem:[#allocation7 + $0x640] sm:$0xff]
    %v331 = vld [vmem:[#allocation7 + $0x648] sm:$0xff]
    %v332 = vld [vmem:[#allocation7 + $0x650] sm:$0xff]
    %v333 = vld [vmem:[#allocation7 + $0x658] sm:$0xff]
    %v334 = vld [vmem:[#allocation7 + $0x660] sm:$0xff]
    %v335 = vld [vmem:[#allocation7 + $0x668] sm:$0xff]
    %v336 = vld [vmem:[#allocation7 + $0x670] sm:$0xff]
    %v337 = vld [vmem:[#allocation7 + $0x678] sm:$0xff]
    %v338 = vld [vmem:[#allocation7 + $0x680] sm:$0xff]
    %v339 = vld [vmem:[#allocation7 + $0x688] sm:$0xff]
    %v340 = vld [vmem:[#allocation7 + $0x690] sm:$0xff]
    %v341 = vld [vmem:[#allocation7 + $0x698] sm:$0xff]
    %v342 = vld [vmem:[#allocation7 + $0x6a0] sm:$0xff]
    %v343 = vld [vmem:[#allocation7 + $0x6a8] sm:$0xff]
    %v344 = vld [vmem:[#allocation7 + $0x6b0] sm:$0xff]
    %v345 = vld [vmem:[#allocation7 + $0x6b8] sm:$0xff]
    %v346 = vld [vmem:[#allocation7 + $0x6c0] sm:$0xff]
    %v347 = vld [vmem:[#allocation7 + $0x6c8] sm:$0xff]
    %v348 = vld [vmem:[#allocation7 + $0x6d0] sm:$0xff]
    %v349 = vld [vmem:[#allocation7 + $0x6d8] sm:$0xff]
    %v350 = vld [vmem:[#allocation7 + $0x6e0] sm:$0xff]
    %v351 = vld [vmem:[#allocation7 + $0x6e8] sm:$0xff]
    %v352 = vld [vmem:[#allocation7 + $0x6f0] sm:$0xff]
    %v353 = vld [vmem:[#allocation7 + $0x6f8] sm:$0xff]
    %v354 = vld [vmem:[%s3] sm:$0xf]
    %v356 = vlaneseq
    %v357 = vshrl.u32 %v356, 7
    %v358 = vsub.s32 0, %v357
    %v359 = vrot.slane %v354, %v358
    %v360 = vlaneseq
    %v361 = vshrl.u32 %v360, 7
    %v362 = vsub.s32 1, %v361
    %v363 = vrot.slane %v354, %v362
    %v364 = vlaneseq
    %v365 = vshrl.u32 %v364, 7
    %v366 = vsub.s32 2, %v365
    %v367 = vrot.slane %v354, %v366
    %v368 = vlaneseq
    %v369 = vshrl.u32 %v368, 7
    %v370 = vsub.s32 3, %v369
    %v371 = vrot.slane %v354, %v370
    %v384 = vunpack.c.l.b16 %v122
    %v385 = vunpack.c.h.b16 %v122
    %v386 = vunpack.c.l.b16 %v123
    %v387 = vunpack.c.h.b16 %v123
    %v388 = vunpack.c.l.b16 %v124
    %v389 = vunpack.c.h.b16 %v124
    %v390 = vunpack.c.l.b16 %v125
    %v391 = vunpack.c.l.b16 %v126
    %v392 = vunpack.c.h.b16 %v126
    %v393 = vunpack.c.l.b16 %v127
    %v394 = vunpack.c.h.b16 %v127
    %v395 = vunpack.c.l.b16 %v128
    %v396 = vunpack.c.h.b16 %v128
    %v397 = vunpack.c.l.b16 %v129
    %v398 = vpack.c.b16 %v391, %v384
    %v399 = vpack.c.b16 %v392, %v385
    %v400 = vpack.c.b16 %v393, %v386
    %v401 = vpack.c.b16 %v394, %v387
    %v402 = vpack.c.b16 %v395, %v388
    %v403 = vpack.c.b16 %v396, %v389
    %v404 = vpack.c.b16 %v397, %v390
    %v636 = vunpack.c.l.b16 %v130
    %v637 = vunpack.c.h.b16 %v130
    %v638 = vunpack.c.l.b16 %v131
    %v639 = vunpack.c.h.b16 %v131
    %v640 = vunpack.c.l.b16 %v132
    %v641 = vunpack.c.h.b16 %v132
    %v642 = vunpack.c.l.b16 %v133
    %v643 = vunpack.c.h.b16 %v133
    %v644 = vunpack.c.l.b16 %v134
    %v645 = vunpack.c.h.b16 %v134
    %v646 = vunpack.c.l.b16 %v135
    %v647 = vunpack.c.h.b16 %v135
    %v648 = vunpack.c.l.b16 %v136
    %v649 = vunpack.c.h.b16 %v136
    %v650 = vunpack.c.l.b16 %v137
    %v651 = vunpack.c.h.b16 %v137
    %v652 = vunpack.c.l.b16 %v138
    %v653 = vunpack.c.h.b16 %v138
    %v654 = vunpack.c.l.b16 %v139
    %v655 = vunpack.c.h.b16 %v139
    %v656 = vunpack.c.l.b16 %v140
    %v657 = vunpack.c.h.b16 %v140
    %v658 = vunpack.c.l.b16 %v141
    %v659 = vunpack.c.h.b16 %v141
    %v660 = vunpack.c.l.b16 %v142
    %v661 = vunpack.c.h.b16 %v142
    %v662 = vunpack.c.l.b16 %v143
    %v663 = vunpack.c.h.b16 %v143
    %v664 = vunpack.c.l.b16 %v144
    %v665 = vunpack.c.h.b16 %v144
    %v666 = vunpack.c.l.b16 %v145
    %v667 = vunpack.c.h.b16 %v145
    %v668 = vunpack.c.l.b16 %v146
    %v669 = vunpack.c.h.b16 %v146
    %v670 = vunpack.c.l.b16 %v147
    %v671 = vunpack.c.h.b16 %v147
    %v672 = vunpack.c.l.b16 %v148
    %v673 = vunpack.c.h.b16 %v148
    %v674 = vunpack.c.l.b16 %v149
    %v675 = vunpack.c.h.b16 %v149
    %v676 = vunpack.c.l.b16 %v150
    %v677 = vunpack.c.h.b16 %v150
    %v678 = vunpack.c.l.b16 %v151
    %v679 = vunpack.c.h.b16 %v151
    %v680 = vunpack.c.l.b16 %v152
    %v681 = vunpack.c.h.b16 %v152
    %v682 = vunpack.c.l.b16 %v153
    %v683 = vunpack.c.h.b16 %v153
    %v684 = vunpack.c.l.b16 %v154
    %v685 = vunpack.c.h.b16 %v154
    %v686 = vunpack.c.l.b16 %v155
    %v687 = vunpack.c.h.b16 %v155
    %v688 = vunpack.c.l.b16 %v156
    %v689 = vunpack.c.h.b16 %v156
    %v690 = vunpack.c.l.b16 %v157
    %v691 = vunpack.c.h.b16 %v157
    %v692 = vunpack.c.l.b16 %v158
    %v693 = vunpack.c.h.b16 %v158
    %v694 = vunpack.c.l.b16 %v159
    %v695 = vunpack.c.h.b16 %v159
    %v696 = vunpack.c.l.b16 %v160
    %v697 = vunpack.c.h.b16 %v160
    %v698 = vunpack.c.l.b16 %v161
    %v699 = vunpack.c.h.b16 %v161
    %v700 = vunpack.c.l.b16 %v162
    %v701 = vunpack.c.h.b16 %v162
    %v702 = vunpack.c.l.b16 %v163
    %v703 = vunpack.c.h.b16 %v163
    %v704 = vunpack.c.l.b16 %v164
    %v705 = vunpack.c.h.b16 %v164
    %v706 = vunpack.c.l.b16 %v165
    %v707 = vunpack.c.h.b16 %v165
    %v708 = vunpack.c.l.b16 %v166
    %v709 = vunpack.c.h.b16 %v166
    %v710 = vunpack.c.l.b16 %v167
    %v711 = vunpack.c.h.b16 %v167
    %v712 = vunpack.c.l.b16 %v168
    %v713 = vunpack.c.h.b16 %v168
    %v714 = vunpack.c.l.b16 %v169
    %v715 = vunpack.c.h.b16 %v169
    %v716 = vunpack.c.l.b16 %v170
    %v717 = vunpack.c.h.b16 %v170
    %v718 = vunpack.c.l.b16 %v171
    %v719 = vunpack.c.h.b16 %v171
    %v720 = vunpack.c.l.b16 %v172
    %v721 = vunpack.c.h.b16 %v172
    %v722 = vunpack.c.l.b16 %v173
    %v723 = vunpack.c.h.b16 %v173
    %v724 = vunpack.c.l.b16 %v174
    %v725 = vunpack.c.h.b16 %v174
    %v726 = vunpack.c.l.b16 %v175
    %v727 = vunpack.c.h.b16 %v175
    %v728 = vunpack.c.l.b16 %v176
    %v729 = vunpack.c.h.b16 %v176
    %v730 = vunpack.c.l.b16 %v177
    %v731 = vunpack.c.h.b16 %v177
    %v732 = vunpack.c.l.b16 %v178
    %v733 = vunpack.c.h.b16 %v178
    %v734 = vunpack.c.l.b16 %v179
    %v735 = vunpack.c.h.b16 %v179
    %v736 = vunpack.c.l.b16 %v180
    %v737 = vunpack.c.h.b16 %v180
    %v738 = vunpack.c.l.b16 %v181
    %v739 = vunpack.c.h.b16 %v181
    %v740 = vunpack.c.l.b16 %v182
    %v741 = vunpack.c.h.b16 %v182
    %v742 = vunpack.c.l.b16 %v183
    %v743 = vunpack.c.h.b16 %v183
    %v744 = vunpack.c.l.b16 %v184
    %v745 = vunpack.c.h.b16 %v184
    %v746 = vunpack.c.l.b16 %v185
    %v747 = vunpack.c.h.b16 %v185
    %v748 = vunpack.c.l.b16 %v186
    %v749 = vunpack.c.h.b16 %v186
    %v750 = vunpack.c.l.b16 %v187
    %v751 = vunpack.c.h.b16 %v187
    %v752 = vunpack.c.l.b16 %v188
    %v753 = vunpack.c.h.b16 %v188
    %v754 = vunpack.c.l.b16 %v189
    %v755 = vunpack.c.h.b16 %v189
    %v756 = vunpack.c.l.b16 %v190
    %v757 = vunpack.c.h.b16 %v190
    %v758 = vunpack.c.l.b16 %v191
    %v759 = vunpack.c.h.b16 %v191
    %v760 = vunpack.c.l.b16 %v192
    %v761 = vunpack.c.h.b16 %v192
    %v762 = vunpack.c.l.b16 %v193
    %v763 = vunpack.c.h.b16 %v193
    %v764 = vunpack.c.l.b16 %v194
    %v765 = vunpack.c.h.b16 %v194
    %v766 = vunpack.c.l.b16 %v195
    %v767 = vunpack.c.h.b16 %v195
    %v768 = vunpack.c.l.b16 %v196
    %v769 = vunpack.c.h.b16 %v196
    %v770 = vunpack.c.l.b16 %v197
    %v771 = vunpack.c.h.b16 %v197
    %v772 = vunpack.c.l.b16 %v198
    %v773 = vunpack.c.h.b16 %v198
    %v774 = vunpack.c.l.b16 %v199
    %v775 = vunpack.c.h.b16 %v199
    %v776 = vunpack.c.l.b16 %v200
    %v777 = vunpack.c.h.b16 %v200
    %v778 = vunpack.c.l.b16 %v201
    %v779 = vunpack.c.h.b16 %v201
    %v780 = vunpack.c.l.b16 %v202
    %v781 = vunpack.c.h.b16 %v202
    %v782 = vunpack.c.l.b16 %v203
    %v783 = vunpack.c.h.b16 %v203
    %v784 = vunpack.c.l.b16 %v204
    %v785 = vunpack.c.h.b16 %v204
    %v786 = vunpack.c.l.b16 %v205
    %v787 = vunpack.c.h.b16 %v205
    %v788 = vunpack.c.l.b16 %v206
    %v789 = vunpack.c.h.b16 %v206
    %v790 = vunpack.c.l.b16 %v207
    %v791 = vunpack.c.h.b16 %v207
    %v792 = vunpack.c.l.b16 %v208
    %v793 = vunpack.c.h.b16 %v208
    %v794 = vunpack.c.l.b16 %v209
    %v795 = vunpack.c.h.b16 %v209
    %v796 = vunpack.c.l.b16 %v210
    %v797 = vunpack.c.h.b16 %v210
    %v798 = vunpack.c.l.b16 %v211
    %v799 = vunpack.c.h.b16 %v211
    %v800 = vunpack.c.l.b16 %v212
    %v801 = vunpack.c.h.b16 %v212
    %v802 = vunpack.c.l.b16 %v213
    %v803 = vunpack.c.h.b16 %v213
    %v804 = vunpack.c.l.b16 %v214
    %v805 = vunpack.c.h.b16 %v214
    %v806 = vunpack.c.l.b16 %v215
    %v807 = vunpack.c.h.b16 %v215
    %v808 = vunpack.c.l.b16 %v216
    %v809 = vunpack.c.h.b16 %v216
    %v810 = vunpack.c.l.b16 %v217
    %v811 = vunpack.c.h.b16 %v217
    %v812 = vunpack.c.l.b16 %v218
    %v813 = vunpack.c.h.b16 %v218
    %v814 = vunpack.c.l.b16 %v219
    %v815 = vunpack.c.h.b16 %v219
    %v816 = vunpack.c.l.b16 %v220
    %v817 = vunpack.c.h.b16 %v220
    %v818 = vunpack.c.l.b16 %v221
    %v819 = vunpack.c.h.b16 %v221
    %v820 = vunpack.c.l.b16 %v222
    %v821 = vunpack.c.h.b16 %v222
    %v822 = vunpack.c.l.b16 %v223
    %v823 = vunpack.c.h.b16 %v223
    %v824 = vunpack.c.l.b16 %v224
    %v825 = vunpack.c.h.b16 %v224
    %v826 = vunpack.c.l.b16 %v225
    %v827 = vunpack.c.h.b16 %v225
    %v828 = vunpack.c.l.b16 %v226
    %v829 = vunpack.c.h.b16 %v226
    %v830 = vunpack.c.l.b16 %v227
    %v831 = vunpack.c.h.b16 %v227
    %v832 = vunpack.c.l.b16 %v228
    %v833 = vunpack.c.h.b16 %v228
    %v834 = vunpack.c.l.b16 %v229
    %v835 = vunpack.c.h.b16 %v229
    %v836 = vunpack.c.l.b16 %v230
    %v837 = vunpack.c.h.b16 %v230
    %v838 = vunpack.c.l.b16 %v231
    %v839 = vunpack.c.h.b16 %v231
    %v840 = vunpack.c.l.b16 %v232
    %v841 = vunpack.c.h.b16 %v232
    %v842 = vunpack.c.l.b16 %v233
    %v843 = vunpack.c.h.b16 %v233
    %v844 = vunpack.c.l.b16 %v234
    %v845 = vunpack.c.h.b16 %v234
    %v846 = vunpack.c.l.b16 %v235
    %v847 = vunpack.c.h.b16 %v235
    %v848 = vunpack.c.l.b16 %v236
    %v849 = vunpack.c.h.b16 %v236
    %v850 = vunpack.c.l.b16 %v237
    %v851 = vunpack.c.h.b16 %v237
    %v852 = vunpack.c.l.b16 %v238
    %v853 = vunpack.c.h.b16 %v238
    %v854 = vunpack.c.l.b16 %v239
    %v855 = vunpack.c.h.b16 %v239
    %v856 = vunpack.c.l.b16 %v240
    %v857 = vunpack.c.h.b16 %v240
    %v858 = vunpack.c.l.b16 %v241
    %v859 = vunpack.c.h.b16 %v241
    %v860 = vunpack.c.l.b16 %v242
    %v861 = vunpack.c.h.b16 %v242
    %v862 = vunpack.c.l.b16 %v243
    %v863 = vunpack.c.h.b16 %v243
    %v864 = vunpack.c.l.b16 %v244
    %v865 = vunpack.c.h.b16 %v244
    %v866 = vunpack.c.l.b16 %v245
    %v867 = vunpack.c.h.b16 %v245
    %v868 = vunpack.c.l.b16 %v246
    %v869 = vunpack.c.h.b16 %v246
    %v870 = vunpack.c.l.b16 %v247
    %v871 = vunpack.c.h.b16 %v247
    %v872 = vunpack.c.l.b16 %v248
    %v873 = vunpack.c.h.b16 %v248
    %v874 = vunpack.c.l.b16 %v249
    %v875 = vunpack.c.h.b16 %v249
    %v876 = vunpack.c.l.b16 %v250
    %v877 = vunpack.c.h.b16 %v250
    %v878 = vunpack.c.l.b16 %v251
    %v879 = vunpack.c.h.b16 %v251
    %v880 = vunpack.c.l.b16 %v252
    %v881 = vunpack.c.h.b16 %v252
    %v882 = vunpack.c.l.b16 %v253
    %v883 = vunpack.c.h.b16 %v253
    %v884 = vunpack.c.l.b16 %v254
    %v885 = vunpack.c.h.b16 %v254
    %v886 = vunpack.c.l.b16 %v255
    %v887 = vunpack.c.h.b16 %v255
    %v888 = vunpack.c.l.b16 %v256
    %v889 = vunpack.c.h.b16 %v256
    %v890 = vunpack.c.l.b16 %v257
    %v891 = vunpack.c.h.b16 %v257
    %v892 = vunpack.c.l.b16 %v258
    %v893 = vunpack.c.h.b16 %v258
    %v894 = vunpack.c.l.b16 %v259
    %v895 = vunpack.c.h.b16 %v259
    %v896 = vunpack.c.l.b16 %v260
    %v897 = vunpack.c.h.b16 %v260
    %v898 = vunpack.c.l.b16 %v261
    %v899 = vunpack.c.h.b16 %v261
    %v900 = vunpack.c.l.b16 %v262
    %v901 = vunpack.c.h.b16 %v262
    %v902 = vunpack.c.l.b16 %v263
    %v903 = vunpack.c.h.b16 %v263
    %v904 = vunpack.c.l.b16 %v264
    %v905 = vunpack.c.h.b16 %v264
    %v906 = vunpack.c.l.b16 %v265
    %v907 = vunpack.c.h.b16 %v265
    %v908 = vunpack.c.l.b16 %v266
    %v909 = vunpack.c.h.b16 %v266
    %v910 = vunpack.c.l.b16 %v267
    %v911 = vunpack.c.h.b16 %v267
    %v912 = vunpack.c.l.b16 %v268
    %v913 = vunpack.c.h.b16 %v268
    %v914 = vunpack.c.l.b16 %v269
    %v915 = vunpack.c.h.b16 %v269
    %v916 = vunpack.c.l.b16 %v270
    %v917 = vunpack.c.h.b16 %v270
    %v918 = vunpack.c.l.b16 %v271
    %v919 = vunpack.c.h.b16 %v271
    %v920 = vunpack.c.l.b16 %v272
    %v921 = vunpack.c.h.b16 %v272
    %v922 = vunpack.c.l.b16 %v273
    %v923 = vunpack.c.h.b16 %v273
    %v924 = vunpack.c.l.b16 %v274
    %v925 = vunpack.c.h.b16 %v274
    %v926 = vunpack.c.l.b16 %v275
    %v927 = vunpack.c.h.b16 %v275
    %v928 = vunpack.c.l.b16 %v276
    %v929 = vunpack.c.h.b16 %v276
    %v930 = vunpack.c.l.b16 %v277
    %v931 = vunpack.c.h.b16 %v277
    %v932 = vunpack.c.l.b16 %v278
    %v933 = vunpack.c.h.b16 %v278
    %v934 = vunpack.c.l.b16 %v279
    %v935 = vunpack.c.h.b16 %v279
    %v936 = vunpack.c.l.b16 %v280
    %v937 = vunpack.c.h.b16 %v280
    %v938 = vunpack.c.l.b16 %v281
    %v939 = vunpack.c.h.b16 %v281
    %v940 = vunpack.c.l.b16 %v282
    %v941 = vunpack.c.h.b16 %v282
    %v942 = vunpack.c.l.b16 %v283
    %v943 = vunpack.c.h.b16 %v283
    %v944 = vunpack.c.l.b16 %v284
    %v945 = vunpack.c.h.b16 %v284
    %v946 = vunpack.c.l.b16 %v285
    %v947 = vunpack.c.h.b16 %v285
    %v948 = vunpack.c.l.b16 %v286
    %v949 = vunpack.c.h.b16 %v286
    %v950 = vunpack.c.l.b16 %v287
    %v951 = vunpack.c.h.b16 %v287
    %v952 = vunpack.c.l.b16 %v288
    %v953 = vunpack.c.h.b16 %v288
    %v954 = vunpack.c.l.b16 %v289
    %v955 = vunpack.c.h.b16 %v289
    %v956 = vunpack.c.l.b16 %v290
    %v957 = vunpack.c.h.b16 %v290
    %v958 = vunpack.c.l.b16 %v291
    %v959 = vunpack.c.h.b16 %v291
    %v960 = vunpack.c.l.b16 %v292
    %v961 = vunpack.c.h.b16 %v292
    %v962 = vunpack.c.l.b16 %v293
    %v963 = vunpack.c.h.b16 %v293
    %v964 = vunpack.c.l.b16 %v294
    %v965 = vunpack.c.h.b16 %v294
    %v966 = vunpack.c.l.b16 %v295
    %v967 = vunpack.c.h.b16 %v295
    %v968 = vunpack.c.l.b16 %v296
    %v969 = vunpack.c.h.b16 %v296
    %v970 = vunpack.c.l.b16 %v297
    %v971 = vunpack.c.h.b16 %v297
    %v972 = vunpack.c.l.b16 %v298
    %v973 = vunpack.c.h.b16 %v298
    %v974 = vunpack.c.l.b16 %v299
    %v975 = vunpack.c.h.b16 %v299
    %v976 = vunpack.c.l.b16 %v300
    %v977 = vunpack.c.h.b16 %v300
    %v978 = vunpack.c.l.b16 %v301
    %v979 = vunpack.c.h.b16 %v301
    %v980 = vunpack.c.l.b16 %v302
    %v981 = vunpack.c.h.b16 %v302
    %v982 = vunpack.c.l.b16 %v303
    %v983 = vunpack.c.h.b16 %v303
    %v984 = vunpack.c.l.b16 %v304
    %v985 = vunpack.c.h.b16 %v304
    %v986 = vunpack.c.l.b16 %v305
    %v987 = vunpack.c.h.b16 %v305
    %v988 = vunpack.c.l.b16 %v306
    %v989 = vunpack.c.h.b16 %v306
    %v990 = vunpack.c.l.b16 %v307
    %v991 = vunpack.c.h.b16 %v307
    %v992 = vunpack.c.l.b16 %v308
    %v993 = vunpack.c.h.b16 %v308
    %v994 = vunpack.c.l.b16 %v309
    %v995 = vunpack.c.h.b16 %v309
    %v996 = vunpack.c.l.b16 %v310
    %v997 = vunpack.c.h.b16 %v310
    %v998 = vunpack.c.l.b16 %v311
    %v999 = vunpack.c.h.b16 %v311
    %v1000 = vunpack.c.l.b16 %v312
    %v1001 = vunpack.c.h.b16 %v312
    %v1002 = vunpack.c.l.b16 %v313
    %v1003 = vunpack.c.h.b16 %v313
    %v1004 = vunpack.c.l.b16 %v314
    %v1005 = vunpack.c.h.b16 %v314
    %v1006 = vunpack.c.l.b16 %v315
    %v1007 = vunpack.c.h.b16 %v315
    %v1008 = vunpack.c.l.b16 %v316
    %v1009 = vunpack.c.h.b16 %v316
    %v1010 = vunpack.c.l.b16 %v317
    %v1011 = vunpack.c.h.b16 %v317
    %v1012 = vunpack.c.l.b16 %v318
    %v1013 = vunpack.c.h.b16 %v318
    %v1014 = vunpack.c.l.b16 %v319
    %v1015 = vunpack.c.h.b16 %v319
    %v1016 = vunpack.c.l.b16 %v320
    %v1017 = vunpack.c.h.b16 %v320
    %v1018 = vunpack.c.l.b16 %v321
    %v1019 = vunpack.c.h.b16 %v321
    %v1020 = vunpack.c.l.b16 %v322
    %v1021 = vunpack.c.h.b16 %v322
    %v1022 = vunpack.c.l.b16 %v323
    %v1023 = vunpack.c.h.b16 %v323
    %v1024 = vunpack.c.l.b16 %v324
    %v1025 = vunpack.c.h.b16 %v324
    %v1026 = vunpack.c.l.b16 %v325
    %v1027 = vunpack.c.h.b16 %v325
    %v1028 = vunpack.c.l.b16 %v326
    %v1029 = vunpack.c.h.b16 %v326
    %v1030 = vunpack.c.l.b16 %v327
    %v1031 = vunpack.c.h.b16 %v327
    %v1032 = vunpack.c.l.b16 %v328
    %v1033 = vunpack.c.h.b16 %v328
    %v1034 = vunpack.c.l.b16 %v329
    %v1035 = vunpack.c.h.b16 %v329
    %v1036 = vunpack.c.l.b16 %v330
    %v1037 = vunpack.c.h.b16 %v330
    %v1038 = vunpack.c.l.b16 %v331
    %v1039 = vunpack.c.h.b16 %v331
    %v1040 = vunpack.c.l.b16 %v332
    %v1041 = vunpack.c.h.b16 %v332
    %v1042 = vunpack.c.l.b16 %v333
    %v1043 = vunpack.c.h.b16 %v333
    %v1044 = vunpack.c.l.b16 %v334
    %v1045 = vunpack.c.h.b16 %v334
    %v1046 = vunpack.c.l.b16 %v335
    %v1047 = vunpack.c.h.b16 %v335
    %v1048 = vunpack.c.l.b16 %v336
    %v1049 = vunpack.c.h.b16 %v336
    %v1050 = vunpack.c.l.b16 %v337
    %v1051 = vunpack.c.h.b16 %v337
    %v1052 = vunpack.c.l.b16 %v338
    %v1053 = vunpack.c.h.b16 %v338
    %v1054 = vunpack.c.l.b16 %v339
    %v1055 = vunpack.c.h.b16 %v339
    %v1056 = vunpack.c.l.b16 %v340
    %v1057 = vunpack.c.h.b16 %v340
    %v1058 = vunpack.c.l.b16 %v341
    %v1059 = vunpack.c.h.b16 %v341
    %v1060 = vunpack.c.l.b16 %v342
    %v1061 = vunpack.c.h.b16 %v342
    %v1062 = vunpack.c.l.b16 %v343
    %v1063 = vunpack.c.h.b16 %v343
    %v1064 = vunpack.c.l.b16 %v344
    %v1065 = vunpack.c.h.b16 %v344
    %v1066 = vunpack.c.l.b16 %v345
    %v1067 = vunpack.c.h.b16 %v345
    %v1068 = vunpack.c.l.b16 %v346
    %v1069 = vunpack.c.h.b16 %v346
    %v1070 = vunpack.c.l.b16 %v347
    %v1071 = vunpack.c.h.b16 %v347
    %v1072 = vunpack.c.l.b16 %v348
    %v1073 = vunpack.c.h.b16 %v348
    %v1074 = vunpack.c.l.b16 %v349
    %v1075 = vunpack.c.h.b16 %v349
    %v1076 = vunpack.c.l.b16 %v350
    %v1077 = vunpack.c.h.b16 %v350
    %v1078 = vunpack.c.l.b16 %v351
    %v1079 = vunpack.c.h.b16 %v351
    %v1080 = vunpack.c.l.b16 %v352
    %v1081 = vunpack.c.h.b16 %v352
    %v1082 = vunpack.c.l.b16 %v353
    %v1083 = vunpack.c.h.b16 %v353
    %v1084 = vpack.c.b16 %v640, %v636
    %v1085 = vpack.c.b16 %v641, %v637
    %v1086 = vpack.c.b16 %v642, %v638
    %v1087 = vpack.c.b16 %v643, %v639
    %v1088 = vpack.c.b16 %v648, %v644
    %v1089 = vpack.c.b16 %v649, %v645
    %v1090 = vpack.c.b16 %v650, %v646
    %v1091 = vpack.c.b16 %v651, %v647
    %v1092 = vpack.c.b16 %v656, %v652
    %v1093 = vpack.c.b16 %v657, %v653
    %v1094 = vpack.c.b16 %v658, %v654
    %v1095 = vpack.c.b16 %v659, %v655
    %v1096 = vpack.c.b16 %v664, %v660
    %v1097 = vpack.c.b16 %v665, %v661
    %v1098 = vpack.c.b16 %v666, %v662
    %v1099 = vpack.c.b16 %v667, %v663
    %v1100 = vpack.c.b16 %v672, %v668
    %v1101 = vpack.c.b16 %v673, %v669
    %v1102 = vpack.c.b16 %v674, %v670
    %v1103 = vpack.c.b16 %v675, %v671
    %v1104 = vpack.c.b16 %v680, %v676
    %v1105 = vpack.c.b16 %v681, %v677
    %v1106 = vpack.c.b16 %v682, %v678
    %v1107 = vpack.c.b16 %v683, %v679
    %v1108 = vpack.c.b16 %v688, %v684
    %v1109 = vpack.c.b16 %v689, %v685
    %v1110 = vpack.c.b16 %v690, %v686
    %v1111 = vpack.c.b16 %v691, %v687
    %v1112 = vpack.c.b16 %v696, %v692
    %v1113 = vpack.c.b16 %v697, %v693
    %v1114 = vpack.c.b16 %v698, %v694
    %v1115 = vpack.c.b16 %v699, %v695
    %v1116 = vpack.c.b16 %v704, %v700
    %v1117 = vpack.c.b16 %v705, %v701
    %v1118 = vpack.c.b16 %v706, %v702
    %v1119 = vpack.c.b16 %v707, %v703
    %v1120 = vpack.c.b16 %v712, %v708
    %v1121 = vpack.c.b16 %v713, %v709
    %v1122 = vpack.c.b16 %v714, %v710
    %v1123 = vpack.c.b16 %v715, %v711
    %v1124 = vpack.c.b16 %v720, %v716
    %v1125 = vpack.c.b16 %v721, %v717
    %v1126 = vpack.c.b16 %v722, %v718
    %v1127 = vpack.c.b16 %v723, %v719
    %v1128 = vpack.c.b16 %v728, %v724
    %v1129 = vpack.c.b16 %v729, %v725
    %v1130 = vpack.c.b16 %v730, %v726
    %v1131 = vpack.c.b16 %v731, %v727
    %v1132 = vpack.c.b16 %v736, %v732
    %v1133 = vpack.c.b16 %v737, %v733
    %v1134 = vpack.c.b16 %v738, %v734
    %v1135 = vpack.c.b16 %v739, %v735
    %v1136 = vpack.c.b16 %v744, %v740
    %v1137 = vpack.c.b16 %v745, %v741
    %v1138 = vpack.c.b16 %v746, %v742
    %v1139 = vpack.c.b16 %v747, %v743
    %v1140 = vpack.c.b16 %v752, %v748
    %v1141 = vpack.c.b16 %v753, %v749
    %v1142 = vpack.c.b16 %v754, %v750
    %v1143 = vpack.c.b16 %v755, %v751
    %v1144 = vpack.c.b16 %v760, %v756
    %v1145 = vpack.c.b16 %v761, %v757
    %v1146 = vpack.c.b16 %v762, %v758
    %v1147 = vpack.c.b16 %v763, %v759
    %v1148 = vpack.c.b16 %v768, %v764
    %v1149 = vpack.c.b16 %v769, %v765
    %v1150 = vpack.c.b16 %v770, %v766
    %v1151 = vpack.c.b16 %v771, %v767
    %v1152 = vpack.c.b16 %v776, %v772
    %v1153 = vpack.c.b16 %v777, %v773
    %v1154 = vpack.c.b16 %v778, %v774
    %v1155 = vpack.c.b16 %v779, %v775
    %v1156 = vpack.c.b16 %v784, %v780
    %v1157 = vpack.c.b16 %v785, %v781
    %v1158 = vpack.c.b16 %v786, %v782
    %v1159 = vpack.c.b16 %v787, %v783
    %v1160 = vpack.c.b16 %v792, %v788
    %v1161 = vpack.c.b16 %v793, %v789
    %v1162 = vpack.c.b16 %v794, %v790
    %v1163 = vpack.c.b16 %v795, %v791
    %v1164 = vpack.c.b16 %v800, %v796
    %v1165 = vpack.c.b16 %v801, %v797
    %v1166 = vpack.c.b16 %v802, %v798
    %v1167 = vpack.c.b16 %v803, %v799
    %v1168 = vpack.c.b16 %v808, %v804
    %v1169 = vpack.c.b16 %v809, %v805
    %v1170 = vpack.c.b16 %v810, %v806
    %v1171 = vpack.c.b16 %v811, %v807
    %v1172 = vpack.c.b16 %v816, %v812
    %v1173 = vpack.c.b16 %v817, %v813
    %v1174 = vpack.c.b16 %v818, %v814
    %v1175 = vpack.c.b16 %v819, %v815
    %v1176 = vpack.c.b16 %v824, %v820
    %v1177 = vpack.c.b16 %v825, %v821
    %v1178 = vpack.c.b16 %v826, %v822
    %v1179 = vpack.c.b16 %v827, %v823
    %v1180 = vpack.c.b16 %v832, %v828
    %v1181 = vpack.c.b16 %v833, %v829
    %v1182 = vpack.c.b16 %v834, %v830
    %v1183 = vpack.c.b16 %v835, %v831
    %v1184 = vpack.c.b16 %v840, %v836
    %v1185 = vpack.c.b16 %v841, %v837
    %v1186 = vpack.c.b16 %v842, %v838
    %v1187 = vpack.c.b16 %v843, %v839
    %v1188 = vpack.c.b16 %v848, %v844
    %v1189 = vpack.c.b16 %v849, %v845
    %v1190 = vpack.c.b16 %v850, %v846
    %v1191 = vpack.c.b16 %v851, %v847
    %v1192 = vpack.c.b16 %v856, %v852
    %v1193 = vpack.c.b16 %v857, %v853
    %v1194 = vpack.c.b16 %v858, %v854
    %v1195 = vpack.c.b16 %v859, %v855
    %v1196 = vpack.c.b16 %v864, %v860
    %v1197 = vpack.c.b16 %v865, %v861
    %v1198 = vpack.c.b16 %v866, %v862
    %v1199 = vpack.c.b16 %v867, %v863
    %v1200 = vpack.c.b16 %v872, %v868
    %v1201 = vpack.c.b16 %v873, %v869
    %v1202 = vpack.c.b16 %v874, %v870
    %v1203 = vpack.c.b16 %v875, %v871
    %v1204 = vpack.c.b16 %v880, %v876
    %v1205 = vpack.c.b16 %v881, %v877
    %v1206 = vpack.c.b16 %v882, %v878
    %v1207 = vpack.c.b16 %v883, %v879
    %v1208 = vpack.c.b16 %v888, %v884
    %v1209 = vpack.c.b16 %v889, %v885
    %v1210 = vpack.c.b16 %v890, %v886
    %v1211 = vpack.c.b16 %v891, %v887
    %v1212 = vpack.c.b16 %v896, %v892
    %v1213 = vpack.c.b16 %v897, %v893
    %v1214 = vpack.c.b16 %v898, %v894
    %v1215 = vpack.c.b16 %v899, %v895
    %v1216 = vpack.c.b16 %v904, %v900
    %v1217 = vpack.c.b16 %v905, %v901
    %v1218 = vpack.c.b16 %v906, %v902
    %v1219 = vpack.c.b16 %v907, %v903
    %v1220 = vpack.c.b16 %v912, %v908
    %v1221 = vpack.c.b16 %v913, %v909
    %v1222 = vpack.c.b16 %v914, %v910
    %v1223 = vpack.c.b16 %v915, %v911
    %v1224 = vpack.c.b16 %v920, %v916
    %v1225 = vpack.c.b16 %v921, %v917
    %v1226 = vpack.c.b16 %v922, %v918
    %v1227 = vpack.c.b16 %v923, %v919
    %v1228 = vpack.c.b16 %v928, %v924
    %v1229 = vpack.c.b16 %v929, %v925
    %v1230 = vpack.c.b16 %v930, %v926
    %v1231 = vpack.c.b16 %v931, %v927
    %v1232 = vpack.c.b16 %v936, %v932
    %v1233 = vpack.c.b16 %v937, %v933
    %v1234 = vpack.c.b16 %v938, %v934
    %v1235 = vpack.c.b16 %v939, %v935
    %v1236 = vpack.c.b16 %v944, %v940
    %v1237 = vpack.c.b16 %v945, %v941
    %v1238 = vpack.c.b16 %v946, %v942
    %v1239 = vpack.c.b16 %v947, %v943
    %v1240 = vpack.c.b16 %v952, %v948
    %v1241 = vpack.c.b16 %v953, %v949
    %v1242 = vpack.c.b16 %v954, %v950
    %v1243 = vpack.c.b16 %v955, %v951
    %v1244 = vpack.c.b16 %v960, %v956
    %v1245 = vpack.c.b16 %v961, %v957
    %v1246 = vpack.c.b16 %v962, %v958
    %v1247 = vpack.c.b16 %v963, %v959
    %v1248 = vpack.c.b16 %v968, %v964
    %v1249 = vpack.c.b16 %v969, %v965
    %v1250 = vpack.c.b16 %v970, %v966
    %v1251 = vpack.c.b16 %v971, %v967
    %v1252 = vpack.c.b16 %v976, %v972
    %v1253 = vpack.c.b16 %v977, %v973
    %v1254 = vpack.c.b16 %v978, %v974
    %v1255 = vpack.c.b16 %v979, %v975
    %v1256 = vpack.c.b16 %v984, %v980
    %v1257 = vpack.c.b16 %v985, %v981
    %v1258 = vpack.c.b16 %v986, %v982
    %v1259 = vpack.c.b16 %v987, %v983
    %v1260 = vpack.c.b16 %v992, %v988
    %v1261 = vpack.c.b16 %v993, %v989
    %v1262 = vpack.c.b16 %v994, %v990
    %v1263 = vpack.c.b16 %v995, %v991
    %v1264 = vpack.c.b16 %v1000, %v996
    %v1265 = vpack.c.b16 %v1001, %v997
    %v1266 = vpack.c.b16 %v1002, %v998
    %v1267 = vpack.c.b16 %v1003, %v999
    %v1268 = vpack.c.b16 %v1008, %v1004
    %v1269 = vpack.c.b16 %v1009, %v1005
    %v1270 = vpack.c.b16 %v1010, %v1006
    %v1271 = vpack.c.b16 %v1011, %v1007
    %v1272 = vpack.c.b16 %v1016, %v1012
    %v1273 = vpack.c.b16 %v1017, %v1013
    %v1274 = vpack.c.b16 %v1018, %v1014
    %v1275 = vpack.c.b16 %v1019, %v1015
    %v1276 = vpack.c.b16 %v1024, %v1020
    %v1277 = vpack.c.b16 %v1025, %v1021
    %v1278 = vpack.c.b16 %v1026, %v1022
    %v1279 = vpack.c.b16 %v1027, %v1023
    %v1280 = vpack.c.b16 %v1032, %v1028
    %v1281 = vpack.c.b16 %v1033, %v1029
    %v1282 = vpack.c.b16 %v1034, %v1030
    %v1283 = vpack.c.b16 %v1035, %v1031
    %v1284 = vpack.c.b16 %v1040, %v1036
    %v1285 = vpack.c.b16 %v1041, %v1037
    %v1286 = vpack.c.b16 %v1042, %v1038
    %v1287 = vpack.c.b16 %v1043, %v1039
    %v1288 = vpack.c.b16 %v1048, %v1044
    %v1289 = vpack.c.b16 %v1049, %v1045
    %v1290 = vpack.c.b16 %v1050, %v1046
    %v1291 = vpack.c.b16 %v1051, %v1047
    %v1292 = vpack.c.b16 %v1056, %v1052
    %v1293 = vpack.c.b16 %v1057, %v1053
    %v1294 = vpack.c.b16 %v1058, %v1054
    %v1295 = vpack.c.b16 %v1059, %v1055
    %v1296 = vpack.c.b16 %v1064, %v1060
    %v1297 = vpack.c.b16 %v1065, %v1061
    %v1298 = vpack.c.b16 %v1066, %v1062
    %v1299 = vpack.c.b16 %v1067, %v1063
    %v1300 = vpack.c.b16 %v1072, %v1068
    %v1301 = vpack.c.b16 %v1073, %v1069
    %v1302 = vpack.c.b16 %v1074, %v1070
    %v1303 = vpack.c.b16 %v1075, %v1071
    %v1304 = vpack.c.b16 %v1080, %v1076
    %v1305 = vpack.c.b16 %v1081, %v1077
    %v1306 = vpack.c.b16 %v1082, %v1078
    %v1307 = vpack.c.b16 %v1083, %v1079
    %1532 = vmatprep.subr.bf16.mxu0 %v1085
    %1533 = vmatpush1.bf16.msra.mxu0 %v1084
    %1534 = vmatprep.subr.bf16.mxu0 %v1089
    %1535 = vmatpush1.bf16.msra.mxu0 %v1088
    %1536 = vmatprep.subr.bf16.mxu0 %v1093
    %1537 = vmatpush1.bf16.msra.mxu0 %v1092
    %1538 = vmatprep.subr.bf16.mxu0 %v1097
    %1539 = vmatpush1.bf16.msra.mxu0 %v1096
    %1540 = vmatprep.subr.bf16.mxu0 %v1101
    %1541 = vmatpush1.bf16.msra.mxu0 %v1100
    %1542 = vmatprep.subr.bf16.mxu0 %v1105
    %1543 = vmatpush1.bf16.msra.mxu0 %v1104
    %1544 = vmatprep.subr.bf16.mxu0 %v1109
    %1545 = vmatpush1.bf16.msra.mxu0 %v1108
    %1546 = vmatprep.subr.bf16.mxu0 %v1113
    %1547 = vmatpush1.bf16.msra.mxu0 %v1112
    %1548 = vmatprep.subr.bf16.mxu0 %v1117
    %1549 = vmatpush1.bf16.msra.mxu0 %v1116
    %1550 = vmatprep.subr.bf16.mxu0 %v1121
    %1551 = vmatpush1.bf16.msra.mxu0 %v1120
    %1552 = vmatprep.subr.bf16.mxu0 %v1125
    %1553 = vmatpush1.bf16.msra.mxu0 %v1124
    %1554 = vmatprep.subr.bf16.mxu0 %v1129
    %1555 = vmatpush1.bf16.msra.mxu0 %v1128
    %1556 = vmatprep.subr.bf16.mxu0 %v1133
    %1557 = vmatpush1.bf16.msra.mxu0 %v1132
    %1558 = vmatprep.subr.bf16.mxu0 %v1137
    %1559 = vmatpush1.bf16.msra.mxu0 %v1136
    %1560 = vmatprep.subr.bf16.mxu0 %v1141
    %1561 = vmatpush1.bf16.msra.mxu0 %v1140
    %1562 = vmatprep.subr.bf16.mxu0 %v1145
    %1563 = vmatpush1.bf16.msra.mxu0 %v1144
    %1564 = vmatprep.mubr.bf16.mxu0 %v399
    %1565 = vmatmul.mubr.bf16.gmra.mrb[0].mxu0 %v398
    %v1566 = vpop.f32.mrb[0].mxu0
    %v1567 = vadd.f32 %v359, %v1566
    %v1568 = vpop.f32.mrb[0].mxu0
    %v1569 = vadd.f32 %v363, %v1568
    %v1570 = vpop.f32.mrb[0].mxu0
    %v1571 = vadd.f32 %v359, %v1570
    %v1572 = vpop.f32.mrb[0].mxu0
    %v1573 = vadd.f32 %v363, %v1572
    %1574 = vdwg.mxu0
    %1575 = vmatprep.subr.bf16.mxu0 %v1149
    %1576 = vmatpush1.bf16.msra.mxu0 %v1148
    %1577 = vmatprep.subr.bf16.mxu0 %v1153
    %1578 = vmatpush1.bf16.msra.mxu0 %v1152
    %1579 = vmatprep.subr.bf16.mxu0 %v1157
    %1580 = vmatpush1.bf16.msra.mxu0 %v1156
    %1581 = vmatprep.subr.bf16.mxu0 %v1161
    %1582 = vmatpush1.bf16.msra.mxu0 %v1160
    %1583 = vmatprep.subr.bf16.mxu0 %v1165
    %1584 = vmatpush1.bf16.msra.mxu0 %v1164
    %1585 = vmatprep.subr.bf16.mxu0 %v1169
    %1586 = vmatpush1.bf16.msra.mxu0 %v1168
    %1587 = vmatprep.subr.bf16.mxu0 %v1173
    %1588 = vmatpush1.bf16.msra.mxu0 %v1172
    %1589 = vmatprep.subr.bf16.mxu0 %v1177
    %1590 = vmatpush1.bf16.msra.mxu0 %v1176
    %1591 = vmatprep.subr.bf16.mxu0 %v1181
    %1592 = vmatpush1.bf16.msra.mxu0 %v1180
    %1593 = vmatprep.subr.bf16.mxu0 %v1185
    %1594 = vmatpush1.bf16.msra.mxu0 %v1184
    %1595 = vmatprep.subr.bf16.mxu0 %v1189
    %1596 = vmatpush1.bf16.msra.mxu0 %v1188
    %1597 = vmatprep.subr.bf16.mxu0 %v1193
    %1598 = vmatpush1.bf16.msra.mxu0 %v1192
    %1599 = vmatprep.subr.bf16.mxu0 %v1197
    %1600 = vmatpush1.bf16.msra.mxu0 %v1196
    %1601 = vmatprep.subr.bf16.mxu0 %v1201
    %1602 = vmatpush1.bf16.msra.mxu0 %v1200
    %1603 = vmatprep.subr.bf16.mxu0 %v1205
    %1604 = vmatpush1.bf16.msra.mxu0 %v1204
    %1605 = vmatprep.subr.bf16.mxu0 %v1209
    %1606 = vmatpush1.bf16.msra.mxu0 %v1208
    %1607 = vmatprep.mubr.bf16.mxu0 %v401
    %1608 = vmatmul.mubr.bf16.gmra.mrb[0].mxu0 %v400
    %v1609 = vpop.f32.mrb[0].mxu0
    %v1610 = vadd.f32 %v1567, %v1609
    %v1611 = vpop.f32.mrb[0].mxu0
    %v1612 = vadd.f32 %v1569, %v1611
    %v1613 = vpop.f32.mrb[0].mxu0
    %v1614 = vadd.f32 %v1571, %v1613
    %v1615 = vpop.f32.mrb[0].mxu0
    %v1616 = vadd.f32 %v1573, %v1615
    %1617 = vdwg.mxu0
    %1618 = vmatprep.subr.bf16.mxu0 %v1213
    %1619 = vmatpush1.bf16.msra.mxu0 %v1212
    %1620 = vmatprep.subr.bf16.mxu0 %v1217
    %1621 = vmatpush1.bf16.msra.mxu0 %v1216
    %1622 = vmatprep.subr.bf16.mxu0 %v1221
    %1623 = vmatpush1.bf16.msra.mxu0 %v1220
    %1624 = vmatprep.subr.bf16.mxu0 %v1225
    %1625 = vmatpush1.bf16.msra.mxu0 %v1224
    %1626 = vmatprep.subr.bf16.mxu0 %v1229
    %1627 = vmatpush1.bf16.msra.mxu0 %v1228
    %1628 = vmatprep.subr.bf16.mxu0 %v1233
    %1629 = vmatpush1.bf16.msra.mxu0 %v1232
    %1630 = vmatprep.subr.bf16.mxu0 %v1237
    %1631 = vmatpush1.bf16.msra.mxu0 %v1236
    %1632 = vmatprep.subr.bf16.mxu0 %v1241
    %1633 = vmatpush1.bf16.msra.mxu0 %v1240
    %1634 = vmatprep.subr.bf16.mxu0 %v1245
    %1635 = vmatpush1.bf16.msra.mxu0 %v1244
    %1636 = vmatprep.subr.bf16.mxu0 %v1249
    %1637 = vmatpush1.bf16.msra.mxu0 %v1248
    %1638 = vmatprep.subr.bf16.mxu0 %v1253
    %1639 = vmatpush1.bf16.msra.mxu0 %v1252
    %1640 = vmatprep.subr.bf16.mxu0 %v1257
    %1641 = vmatpush1.bf16.msra.mxu0 %v1256
    %1642 = vmatprep.subr.bf16.mxu0 %v1261
    %1643 = vmatpush1.bf16.msra.mxu0 %v1260
    %1644 = vmatprep.subr.bf16.mxu0 %v1265
    %1645 = vmatpush1.bf16.msra.mxu0 %v1264
    %1646 = vmatprep.subr.bf16.mxu0 %v1269
    %1647 = vmatpush1.bf16.msra.mxu0 %v1268
    %1648 = vmatprep.subr.bf16.mxu0 %v1273
    %1649 = vmatpush1.bf16.msra.mxu0 %v1272
    %1650 = vmatprep.mubr.bf16.mxu0 %v403
    %1651 = vmatmul.mubr.bf16.gmra.mrb[0].mxu0 %v402
    %v1652 = vpop.f32.mrb[0].mxu0
    %v1653 = vadd.f32 %v1610, %v1652
    %v1654 = vpop.f32.mrb[0].mxu0
    %v1655 = vadd.f32 %v1612, %v1654
    %v1656 = vpop.f32.mrb[0].mxu0
    %v1657 = vadd.f32 %v1614, %v1656
    %v1658 = vpop.f32.mrb[0].mxu0
    %v1659 = vadd.f32 %v1616, %v1658
    %1660 = vdwg.mxu0
    %1661 = vmatprep.subr.bf16.mxu0 %v1277
    %1662 = vmatpush1.bf16.msra.mxu0 %v1276
    %1663 = vmatprep.subr.bf16.mxu0 %v1281
    %1664 = vmatpush1.bf16.msra.mxu0 %v1280
    %1665 = vmatprep.subr.bf16.mxu0 %v1285
    %1666 = vmatpush1.bf16.msra.mxu0 %v1284
    %1667 = vmatprep.subr.bf16.mxu0 %v1289
    %1668 = vmatpush1.bf16.msra.mxu0 %v1288
    %1669 = vmatprep.subr.bf16.mxu0 %v1293
    %1670 = vmatpush1.bf16.msra.mxu0 %v1292
    %1671 = vmatprep.subr.bf16.mxu0 %v1297
    %1672 = vmatpush1.bf16.msra.mxu0 %v1296
    %1673 = vmatprep.subr.bf16.mxu0 %v1301
    %1674 = vmatpush1.bf16.msra.mxu0 %v1300
    %1675 = vmatprep.subr.bf16.mxu0 %v1305
    %1676 = vmatpush1.bf16.msra.mxu0 %v1304
    %1677 = vmatprep.subr.bf16.mxu0 0
    %1678 = vmatpush1.bf16.msra.mxu0 0
    %1679 = vmatprep.subr.bf16.mxu0 0
    %1680 = vmatpush1.bf16.msra.mxu0 0
    %1681 = vmatprep.subr.bf16.mxu0 0
    %1682 = vmatpush1.bf16.msra.mxu0 0
    %1683 = vmatprep.subr.bf16.mxu0 0
    %1684 = vmatpush1.bf16.msra.mxu0 0
    %1685 = vmatprep.subr.bf16.mxu0 0
    %1686 = vmatpush1.bf16.msra.mxu0 0
    %1687 = vmatprep.subr.bf16.mxu0 0
    %1688 = vmatpush1.bf16.msra.mxu0 0
    %1689 = vmatprep.subr.bf16.mxu0 0
    %1690 = vmatpush1.bf16.msra.mxu0 0
    %1691 = vmatprep.subr.bf16.mxu0 0
    %1692 = vmatpush1.bf16.msra.mxu0 0
    %1693 = vmatprep.mubr.bf16.mxu0 0
    %1694 = vmatmul.mubr.bf16.gmra.mrb[0].mxu0 %v404
    %v1695 = vpop.f32.mrb[0].mxu0
    %v1696 = vadd.f32 %v1653, %v1695
    %v1697 = vpop.f32.mrb[0].mxu0
    %v1698 = vadd.f32 %v1655, %v1697
    %v1699 = vpop.f32.mrb[0].mxu0
    %v1700 = vadd.f32 %v1657, %v1699
    %v1701 = vpop.f32.mrb[0].mxu0
    %v1702 = vadd.f32 %v1659, %v1701
    %1703 = vdwg.mxu0
    %1704 = vmatprep.subr.bf16.mxu0 %v1087
    %1705 = vmatpush1.bf16.msra.mxu0 %v1086
    %1706 = vmatprep.subr.bf16.mxu0 %v1091
    %1707 = vmatpush1.bf16.msra.mxu0 %v1090
    %1708 = vmatprep.subr.bf16.mxu0 %v1095
    %1709 = vmatpush1.bf16.msra.mxu0 %v1094
    %1710 = vmatprep.subr.bf16.mxu0 %v1099
    %1711 = vmatpush1.bf16.msra.mxu0 %v1098
    %1712 = vmatprep.subr.bf16.mxu0 %v1103
    %1713 = vmatpush1.bf16.msra.mxu0 %v1102
    %1714 = vmatprep.subr.bf16.mxu0 %v1107
    %1715 = vmatpush1.bf16.msra.mxu0 %v1106
    %1716 = vmatprep.subr.bf16.mxu0 %v1111
    %1717 = vmatpush1.bf16.msra.mxu0 %v1110
    %1718 = vmatprep.subr.bf16.mxu0 %v1115
    %1719 = vmatpush1.bf16.msra.mxu0 %v1114
    %1720 = vmatprep.subr.bf16.mxu0 %v1119
    %1721 = vmatpush1.bf16.msra.mxu0 %v1118
    %1722 = vmatprep.subr.bf16.mxu0 %v1123
    %1723 = vmatpush1.bf16.msra.mxu0 %v1122
    %1724 = vmatprep.subr.bf16.mxu0 %v1127
    %1725 = vmatpush1.bf16.msra.mxu0 %v1126
    %1726 = vmatprep.subr.bf16.mxu0 %v1131
    %1727 = vmatpush1.bf16.msra.mxu0 %v1130
    %1728 = vmatprep.subr.bf16.mxu0 %v1135
    %1729 = vmatpush1.bf16.msra.mxu0 %v1134
    %1730 = vmatprep.subr.bf16.mxu0 %v1139
    %1731 = vmatpush1.bf16.msra.mxu0 %v1138
    %1732 = vmatprep.subr.bf16.mxu0 %v1143
    %1733 = vmatpush1.bf16.msra.mxu0 %v1142
    %1734 = vmatprep.subr.bf16.mxu0 %v1147
    %1735 = vmatpush1.bf16.msra.mxu0 %v1146
    %1736 = vmatprep.mubr.bf16.mxu0 %v399
    %1737 = vmatmul.mubr.bf16.gmra.mrb[0].mxu0 %v398
    %v1738 = vpop.f32.mrb[0].mxu0
    %v1739 = vadd.f32 %v367, %v1738
    %v1740 = vpop.f32.mrb[0].mxu0
    %v1741 = vadd.f32 %v371, %v1740
    %v1742 = vpop.f32.mrb[0].mxu0
    %v1743 = vadd.f32 %v367, %v1742
    %v1744 = vpop.f32.mrb[0].mxu0
    %v1745 = vadd.f32 %v371, %v1744
    %1746 = vdwg.mxu0
    %1747 = vmatprep.subr.bf16.mxu0 %v1151
    %1748 = vmatpush1.bf16.msra.mxu0 %v1150
    %1749 = vmatprep.subr.bf16.mxu0 %v1155
    %1750 = vmatpush1.bf16.msra.mxu0 %v1154
    %1751 = vmatprep.subr.bf16.mxu0 %v1159
    %1752 = vmatpush1.bf16.msra.mxu0 %v1158
    %1753 = vmatprep.subr.bf16.mxu0 %v1163
    %1754 = vmatpush1.bf16.msra.mxu0 %v1162
    %1755 = vmatprep.subr.bf16.mxu0 %v1167
    %1756 = vmatpush1.bf16.msra.mxu0 %v1166
    %1757 = vmatprep.subr.bf16.mxu0 %v1171
    %1758 = vmatpush1.bf16.msra.mxu0 %v1170
    %1759 = vmatprep.subr.bf16.mxu0 %v1175
    %1760 = vmatpush1.bf16.msra.mxu0 %v1174
    %1761 = vmatprep.subr.bf16.mxu0 %v1179
    %1762 = vmatpush1.bf16.msra.mxu0 %v1178
    %1763 = vmatprep.subr.bf16.mxu0 %v1183
    %1764 = vmatpush1.bf16.msra.mxu0 %v1182
    %1765 = vmatprep.subr.bf16.mxu0 %v1187
    %1766 = vmatpush1.bf16.msra.mxu0 %v1186
    %1767 = vmatprep.subr.bf16.mxu0 %v1191
    %1768 = vmatpush1.bf16.msra.mxu0 %v1190
    %1769 = vmatprep.subr.bf16.mxu0 %v1195
    %1770 = vmatpush1.bf16.msra.mxu0 %v1194
    %1771 = vmatprep.subr.bf16.mxu0 %v1199
    %1772 = vmatpush1.bf16.msra.mxu0 %v1198
    %1773 = vmatprep.subr.bf16.mxu0 %v1203
    %1774 = vmatpush1.bf16.msra.mxu0 %v1202
    %1775 = vmatprep.subr.bf16.mxu0 %v1207
    %1776 = vmatpush1.bf16.msra.mxu0 %v1206
    %1777 = vmatprep.subr.bf16.mxu0 %v1211
    %1778 = vmatpush1.bf16.msra.mxu0 %v1210
    %1779 = vmatprep.mubr.bf16.mxu0 %v401
    %1780 = vmatmul.mubr.bf16.gmra.mrb[0].mxu0 %v400
    %v1781 = vpop.f32.mrb[0].mxu0
    %v1782 = vadd.f32 %v1739, %v1781
    %v1783 = vpop.f32.mrb[0].mxu0
    %v1784 = vadd.f32 %v1741, %v1783
    %v1785 = vpop.f32.mrb[0].mxu0
    %v1786 = vadd.f32 %v1743, %v1785
    %v1787 = vpop.f32.mrb[0].mxu0
    %v1788 = vadd.f32 %v1745, %v1787
    %1789 = vdwg.mxu0
    %1790 = vmatprep.subr.bf16.mxu0 %v1215
    %1791 = vmatpush1.bf16.msra.mxu0 %v1214
    %1792 = vmatprep.subr.bf16.mxu0 %v1219
    %1793 = vmatpush1.bf16.msra.mxu0 %v1218
    %1794 = vmatprep.subr.bf16.mxu0 %v1223
    %1795 = vmatpush1.bf16.msra.mxu0 %v1222
    %1796 = vmatprep.subr.bf16.mxu0 %v1227
    %1797 = vmatpush1.bf16.msra.mxu0 %v1226
    %1798 = vmatprep.subr.bf16.mxu0 %v1231
    %1799 = vmatpush1.bf16.msra.mxu0 %v1230
    %1800 = vmatprep.subr.bf16.mxu0 %v1235
    %1801 = vmatpush1.bf16.msra.mxu0 %v1234
    %1802 = vmatprep.subr.bf16.mxu0 %v1239
    %1803 = vmatpush1.bf16.msra.mxu0 %v1238
    %1804 = vmatprep.subr.bf16.mxu0 %v1243
    %1805 = vmatpush1.bf16.msra.mxu0 %v1242
    %1806 = vmatprep.subr.bf16.mxu0 %v1247
    %1807 = vmatpush1.bf16.msra.mxu0 %v1246
    %1808 = vmatprep.subr.bf16.mxu0 %v1251
    %1809 = vmatpush1.bf16.msra.mxu0 %v1250
    %1810 = vmatprep.subr.bf16.mxu0 %v1255
    %1811 = vmatpush1.bf16.msra.mxu0 %v1254
    %1812 = vmatprep.subr.bf16.mxu0 %v1259
    %1813 = vmatpush1.bf16.msra.mxu0 %v1258
    %1814 = vmatprep.subr.bf16.mxu0 %v1263
    %1815 = vmatpush1.bf16.msra.mxu0 %v1262
    %1816 = vmatprep.subr.bf16.mxu0 %v1267
    %1817 = vmatpush1.bf16.msra.mxu0 %v1266
    %1818 = vmatprep.subr.bf16.mxu0 %v1271
    %1819 = vmatpush1.bf16.msra.mxu0 %v1270
    %1820 = vmatprep.subr.bf16.mxu0 %v1275
    %1821 = vmatpush1.bf16.msra.mxu0 %v1274
    %1822 = vmatprep.mubr.bf16.mxu0 %v403
    %1823 = vmatmul.mubr.bf16.gmra.mrb[0].mxu0 %v402
    %v1824 = vpop.f32.mrb[0].mxu0
    %v1825 = vadd.f32 %v1782, %v1824
    %v1826 = vpop.f32.mrb[0].mxu0
    %v1827 = vadd.f32 %v1784, %v1826
    %v1828 = vpop.f32.mrb[0].mxu0
    %v1829 = vadd.f32 %v1786, %v1828
    %v1830 = vpop.f32.mrb[0].mxu0
    %v1831 = vadd.f32 %v1788, %v1830
    %1832 = vdwg.mxu0
    %1833 = vmatprep.subr.bf16.mxu0 %v1279
    %1834 = vmatpush1.bf16.msra.mxu0 %v1278
    %1835 = vmatprep.subr.bf16.mxu0 %v1283
    %1836 = vmatpush1.bf16.msra.mxu0 %v1282
    %1837 = vmatprep.subr.bf16.mxu0 %v1287
    %1838 = vmatpush1.bf16.msra.mxu0 %v1286
    %1839 = vmatprep.subr.bf16.mxu0 %v1291
    %1840 = vmatpush1.bf16.msra.mxu0 %v1290
    %1841 = vmatprep.subr.bf16.mxu0 %v1295
    %1842 = vmatpush1.bf16.msra.mxu0 %v1294
    %1843 = vmatprep.subr.bf16.mxu0 %v1299
    %1844 = vmatpush1.bf16.msra.mxu0 %v1298
    %1845 = vmatprep.subr.bf16.mxu0 %v1303
    %1846 = vmatpush1.bf16.msra.mxu0 %v1302
    %1847 = vmatprep.subr.bf16.mxu0 %v1307
    %1848 = vmatpush1.bf16.msra.mxu0 %v1306
    %1849 = vmatprep.subr.bf16.mxu0 0
    %1850 = vmatpush1.bf16.msra.mxu0 0
    %1851 = vmatprep.subr.bf16.mxu0 0
    %1852 = vmatpush1.bf16.msra.mxu0 0
    %1853 = vmatprep.subr.bf16.mxu0 0
    %1854 = vmatpush1.bf16.msra.mxu0 0
    %1855 = vmatprep.subr.bf16.mxu0 0
    %1856 = vmatpush1.bf16.msra.mxu0 0
    %1857 = vmatprep.subr.bf16.mxu0 0
    %1858 = vmatpush1.bf16.msra.mxu0 0
    %1859 = vmatprep.subr.bf16.mxu0 0
    %1860 = vmatpush1.bf16.msra.mxu0 0
    %1861 = vmatprep.subr.bf16.mxu0 0
    %1862 = vmatpush1.bf16.msra.mxu0 0
    %1863 = vmatprep.subr.bf16.mxu0 0
    %1864 = vmatpush1.bf16.msra.mxu0 0
    %1865 = vmatprep.mubr.bf16.mxu0 0
    %1866 = vmatmul.mubr.bf16.gmra.mrb[0].mxu0 %v404
    %v1867 = vpop.f32.mrb[0].mxu0
    %v1868 = vadd.f32 %v1825, %v1867
    %v1869 = vpop.f32.mrb[0].mxu0
    %v1870 = vadd.f32 %v1827, %v1869
    %v1871 = vpop.f32.mrb[0].mxu0
    %v1872 = vadd.f32 %v1829, %v1871
    %v1873 = vpop.f32.mrb[0].mxu0
    %v1874 = vadd.f32 %v1831, %v1873
    %1875 = vdwg.mxu0
    %v1876 = vmax.f32 %v1696, 0.0
    %v1877 = vmax.f32 %v1698, 0.0
    %v1878 = vmax.f32 %v1868, 0.0
    %v1879 = vmax.f32 %v1870, 0.0
    %v1880 = vmax.f32 %v1700, 0.0
    %v1881 = vmax.f32 %v1702, 0.0
    %v1882 = vmax.f32 %v1872, 0.0
    %v1883 = vmax.f32 %v1874, 0.0
    %v1884 = vpack.c.bf16 %v1880, %v1876
    %v1885 = vpack.c.bf16 %v1881, %v1877
    %v1886 = vpack.c.bf16 %v1882, %v1878
    %v1887 = vpack.c.bf16 %v1883, %v1879
    %v1888 = vld [vmem:[#allocation8] sm:$0xff]
    %v1889 = vld [vmem:[#allocation8 + $0x8] sm:$0xff]
    %v1890 = vld [vmem:[#allocation8 + $0x10] sm:$0xff]
    %v1891 = vld [vmem:[#allocation8 + $0x18] sm:$0xff]
    %v1892 = vld [vmem:[#allocation8 + $0x20] sm:$0xff]
    %v1893 = vld [vmem:[#allocation8 + $0x28] sm:$0xff]
    %v1894 = vld [vmem:[#allocation8 + $0x30] sm:$0xff]
    %v1895 = vld [vmem:[#allocation8 + $0x38] sm:$0xff]
    %v1896 = vld [vmem:[#allocation8 + $0x40] sm:$0xff]
    %v1897 = vld [vmem:[#allocation8 + $0x48] sm:$0xff]
    %v1898 = vld [vmem:[#allocation8 + $0x50] sm:$0xff]
    %v1899 = vld [vmem:[#allocation8 + $0x58] sm:$0xff]
    %v1900 = vld [vmem:[#allocation8 + $0x60] sm:$0xff]
    %v1901 = vld [vmem:[#allocation8 + $0x68] sm:$0xff]
    %v1902 = vld [vmem:[#allocation8 + $0x70] sm:$0xff]
    %v1903 = vld [vmem:[#allocation8 + $0x78] sm:$0xff]
    %v1904 = vld [vmem:[#allocation8 + $0x80] sm:$0xff]
    %v1905 = vld [vmem:[#allocation8 + $0x88] sm:$0xff]
    %v1906 = vld [vmem:[#allocation8 + $0x90] sm:$0xff]
    %v1907 = vld [vmem:[#allocation8 + $0x98] sm:$0xff]
    %v1908 = vld [vmem:[#allocation8 + $0xa0] sm:$0xff]
    %v1909 = vld [vmem:[#allocation8 + $0xa8] sm:$0xff]
    %v1910 = vld [vmem:[#allocation8 + $0xb0] sm:$0xff]
    %v1911 = vld [vmem:[#allocation8 + $0xb8] sm:$0xff]
    %v1912 = vld [vmem:[#allocation8 + $0xc0] sm:$0xff]
    %v1913 = vld [vmem:[#allocation8 + $0xc8] sm:$0xff]
    %v1914 = vld [vmem:[#allocation8 + $0xd0] sm:$0xff]
    %v1915 = vld [vmem:[#allocation8 + $0xd8] sm:$0xff]
    %v1916 = vld [vmem:[#allocation8 + $0xe0] sm:$0xff]
    %v1917 = vld [vmem:[#allocation8 + $0xe8] sm:$0xff]
    %v1918 = vld [vmem:[#allocation8 + $0xf0] sm:$0xff]
    %v1919 = vld [vmem:[#allocation8 + $0xf8] sm:$0xff]
    %v1920 = vld [vmem:[#allocation8 + $0x100] sm:$0xff]
    %v1921 = vld [vmem:[#allocation8 + $0x108] sm:$0xff]
    %v1922 = vld [vmem:[#allocation8 + $0x110] sm:$0xff]
    %v1923 = vld [vmem:[#allocation8 + $0x118] sm:$0xff]
    %v1924 = vld [vmem:[#allocation8 + $0x120] sm:$0xff]
    %v1925 = vld [vmem:[#allocation8 + $0x128] sm:$0xff]
    %v1926 = vld [vmem:[#allocation8 + $0x130] sm:$0xff]
    %v1927 = vld [vmem:[#allocation8 + $0x138] sm:$0xff]
    %v1928 = vld [vmem:[#allocation8 + $0x140] sm:$0xff]
    %v1929 = vld [vmem:[#allocation8 + $0x148] sm:$0xff]
    %v1930 = vld [vmem:[#allocation8 + $0x150] sm:$0xff]
    %v1931 = vld [vmem:[#allocation8 + $0x158] sm:$0xff]
    %v1932 = vld [vmem:[#allocation8 + $0x160] sm:$0xff]
    %v1933 = vld [vmem:[#allocation8 + $0x168] sm:$0xff]
    %v1934 = vld [vmem:[#allocation8 + $0x170] sm:$0xff]
    %v1935 = vld [vmem:[#allocation8 + $0x178] sm:$0xff]
    %v1936 = vld [vmem:[#allocation8 + $0x180] sm:$0xff]
    %v1937 = vld [vmem:[#allocation8 + $0x188] sm:$0xff]
    %v1938 = vld [vmem:[#allocation8 + $0x190] sm:$0xff]
    %v1939 = vld [vmem:[#allocation8 + $0x198] sm:$0xff]
    %v1940 = vld [vmem:[#allocation8 + $0x1a0] sm:$0xff]
    %v1941 = vld [vmem:[#allocation8 + $0x1a8] sm:$0xff]
    %v1942 = vld [vmem:[#allocation8 + $0x1b0] sm:$0xff]
    %v1943 = vld [vmem:[#allocation8 + $0x1b8] sm:$0xff]
    %v1944 = vld [vmem:[#allocation8 + $0x1c0] sm:$0xff]
    %v1945 = vld [vmem:[#allocation8 + $0x1c8] sm:$0xff]
    %v1946 = vld [vmem:[#allocation8 + $0x1d0] sm:$0xff]
    %v1947 = vld [vmem:[#allocation8 + $0x1d8] sm:$0xff]
    %v1948 = vld [vmem:[#allocation8 + $0x1e0] sm:$0xff]
    %v1949 = vld [vmem:[#allocation8 + $0x1e8] sm:$0xff]
    %v1950 = vld [vmem:[#allocation8 + $0x1f0] sm:$0xff]
    %v1951 = vld [vmem:[#allocation8 + $0x1f8] sm:$0xff]
    %v1952 = vld [vmem:[%s5] sm:$0x3]
    %v1954 = vlaneseq
    %v1955 = vshrl.u32 %v1954, 7
    %v1956 = vsub.s32 0, %v1955
    %v1957 = vrot.slane %v1952, %v1956
    %v1958 = vlaneseq
    %v1959 = vshrl.u32 %v1958, 7
    %v1960 = vsub.s32 1, %v1959
    %v1961 = vrot.slane %v1952, %v1960
    %v2028 = vunpack.c.l.b16 %v1888
    %v2029 = vunpack.c.h.b16 %v1888
    %v2030 = vunpack.c.l.b16 %v1889
    %v2031 = vunpack.c.h.b16 %v1889
    %v2032 = vunpack.c.l.b16 %v1890
    %v2033 = vunpack.c.h.b16 %v1890
    %v2034 = vunpack.c.l.b16 %v1891
    %v2035 = vunpack.c.h.b16 %v1891
    %v2036 = vunpack.c.l.b16 %v1892
    %v2037 = vunpack.c.h.b16 %v1892
    %v2038 = vunpack.c.l.b16 %v1893
    %v2039 = vunpack.c.h.b16 %v1893
    %v2040 = vunpack.c.l.b16 %v1894
    %v2041 = vunpack.c.h.b16 %v1894
    %v2042 = vunpack.c.l.b16 %v1895
    %v2043 = vunpack.c.h.b16 %v1895
    %v2044 = vunpack.c.l.b16 %v1896
    %v2045 = vunpack.c.h.b16 %v1896
    %v2046 = vunpack.c.l.b16 %v1897
    %v2047 = vunpack.c.h.b16 %v1897
    %v2048 = vunpack.c.l.b16 %v1898
    %v2049 = vunpack.c.h.b16 %v1898
    %v2050 = vunpack.c.l.b16 %v1899
    %v2051 = vunpack.c.h.b16 %v1899
    %v2052 = vunpack.c.l.b16 %v1900
    %v2053 = vunpack.c.h.b16 %v1900
    %v2054 = vunpack.c.l.b16 %v1901
    %v2055 = vunpack.c.h.b16 %v1901
    %v2056 = vunpack.c.l.b16 %v1902
    %v2057 = vunpack.c.h.b16 %v1902
    %v2058 = vunpack.c.l.b16 %v1903
    %v2059 = vunpack.c.h.b16 %v1903
    %v2060 = vunpack.c.l.b16 %v1904
    %v2061 = vunpack.c.h.b16 %v1904
    %v2062 = vunpack.c.l.b16 %v1905
    %v2063 = vunpack.c.h.b16 %v1905
    %v2064 = vunpack.c.l.b16 %v1906
    %v2065 = vunpack.c.h.b16 %v1906
    %v2066 = vunpack.c.l.b16 %v1907
    %v2067 = vunpack.c.h.b16 %v1907
    %v2068 = vunpack.c.l.b16 %v1908
    %v2069 = vunpack.c.h.b16 %v1908
    %v2070 = vunpack.c.l.b16 %v1909
    %v2071 = vunpack.c.h.b16 %v1909
    %v2072 = vunpack.c.l.b16 %v1910
    %v2073 = vunpack.c.h.b16 %v1910
    %v2074 = vunpack.c.l.b16 %v1911
    %v2075 = vunpack.c.h.b16 %v1911
    %v2076 = vunpack.c.l.b16 %v1912
    %v2077 = vunpack.c.h.b16 %v1912
    %v2078 = vunpack.c.l.b16 %v1913
    %v2079 = vunpack.c.h.b16 %v1913
    %v2080 = vunpack.c.l.b16 %v1914
    %v2081 = vunpack.c.h.b16 %v1914
    %v2082 = vunpack.c.l.b16 %v1915
    %v2083 = vunpack.c.h.b16 %v1915
    %v2084 = vunpack.c.l.b16 %v1916
    %v2085 = vunpack.c.h.b16 %v1916
    %v2086 = vunpack.c.l.b16 %v1917
    %v2087 = vunpack.c.h.b16 %v1917
    %v2088 = vunpack.c.l.b16 %v1918
    %v2089 = vunpack.c.h.b16 %v1918
    %v2090 = vunpack.c.l.b16 %v1919
    %v2091 = vunpack.c.h.b16 %v1919
    %v2092 = vunpack.c.l.b16 %v1920
    %v2093 = vunpack.c.h.b16 %v1920
    %v2094 = vunpack.c.l.b16 %v1921
    %v2095 = vunpack.c.h.b16 %v1921
    %v2096 = vunpack.c.l.b16 %v1922
    %v2097 = vunpack.c.h.b16 %v1922
    %v2098 = vunpack.c.l.b16 %v1923
    %v2099 = vunpack.c.h.b16 %v1923
    %v2100 = vunpack.c.l.b16 %v1924
    %v2101 = vunpack.c.h.b16 %v1924
    %v2102 = vunpack.c.l.b16 %v1925
    %v2103 = vunpack.c.h.b16 %v1925
    %v2104 = vunpack.c.l.b16 %v1926
    %v2105 = vunpack.c.h.b16 %v1926
    %v2106 = vunpack.c.l.b16 %v1927
    %v2107 = vunpack.c.h.b16 %v1927
    %v2108 = vunpack.c.l.b16 %v1928
    %v2109 = vunpack.c.h.b16 %v1928
    %v2110 = vunpack.c.l.b16 %v1929
    %v2111 = vunpack.c.h.b16 %v1929
    %v2112 = vunpack.c.l.b16 %v1930
    %v2113 = vunpack.c.h.b16 %v1930
    %v2114 = vunpack.c.l.b16 %v1931
    %v2115 = vunpack.c.h.b16 %v1931
    %v2116 = vunpack.c.l.b16 %v1932
    %v2117 = vunpack.c.h.b16 %v1932
    %v2118 = vunpack.c.l.b16 %v1933
    %v2119 = vunpack.c.h.b16 %v1933
    %v2120 = vunpack.c.l.b16 %v1934
    %v2121 = vunpack.c.h.b16 %v1934
    %v2122 = vunpack.c.l.b16 %v1935
    %v2123 = vunpack.c.h.b16 %v1935
    %v2124 = vunpack.c.l.b16 %v1936
    %v2125 = vunpack.c.h.b16 %v1936
    %v2126 = vunpack.c.l.b16 %v1937
    %v2127 = vunpack.c.h.b16 %v1937
    %v2128 = vunpack.c.l.b16 %v1938
    %v2129 = vunpack.c.h.b16 %v1938
    %v2130 = vunpack.c.l.b16 %v1939
    %v2131 = vunpack.c.h.b16 %v1939
    %v2132 = vunpack.c.l.b16 %v1940
    %v2133 = vunpack.c.h.b16 %v1940
    %v2134 = vunpack.c.l.b16 %v1941
    %v2135 = vunpack.c.h.b16 %v1941
    %v2136 = vunpack.c.l.b16 %v1942
    %v2137 = vunpack.c.h.b16 %v1942
    %v2138 = vunpack.c.l.b16 %v1943
    %v2139 = vunpack.c.h.b16 %v1943
    %v2140 = vunpack.c.l.b16 %v1944
    %v2141 = vunpack.c.h.b16 %v1944
    %v2142 = vunpack.c.l.b16 %v1945
    %v2143 = vunpack.c.h.b16 %v1945
    %v2144 = vunpack.c.l.b16 %v1946
    %v2145 = vunpack.c.h.b16 %v1946
    %v2146 = vunpack.c.l.b16 %v1947
    %v2147 = vunpack.c.h.b16 %v1947
    %v2148 = vunpack.c.l.b16 %v1948
    %v2149 = vunpack.c.h.b16 %v1948
    %v2150 = vunpack.c.l.b16 %v1949
    %v2151 = vunpack.c.h.b16 %v1949
    %v2152 = vunpack.c.l.b16 %v1950
    %v2153 = vunpack.c.h.b16 %v1950
    %v2154 = vunpack.c.l.b16 %v1951
    %v2155 = vunpack.c.h.b16 %v1951
    %v2156 = vpack.c.b16 %v2030, %v2028
    %v2157 = vpack.c.b16 %v2031, %v2029
    %v2158 = vpack.c.b16 %v2034, %v2032
    %v2159 = vpack.c.b16 %v2035, %v2033
    %v2160 = vpack.c.b16 %v2038, %v2036
    %v2161 = vpack.c.b16 %v2039, %v2037
    %v2162 = vpack.c.b16 %v2042, %v2040
    %v2163 = vpack.c.b16 %v2043, %v2041
    %v2164 = vpack.c.b16 %v2046, %v2044
    %v2165 = vpack.c.b16 %v2047, %v2045
    %v2166 = vpack.c.b16 %v2050, %v2048
    %v2167 = vpack.c.b16 %v2051, %v2049
    %v2168 = vpack.c.b16 %v2054, %v2052
    %v2169 = vpack.c.b16 %v2055, %v2053
    %v2170 = vpack.c.b16 %v2058, %v2056
    %v2171 = vpack.c.b16 %v2059, %v2057
    %v2172 = vpack.c.b16 %v2062, %v2060
    %v2173 = vpack.c.b16 %v2063, %v2061
    %v2174 = vpack.c.b16 %v2066, %v2064
    %v2175 = vpack.c.b16 %v2067, %v2065
    %v2176 = vpack.c.b16 %v2070, %v2068
    %v2177 = vpack.c.b16 %v2071, %v2069
    %v2178 = vpack.c.b16 %v2074, %v2072
    %v2179 = vpack.c.b16 %v2075, %v2073
    %v2180 = vpack.c.b16 %v2078, %v2076
    %v2181 = vpack.c.b16 %v2079, %v2077
    %v2182 = vpack.c.b16 %v2082, %v2080
    %v2183 = vpack.c.b16 %v2083, %v2081
    %v2184 = vpack.c.b16 %v2086, %v2084
    %v2185 = vpack.c.b16 %v2087, %v2085
    %v2186 = vpack.c.b16 %v2090, %v2088
    %v2187 = vpack.c.b16 %v2091, %v2089
    %v2188 = vpack.c.b16 %v2094, %v2092
    %v2189 = vpack.c.b16 %v2095, %v2093
    %v2190 = vpack.c.b16 %v2098, %v2096
    %v2191 = vpack.c.b16 %v2099, %v2097
    %v2192 = vpack.c.b16 %v2102, %v2100
    %v2193 = vpack.c.b16 %v2103, %v2101
    %v2194 = vpack.c.b16 %v2106, %v2104
    %v2195 = vpack.c.b16 %v2107, %v2105
    %v2196 = vpack.c.b16 %v2110, %v2108
    %v2197 = vpack.c.b16 %v2111, %v2109
    %v2198 = vpack.c.b16 %v2114, %v2112
    %v2199 = vpack.c.b16 %v2115, %v2113
    %v2200 = vpack.c.b16 %v2118, %v2116
    %v2201 = vpack.c.b16 %v2119, %v2117
    %v2202 = vpack.c.b16 %v2122, %v2120
    %v2203 = vpack.c.b16 %v2123, %v2121
    %v2204 = vpack.c.b16 %v2126, %v2124
    %v2205 = vpack.c.b16 %v2127, %v2125
    %v2206 = vpack.c.b16 %v2130, %v2128
    %v2207 = vpack.c.b16 %v2131, %v2129
    %v2208 = vpack.c.b16 %v2134, %v2132
    %v2209 = vpack.c.b16 %v2135, %v2133
    %v2210 = vpack.c.b16 %v2138, %v2136
    %v2211 = vpack.c.b16 %v2139, %v2137
    %v2212 = vpack.c.b16 %v2142, %v2140
    %v2213 = vpack.c.b16 %v2143, %v2141
    %v2214 = vpack.c.b16 %v2146, %v2144
    %v2215 = vpack.c.b16 %v2147, %v2145
    %v2216 = vpack.c.b16 %v2150, %v2148
    %v2217 = vpack.c.b16 %v2151, %v2149
    %v2218 = vpack.c.b16 %v2154, %v2152
    %v2219 = vpack.c.b16 %v2155, %v2153
    %2284 = vmatprep.subr.bf16.mxu0 %v2157
    %2285 = vmatpush1.bf16.msra.mxu0 %v2156
    %2286 = vmatprep.subr.bf16.mxu0 %v2159
    %2287 = vmatpush1.bf16.msra.mxu0 %v2158
    %2288 = vmatprep.subr.bf16.mxu0 %v2161
    %2289 = vmatpush1.bf16.msra.mxu0 %v2160
    %2290 = vmatprep.subr.bf16.mxu0 %v2163
    %2291 = vmatpush1.bf16.msra.mxu0 %v2162
    %2292 = vmatprep.subr.bf16.mxu0 %v2165
    %2293 = vmatpush1.bf16.msra.mxu0 %v2164
    %2294 = vmatprep.subr.bf16.mxu0 %v2167
    %2295 = vmatpush1.bf16.msra.mxu0 %v2166
    %2296 = vmatprep.subr.bf16.mxu0 %v2169
    %2297 = vmatpush1.bf16.msra.mxu0 %v2168
    %2298 = vmatprep.subr.bf16.mxu0 %v2171
    %2299 = vmatpush1.bf16.msra.mxu0 %v2170
    %2300 = vmatprep.subr.bf16.mxu0 %v2173
    %2301 = vmatpush1.bf16.msra.mxu0 %v2172
    %2302 = vmatprep.subr.bf16.mxu0 %v2175
    %2303 = vmatpush1.bf16.msra.mxu0 %v2174
    %2304 = vmatprep.subr.bf16.mxu0 %v2177
    %2305 = vmatpush1.bf16.msra.mxu0 %v2176
    %2306 = vmatprep.subr.bf16.mxu0 %v2179
    %2307 = vmatpush1.bf16.msra.mxu0 %v2178
    %2308 = vmatprep.subr.bf16.mxu0 %v2181
    %2309 = vmatpush1.bf16.msra.mxu0 %v2180
    %2310 = vmatprep.subr.bf16.mxu0 %v2183
    %2311 = vmatpush1.bf16.msra.mxu0 %v2182
    %2312 = vmatprep.subr.bf16.mxu0 %v2185
    %2313 = vmatpush1.bf16.msra.mxu0 %v2184
    %2314 = vmatprep.subr.bf16.mxu0 %v2187
    %2315 = vmatpush1.bf16.msra.mxu0 %v2186
    %2316 = vmatprep.mubr.bf16.mxu0 %v1885
    %2317 = vmatmul.mubr.bf16.gmra.mrb[0].mxu0 %v1884
    %v2318 = vpop.f32.mrb[0].mxu0
    %v2319 = vadd.f32 %v1957, %v2318
    %v2320 = vpop.f32.mrb[0].mxu0
    %v2321 = vadd.f32 %v1961, %v2320
    %v2322 = vpop.f32.mrb[0].mxu0
    %v2323 = vadd.f32 %v1957, %v2322
    %v2324 = vpop.f32.mrb[0].mxu0
    %v2325 = vadd.f32 %v1961, %v2324
    %2326 = vdwg.mxu0
    %2327 = vmatprep.subr.bf16.mxu0 %v2189
    %2328 = vmatpush1.bf16.msra.mxu0 %v2188
    %2329 = vmatprep.subr.bf16.mxu0 %v2191
    %2330 = vmatpush1.bf16.msra.mxu0 %v2190
    %2331 = vmatprep.subr.bf16.mxu0 %v2193
    %2332 = vmatpush1.bf16.msra.mxu0 %v2192
    %2333 = vmatprep.subr.bf16.mxu0 %v2195
    %2334 = vmatpush1.bf16.msra.mxu0 %v2194
    %2335 = vmatprep.subr.bf16.mxu0 %v2197
    %2336 = vmatpush1.bf16.msra.mxu0 %v2196
    %2337 = vmatprep.subr.bf16.mxu0 %v2199
    %2338 = vmatpush1.bf16.msra.mxu0 %v2198
    %2339 = vmatprep.subr.bf16.mxu0 %v2201
    %2340 = vmatpush1.bf16.msra.mxu0 %v2200
    %2341 = vmatprep.subr.bf16.mxu0 %v2203
    %2342 = vmatpush1.bf16.msra.mxu0 %v2202
    %2343 = vmatprep.subr.bf16.mxu0 %v2205
    %2344 = vmatpush1.bf16.msra.mxu0 %v2204
    %2345 = vmatprep.subr.bf16.mxu0 %v2207
    %2346 = vmatpush1.bf16.msra.mxu0 %v2206
    %2347 = vmatprep.subr.bf16.mxu0 %v2209
    %2348 = vmatpush1.bf16.msra.mxu0 %v2208
    %2349 = vmatprep.subr.bf16.mxu0 %v2211
    %2350 = vmatpush1.bf16.msra.mxu0 %v2210
    %2351 = vmatprep.subr.bf16.mxu0 %v2213
    %2352 = vmatpush1.bf16.msra.mxu0 %v2212
    %2353 = vmatprep.subr.bf16.mxu0 %v2215
    %2354 = vmatpush1.bf16.msra.mxu0 %v2214
    %2355 = vmatprep.subr.bf16.mxu0 %v2217
    %2356 = vmatpush1.bf16.msra.mxu0 %v2216
    %2357 = vmatprep.subr.bf16.mxu0 %v2219
    %2358 = vmatpush1.bf16.msra.mxu0 %v2218
    %2359 = vmatprep.mubr.bf16.mxu0 %v1887
    %2360 = vmatmul.mubr.bf16.gmra.mrb[0].mxu0 %v1886
    %v2361 = vpop.f32.mrb[0].mxu0
    %v2362 = vadd.f32 %v2319, %v2361
    %v2363 = vpop.f32.mrb[0].mxu0
    %v2364 = vadd.f32 %v2321, %v2363
    %v2365 = vpop.f32.mrb[0].mxu0
    %v2366 = vadd.f32 %v2323, %v2365
    %v2367 = vpop.f32.mrb[0].mxu0
    %v2368 = vadd.f32 %v2325, %v2367
    %2369 = vdwg.mxu0
    %v2370 = vld [vmem:[#allocation5] sm:$0xf]
    %v2371 = vld [vmem:[#allocation5 + $0x4] sm:$0xf]
    %v2372 = vunpack.c.l.bf16 %v2370
    %v2373 = vunpack.c.l.bf16 %v2371
    %v2374 = vmul.f32 %v2364, 0.5
    %v2375 = vmul.f32 %v2368, 0.5
    %v2376 = vmul.f32 %v2374, 1.442695
    %v2377 = vpow.pop %v2376
    %v2378 = vmul.f32 %v2375, 1.442695
    %v2379 = vpow.pop %v2378
    %v2380 = vmul.f32 %v2372, %v2377
    %v2381 = vmul.f32 %v2373, %v2379
    %v2382 = vadd.f32 %v2380, %v2362
    %v2383 = vadd.f32 %v2381, %v2366
    %v2384 = vpack.c.bf16 %v2383, %v2382
    %v2385 = vld [vmem:[#allocation10] sm:$0xff]
    %v2386 = vld [vmem:[#allocation10 + $0x8] sm:$0xff]
    %v2387 = vld [vmem:[#allocation10 + $0x10] sm:$0xff]
    %v2388 = vld [vmem:[#allocation10 + $0x18] sm:$0xff]
    %v2389 = vld [vmem:[#allocation10 + $0x20] sm:$0xff]
    %v2390 = vld [vmem:[#allocation10 + $0x28] sm:$0xff]
    %v2391 = vld [vmem:[#allocation10 + $0x30] sm:$0xff]
    %v2392 = vld [vmem:[#allocation10 + $0x38] sm:$0xff]
    %v2393 = vld [vmem:[#allocation10 + $0x40] sm:$0xff]
    %v2394 = vld [vmem:[#allocation10 + $0x48] sm:$0xff]
    %v2395 = vld [vmem:[#allocation10 + $0x50] sm:$0xff]
    %v2396 = vld [vmem:[#allocation10 + $0x58] sm:$0xff]
    %v2397 = vld [vmem:[#allocation10 + $0x60] sm:$0xff]
    %v2398 = vld [vmem:[#allocation10 + $0x68] sm:$0xff]
    %v2399 = vld [vmem:[#allocation10 + $0x70] sm:$0xff]
    %v2400 = vld [vmem:[#allocation10 + $0x78] sm:$0xff]
    %v2401 = vld [vmem:[#allocation10 + $0x80] sm:$0xff]
    %v2402 = vld [vmem:[#allocation10 + $0x88] sm:$0xff]
    %v2403 = vld [vmem:[#allocation10 + $0x90] sm:$0xff]
    %v2404 = vld [vmem:[#allocation10 + $0x98] sm:$0xff]
    %v2405 = vld [vmem:[#allocation10 + $0xa0] sm:$0xff]
    %v2406 = vld [vmem:[#allocation10 + $0xa8] sm:$0xff]
    %v2407 = vld [vmem:[#allocation10 + $0xb0] sm:$0xff]
    %v2408 = vld [vmem:[#allocation10 + $0xb8] sm:$0xff]
    %v2409 = vld [vmem:[#allocation10 + $0xc0] sm:$0xff]
    %v2410 = vld [vmem:[#allocation10 + $0xc8] sm:$0xff]
    %v2411 = vld [vmem:[#allocation10 + $0xd0] sm:$0xff]
    %v2412 = vld [vmem:[#allocation10 + $0xd8] sm:$0xff]
    %v2413 = vld [vmem:[#allocation10 + $0xe0] sm:$0xff]
    %v2414 = vld [vmem:[#allocation10 + $0xe8] sm:$0xff]
    %v2415 = vld [vmem:[#allocation10 + $0xf0] sm:$0xff]
    %v2416 = vld [vmem:[#allocation10 + $0xf8] sm:$0xff]
    %v2417 = vld [vmem:[%s7] sm:$0xf]
    %v2419 = vlaneseq
    %v2420 = vshrl.u32 %v2419, 7
    %v2421 = vsub.s32 0, %v2420
    %v2422 = vrot.slane %v2417, %v2421
    %v2423 = vlaneseq
    %v2424 = vshrl.u32 %v2423, 7
    %v2425 = vsub.s32 1, %v2424
    %v2426 = vrot.slane %v2417, %v2425
    %v2427 = vlaneseq
    %v2428 = vshrl.u32 %v2427, 7
    %v2429 = vsub.s32 2, %v2428
    %v2430 = vrot.slane %v2417, %v2429
    %v2431 = vlaneseq
    %v2432 = vshrl.u32 %v2431, 7
    %v2433 = vsub.s32 3, %v2432
    %v2434 = vrot.slane %v2417, %v2433
    %v2471 = vunpack.c.l.b16 %v2385
    %v2472 = vunpack.c.h.b16 %v2385
    %v2473 = vunpack.c.l.b16 %v2386
    %v2474 = vunpack.c.h.b16 %v2386
    %v2475 = vunpack.c.l.b16 %v2387
    %v2476 = vunpack.c.h.b16 %v2387
    %v2477 = vunpack.c.l.b16 %v2388
    %v2478 = vunpack.c.h.b16 %v2388
    %v2479 = vunpack.c.l.b16 %v2389
    %v2480 = vunpack.c.h.b16 %v2389
    %v2481 = vunpack.c.l.b16 %v2390
    %v2482 = vunpack.c.h.b16 %v2390
    %v2483 = vunpack.c.l.b16 %v2391
    %v2484 = vunpack.c.h.b16 %v2391
    %v2485 = vunpack.c.l.b16 %v2392
    %v2486 = vunpack.c.h.b16 %v2392
    %v2487 = vunpack.c.l.b16 %v2393
    %v2488 = vunpack.c.h.b16 %v2393
    %v2489 = vunpack.c.l.b16 %v2394
    %v2490 = vunpack.c.h.b16 %v2394
    %v2491 = vunpack.c.l.b16 %v2395
    %v2492 = vunpack.c.h.b16 %v2395
    %v2493 = vunpack.c.l.b16 %v2396
    %v2494 = vunpack.c.h.b16 %v2396
    %v2495 = vunpack.c.l.b16 %v2397
    %v2496 = vunpack.c.h.b16 %v2397
    %v2497 = vunpack.c.l.b16 %v2398
    %v2498 = vunpack.c.h.b16 %v2398
    %v2499 = vunpack.c.l.b16 %v2399
    %v2500 = vunpack.c.h.b16 %v2399
    %v2501 = vunpack.c.l.b16 %v2400
    %v2502 = vunpack.c.h.b16 %v2400
    %v2503 = vunpack.c.l.b16 %v2401
    %v2504 = vunpack.c.h.b16 %v2401
    %v2505 = vunpack.c.l.b16 %v2402
    %v2506 = vunpack.c.h.b16 %v2402
    %v2507 = vunpack.c.l.b16 %v2403
    %v2508 = vunpack.c.h.b16 %v2403
    %v2509 = vunpack.c.l.b16 %v2404
    %v2510 = vunpack.c.h.b16 %v2404
    %v2511 = vunpack.c.l.b16 %v2405
    %v2512 = vunpack.c.h.b16 %v2405
    %v2513 = vunpack.c.l.b16 %v2406
    %v2514 = vunpack.c.h.b16 %v2406
    %v2515 = vunpack.c.l.b16 %v2407
    %v2516 = vunpack.c.h.b16 %v2407
    %v2517 = vunpack.c.l.b16 %v2408
    %v2518 = vunpack.c.h.b16 %v2408
    %v2519 = vunpack.c.l.b16 %v2409
    %v2520 = vunpack.c.h.b16 %v2409
    %v2521 = vunpack.c.l.b16 %v2410
    %v2522 = vunpack.c.h.b16 %v2410
    %v2523 = vunpack.c.l.b16 %v2411
    %v2524 = vunpack.c.h.b16 %v2411
    %v2525 = vunpack.c.l.b16 %v2412
    %v2526 = vunpack.c.h.b16 %v2412
    %v2527 = vunpack.c.l.b16 %v2413
    %v2528 = vunpack.c.h.b16 %v2413
    %v2529 = vunpack.c.l.b16 %v2414
    %v2530 = vunpack.c.h.b16 %v2414
    %v2531 = vunpack.c.l.b16 %v2415
    %v2532 = vunpack.c.h.b16 %v2415
    %v2533 = vunpack.c.l.b16 %v2416
    %v2534 = vunpack.c.h.b16 %v2416
    %v2535 = vpack.c.b16 %v2475, %v2471
    %v2536 = vpack.c.b16 %v2476, %v2472
    %v2537 = vpack.c.b16 %v2477, %v2473
    %v2538 = vpack.c.b16 %v2478, %v2474
    %v2539 = vpack.c.b16 %v2483, %v2479
    %v2540 = vpack.c.b16 %v2484, %v2480
    %v2541 = vpack.c.b16 %v2485, %v2481
    %v2542 = vpack.c.b16 %v2486, %v2482
    %v2543 = vpack.c.b16 %v2491, %v2487
    %v2544 = vpack.c.b16 %v2492, %v2488
    %v2545 = vpack.c.b16 %v2493, %v2489
    %v2546 = vpack.c.b16 %v2494, %v2490
    %v2547 = vpack.c.b16 %v2499, %v2495
    %v2548 = vpack.c.b16 %v2500, %v2496
    %v2549 = vpack.c.b16 %v2501, %v2497
    %v2550 = vpack.c.b16 %v2502, %v2498
    %v2551 = vpack.c.b16 %v2507, %v2503
    %v2552 = vpack.c.b16 %v2508, %v2504
    %v2553 = vpack.c.b16 %v2509, %v2505
    %v2554 = vpack.c.b16 %v2510, %v2506
    %v2555 = vpack.c.b16 %v2515, %v2511
    %v2556 = vpack.c.b16 %v2516, %v2512
    %v2557 = vpack.c.b16 %v2517, %v2513
    %v2558 = vpack.c.b16 %v2518, %v2514
    %v2559 = vpack.c.b16 %v2523, %v2519
    %v2560 = vpack.c.b16 %v2524, %v2520
    %v2561 = vpack.c.b16 %v2525, %v2521
    %v2562 = vpack.c.b16 %v2526, %v2522
    %v2563 = vpack.c.b16 %v2531, %v2527
    %v2564 = vpack.c.b16 %v2532, %v2528
    %v2565 = vpack.c.b16 %v2533, %v2529
    %v2566 = vpack.c.b16 %v2534, %v2530
    %2599 = vmatprep.subr.bf16.mxu0 %v2536
    %2600 = vmatpush1.bf16.msra.mxu0 %v2535
    %2601 = vmatprep.subr.bf16.mxu0 %v2540
    %2602 = vmatpush1.bf16.msra.mxu0 %v2539
    %2603 = vmatprep.subr.bf16.mxu0 %v2544
    %2604 = vmatpush1.bf16.msra.mxu0 %v2543
    %2605 = vmatprep.subr.bf16.mxu0 %v2548
    %2606 = vmatpush1.bf16.msra.mxu0 %v2547
    %2607 = vmatprep.subr.bf16.mxu0 %v2552
    %2608 = vmatpush1.bf16.msra.mxu0 %v2551
    %2609 = vmatprep.subr.bf16.mxu0 %v2556
    %2610 = vmatpush1.bf16.msra.mxu0 %v2555
    %2611 = vmatprep.subr.bf16.mxu0 %v2560
    %2612 = vmatpush1.bf16.msra.mxu0 %v2559
    %2613 = vmatprep.subr.bf16.mxu0 %v2564
    %2614 = vmatpush1.bf16.msra.mxu0 %v2563
    %2615 = vmatprep.subr.bf16.mxu0 0
    %2616 = vmatpush1.bf16.msra.mxu0 0
    %2617 = vmatprep.subr.bf16.mxu0 0
    %2618 = vmatpush1.bf16.msra.mxu0 0
    %2619 = vmatprep.subr.bf16.mxu0 0
    %2620 = vmatpush1.bf16.msra.mxu0 0
    %2621 = vmatprep.subr.bf16.mxu0 0
    %2622 = vmatpush1.bf16.msra.mxu0 0
    %2623 = vmatprep.subr.bf16.mxu0 0
    %2624 = vmatpush1.bf16.msra.mxu0 0
    %2625 = vmatprep.subr.bf16.mxu0 0
    %2626 = vmatpush1.bf16.msra.mxu0 0
    %2627 = vmatprep.subr.bf16.mxu0 0
    %2628 = vmatpush1.bf16.msra.mxu0 0
    %2629 = vmatprep.subr.bf16.mxu0 0
    %2630 = vmatpush1.bf16.msra.mxu0 0
    %2631 = vmatprep.mubr.bf16.mxu0 0
    %2632 = vmatmul.mubr.bf16.gmra.mrb[0].mxu0 %v2384
    %v2633 = vpop.f32.mrb[0].mxu0
    %v2634 = vadd.f32 %v2422, %v2633
    %v2635 = vpop.f32.mrb[0].mxu0
    %v2636 = vadd.f32 %v2426, %v2635
    %v2637 = vpop.f32.mrb[0].mxu0
    %v2638 = vadd.f32 %v2422, %v2637
    %v2639 = vpop.f32.mrb[0].mxu0
    %v2640 = vadd.f32 %v2426, %v2639
    %2641 = vdwg.mxu0
    %2642 = vmatprep.subr.bf16.mxu0 %v2538
    %2643 = vmatpush1.bf16.msra.mxu0 %v2537
    %2644 = vmatprep.subr.bf16.mxu0 %v2542
    %2645 = vmatpush1.bf16.msra.mxu0 %v2541
    %2646 = vmatprep.subr.bf16.mxu0 %v2546
    %2647 = vmatpush1.bf16.msra.mxu0 %v2545
    %2648 = vmatprep.subr.bf16.mxu0 %v2550
    %2649 = vmatpush1.bf16.msra.mxu0 %v2549
    %2650 = vmatprep.subr.bf16.mxu0 %v2554
    %2651 = vmatpush1.bf16.msra.mxu0 %v2553
    %2652 = vmatprep.subr.bf16.mxu0 %v2558
    %2653 = vmatpush1.bf16.msra.mxu0 %v2557
    %2654 = vmatprep.subr.bf16.mxu0 %v2562
    %2655 = vmatpush1.bf16.msra.mxu0 %v2561
    %2656 = vmatprep.subr.bf16.mxu0 %v2566
    %2657 = vmatpush1.bf16.msra.mxu0 %v2565
    %2658 = vmatprep.subr.bf16.mxu0 0
    %2659 = vmatpush1.bf16.msra.mxu0 0
    %2660 = vmatprep.subr.bf16.mxu0 0
    %2661 = vmatpush1.bf16.msra.mxu0 0
    %2662 = vmatprep.subr.bf16.mxu0 0
    %2663 = vmatpush1.bf16.msra.mxu0 0
    %2664 = vmatprep.subr.bf16.mxu0 0
    %2665 = vmatpush1.bf16.msra.mxu0 0
    %2666 = vmatprep.subr.bf16.mxu0 0
    %2667 = vmatpush1.bf16.msra.mxu0 0
    %2668 = vmatprep.subr.bf16.mxu0 0
    %2669 = vmatpush1.bf16.msra.mxu0 0
    %2670 = vmatprep.subr.bf16.mxu0 0
    %2671 = vmatpush1.bf16.msra.mxu0 0
    %2672 = vmatprep.subr.bf16.mxu0 0
    %2673 = vmatpush1.bf16.msra.mxu0 0
    %2674 = vmatprep.mubr.bf16.mxu0 0
    %2675 = vmatmul.mubr.bf16.gmra.mrb[0].mxu0 %v2384
    %v2676 = vpop.f32.mrb[0].mxu0
    %v2677 = vadd.f32 %v2430, %v2676
    %v2678 = vpop.f32.mrb[0].mxu0
    %v2679 = vadd.f32 %v2434, %v2678
    %v2680 = vpop.f32.mrb[0].mxu0
    %v2681 = vadd.f32 %v2430, %v2680
    %v2682 = vpop.f32.mrb[0].mxu0
    %v2683 = vadd.f32 %v2434, %v2682
    %2684 = vdwg.mxu0
    %v2685 = vmax.f32 %v2634, 0.0
    %v2686 = vmax.f32 %v2636, 0.0
    %v2687 = vmax.f32 %v2677, 0.0
    %v2688 = vmax.f32 %v2679, 0.0
    %v2689 = vmax.f32 %v2638, 0.0
    %v2690 = vmax.f32 %v2640, 0.0
    %v2691 = vmax.f32 %v2681, 0.0
    %v2692 = vmax.f32 %v2683, 0.0
    %v2693 = vpack.c.bf16 %v2689, %v2685
    %v2694 = vpack.c.bf16 %v2690, %v2686
    %v2695 = vpack.c.bf16 %v2691, %v2687
    %v2696 = vpack.c.bf16 %v2692, %v2688
    %v2697 = vld [vmem:[#allocation11] sm:$0xff]
    %v2698 = vld [vmem:[#allocation11 + $0x8] sm:$0xff]
    %v2699 = vld [vmem:[#allocation11 + $0x10] sm:$0xff]
    %v2700 = vld [vmem:[#allocation11 + $0x18] sm:$0xf]
    %v2701 = vld [vmem:[#allocation11 + $0x1c] sm:$0xff]
    %v2702 = vld [vmem:[#allocation11 + $0x24] sm:$0xff]
    %v2703 = vld [vmem:[#allocation11 + $0x2c] sm:$0xff]
    %v2704 = vld [vmem:[#allocation11 + $0x34] sm:$0xf]
    %v2705 = vld [vmem:[#allocation11 + $0x38] sm:$0xff]
    %v2706 = vld [vmem:[#allocation11 + $0x40] sm:$0xff]
    %v2707 = vld [vmem:[#allocation11 + $0x48] sm:$0xff]
    %v2708 = vld [vmem:[#allocation11 + $0x50] sm:$0xf]
    %v2709 = vld [vmem:[#allocation11 + $0x54] sm:$0xff]
    %v2710 = vld [vmem:[#allocation11 + $0x5c] sm:$0xff]
    %v2711 = vld [vmem:[#allocation11 + $0x64] sm:$0xff]
    %v2712 = vld [vmem:[#allocation11 + $0x6c] sm:$0xf]
    %v2713 = vld [vmem:[#allocation11 + $0x70] sm:$0xff]
    %v2714 = vld [vmem:[#allocation11 + $0x78] sm:$0xff]
    %v2715 = vld [vmem:[#allocation11 + $0x80] sm:$0xff]
    %v2716 = vld [vmem:[#allocation11 + $0x88] sm:$0xf]
    %v2717 = vld [vmem:[#allocation11 + $0x8c] sm:$0xff]
    %v2718 = vld [vmem:[#allocation11 + $0x94] sm:$0xff]
    %v2719 = vld [vmem:[#allocation11 + $0x9c] sm:$0xff]
    %v2720 = vld [vmem:[#allocation11 + $0xa4] sm:$0xf]
    %v2721 = vld [vmem:[#allocation11 + $0xa8] sm:$0xff]
    %v2722 = vld [vmem:[#allocation11 + $0xb0] sm:$0xff]
    %v2723 = vld [vmem:[#allocation11 + $0xb8] sm:$0xff]
    %v2724 = vld [vmem:[#allocation11 + $0xc0] sm:$0xf]
    %v2725 = vld [vmem:[#allocation11 + $0xc4] sm:$0xff]
    %v2726 = vld [vmem:[#allocation11 + $0xcc] sm:$0xff]
    %v2727 = vld [vmem:[#allocation11 + $0xd4] sm:$0xff]
    %v2728 = vld [vmem:[#allocation11 + $0xdc] sm:$0xf]
    %v2729 = vld [vmem:[#allocation11 + $0xe0] sm:$0xff]
    %v2730 = vld [vmem:[#allocation11 + $0xe8] sm:$0xff]
    %v2731 = vld [vmem:[#allocation11 + $0xf0] sm:$0xff]
    %v2732 = vld [vmem:[#allocation11 + $0xf8] sm:$0xf]
    %v2733 = vld [vmem:[#allocation11 + $0xfc] sm:$0xff]
    %v2734 = vld [vmem:[#allocation11 + $0x104] sm:$0xff]
    %v2735 = vld [vmem:[#allocation11 + $0x10c] sm:$0xff]
    %v2736 = vld [vmem:[#allocation11 + $0x114] sm:$0xf]
    %v2737 = vld [vmem:[#allocation11 + $0x118] sm:$0xff]
    %v2738 = vld [vmem:[#allocation11 + $0x120] sm:$0xff]
    %v2739 = vld [vmem:[#allocation11 + $0x128] sm:$0xff]
    %v2740 = vld [vmem:[#allocation11 + $0x130] sm:$0xf]
    %v2741 = vld [vmem:[#allocation11 + $0x134] sm:$0xff]
    %v2742 = vld [vmem:[#allocation11 + $0x13c] sm:$0xff]
    %v2743 = vld [vmem:[#allocation11 + $0x144] sm:$0xff]
    %v2744 = vld [vmem:[#allocation11 + $0x14c] sm:$0xf]
    %v2745 = vld [vmem:[#allocation11 + $0x150] sm:$0xff]
    %v2746 = vld [vmem:[#allocation11 + $0x158] sm:$0xff]
    %v2747 = vld [vmem:[#allocation11 + $0x160] sm:$0xff]
    %v2748 = vld [vmem:[#allocation11 + $0x168] sm:$0xf]
    %v2749 = vld [vmem:[#allocation11 + $0x16c] sm:$0xff]
    %v2750 = vld [vmem:[#allocation11 + $0x174] sm:$0xff]
    %v2751 = vld [vmem:[#allocation11 + $0x17c] sm:$0xff]
    %v2752 = vld [vmem:[#allocation11 + $0x184] sm:$0xf]
    %v2753 = vld [vmem:[#allocation11 + $0x188] sm:$0xff]
    %v2754 = vld [vmem:[#allocation11 + $0x190] sm:$0xff]
    %v2755 = vld [vmem:[#allocation11 + $0x198] sm:$0xff]
    %v2756 = vld [vmem:[#allocation11 + $0x1a0] sm:$0xf]
    %v2757 = vld [vmem:[#allocation11 + $0x1a4] sm:$0xff]
    %v2758 = vld [vmem:[#allocation11 + $0x1ac] sm:$0xff]
    %v2759 = vld [vmem:[#allocation11 + $0x1b4] sm:$0xff]
    %v2760 = vld [vmem:[#allocation11 + $0x1bc] sm:$0xf]
    %v2761 = vld [vmem:[#allocation11 + $0x1c0] sm:$0xff]
    %v2762 = vld [vmem:[#allocation11 + $0x1c8] sm:$0xff]
    %v2763 = vld [vmem:[#allocation11 + $0x1d0] sm:$0xff]
    %v2764 = vld [vmem:[#allocation11 + $0x1d8] sm:$0xf]
    %v2765 = vld [vmem:[#allocation11 + $0x1dc] sm:$0xff]
    %v2766 = vld [vmem:[#allocation11 + $0x1e4] sm:$0xff]
    %v2767 = vld [vmem:[#allocation11 + $0x1ec] sm:$0xff]
    %v2768 = vld [vmem:[#allocation11 + $0x1f4] sm:$0xf]
    %v2769 = vld [vmem:[#allocation11 + $0x1f8] sm:$0xff]
    %v2770 = vld [vmem:[#allocation11 + $0x200] sm:$0xff]
    %v2771 = vld [vmem:[#allocation11 + $0x208] sm:$0xff]
    %v2772 = vld [vmem:[#allocation11 + $0x210] sm:$0xf]
    %v2773 = vld [vmem:[#allocation11 + $0x214] sm:$0xff]
    %v2774 = vld [vmem:[#allocation11 + $0x21c] sm:$0xff]
    %v2775 = vld [vmem:[#allocation11 + $0x224] sm:$0xff]
    %v2776 = vld [vmem:[#allocation11 + $0x22c] sm:$0xf]
    %v2777 = vld [vmem:[#allocation11 + $0x230] sm:$0xff]
    %v2778 = vld [vmem:[#allocation11 + $0x238] sm:$0xff]
    %v2779 = vld [vmem:[#allocation11 + $0x240] sm:$0xff]
    %v2780 = vld [vmem:[#allocation11 + $0x248] sm:$0xf]
    %v2781 = vld [vmem:[#allocation11 + $0x24c] sm:$0xff]
    %v2782 = vld [vmem:[#allocation11 + $0x254] sm:$0xff]
    %v2783 = vld [vmem:[#allocation11 + $0x25c] sm:$0xff]
    %v2784 = vld [vmem:[#allocation11 + $0x264] sm:$0xf]
    %v2785 = vld [vmem:[#allocation11 + $0x268] sm:$0xff]
    %v2786 = vld [vmem:[#allocation11 + $0x270] sm:$0xff]
    %v2787 = vld [vmem:[#allocation11 + $0x278] sm:$0xff]
    %v2788 = vld [vmem:[#allocation11 + $0x280] sm:$0xf]
    %v2789 = vld [vmem:[#allocation11 + $0x284] sm:$0xff]
    %v2790 = vld [vmem:[#allocation11 + $0x28c] sm:$0xff]
    %v2791 = vld [vmem:[#allocation11 + $0x294] sm:$0xff]
    %v2792 = vld [vmem:[#allocation11 + $0x29c] sm:$0xf]
    %v2793 = vld [vmem:[#allocation11 + $0x2a0] sm:$0xff]
    %v2794 = vld [vmem:[#allocation11 + $0x2a8] sm:$0xff]
    %v2795 = vld [vmem:[#allocation11 + $0x2b0] sm:$0xff]
    %v2796 = vld [vmem:[#allocation11 + $0x2b8] sm:$0xf]
    %v2797 = vld [vmem:[#allocation11 + $0x2bc] sm:$0xff]
    %v2798 = vld [vmem:[#allocation11 + $0x2c4] sm:$0xff]
    %v2799 = vld [vmem:[#allocation11 + $0x2cc] sm:$0xff]
    %v2800 = vld [vmem:[#allocation11 + $0x2d4] sm:$0xf]
    %v2801 = vld [vmem:[#allocation11 + $0x2d8] sm:$0xff]
    %v2802 = vld [vmem:[#allocation11 + $0x2e0] sm:$0xff]
    %v2803 = vld [vmem:[#allocation11 + $0x2e8] sm:$0xff]
    %v2804 = vld [vmem:[#allocation11 + $0x2f0] sm:$0xf]
    %v2805 = vld [vmem:[#allocation11 + $0x2f4] sm:$0xff]
    %v2806 = vld [vmem:[#allocation11 + $0x2fc] sm:$0xff]
    %v2807 = vld [vmem:[#allocation11 + $0x304] sm:$0xff]
    %v2808 = vld [vmem:[#allocation11 + $0x30c] sm:$0xf]
    %v2809 = vld [vmem:[#allocation11 + $0x310] sm:$0xff]
    %v2810 = vld [vmem:[#allocation11 + $0x318] sm:$0xff]
    %v2811 = vld [vmem:[#allocation11 + $0x320] sm:$0xff]
    %v2812 = vld [vmem:[#allocation11 + $0x328] sm:$0xf]
    %v2813 = vld [vmem:[#allocation11 + $0x32c] sm:$0xff]
    %v2814 = vld [vmem:[#allocation11 + $0x334] sm:$0xff]
    %v2815 = vld [vmem:[#allocation11 + $0x33c] sm:$0xff]
    %v2816 = vld [vmem:[#allocation11 + $0x344] sm:$0xf]
    %v2817 = vld [vmem:[#allocation11 + $0x348] sm:$0xff]
    %v2818 = vld [vmem:[#allocation11 + $0x350] sm:$0xff]
    %v2819 = vld [vmem:[#allocation11 + $0x358] sm:$0xff]
    %v2820 = vld [vmem:[#allocation11 + $0x360] sm:$0xf]
    %v2821 = vld [vmem:[#allocation11 + $0x364] sm:$0xff]
    %v2822 = vld [vmem:[#allocation11 + $0x36c] sm:$0xff]
    %v2823 = vld [vmem:[#allocation11 + $0x374] sm:$0xff]
    %v2824 = vld [vmem:[#allocation11 + $0x37c] sm:$0xf]
    %v2825 = vld [vmem:[#allocation11 + $0x380] sm:$0xff]
    %v2826 = vld [vmem:[#allocation11 + $0x388] sm:$0xff]
    %v2827 = vld [vmem:[#allocation11 + $0x390] sm:$0xff]
    %v2828 = vld [vmem:[#allocation11 + $0x398] sm:$0xf]
    %v2829 = vld [vmem:[#allocation11 + $0x39c] sm:$0xff]
    %v2830 = vld [vmem:[#allocation11 + $0x3a4] sm:$0xff]
    %v2831 = vld [vmem:[#allocation11 + $0x3ac] sm:$0xff]
    %v2832 = vld [vmem:[#allocation11 + $0x3b4] sm:$0xf]
    %v2833 = vld [vmem:[#allocation11 + $0x3b8] sm:$0xff]
    %v2834 = vld [vmem:[#allocation11 + $0x3c0] sm:$0xff]
    %v2835 = vld [vmem:[#allocation11 + $0x3c8] sm:$0xff]
    %v2836 = vld [vmem:[#allocation11 + $0x3d0] sm:$0xf]
    %v2837 = vld [vmem:[#allocation11 + $0x3d4] sm:$0xff]
    %v2838 = vld [vmem:[#allocation11 + $0x3dc] sm:$0xff]
    %v2839 = vld [vmem:[#allocation11 + $0x3e4] sm:$0xff]
    %v2840 = vld [vmem:[#allocation11 + $0x3ec] sm:$0xf]
    %v2841 = vld [vmem:[#allocation11 + $0x3f0] sm:$0xff]
    %v2842 = vld [vmem:[#allocation11 + $0x3f8] sm:$0xff]
    %v2843 = vld [vmem:[#allocation11 + $0x400] sm:$0xff]
    %v2844 = vld [vmem:[#allocation11 + $0x408] sm:$0xf]
    %v2845 = vld [vmem:[#allocation11 + $0x40c] sm:$0xff]
    %v2846 = vld [vmem:[#allocation11 + $0x414] sm:$0xff]
    %v2847 = vld [vmem:[#allocation11 + $0x41c] sm:$0xff]
    %v2848 = vld [vmem:[#allocation11 + $0x424] sm:$0xf]
    %v2849 = vld [vmem:[#allocation11 + $0x428] sm:$0xff]
    %v2850 = vld [vmem:[#allocation11 + $0x430] sm:$0xff]
    %v2851 = vld [vmem:[#allocation11 + $0x438] sm:$0xff]
    %v2852 = vld [vmem:[#allocation11 + $0x440] sm:$0xf]
    %v2853 = vld [vmem:[#allocation11 + $0x444] sm:$0xff]
    %v2854 = vld [vmem:[#allocation11 + $0x44c] sm:$0xff]
    %v2855 = vld [vmem:[#allocation11 + $0x454] sm:$0xff]
    %v2856 = vld [vmem:[#allocation11 + $0x45c] sm:$0xf]
    %v2857 = vld [vmem:[#allocation11 + $0x460] sm:$0xff]
    %v2858 = vld [vmem:[#allocation11 + $0x468] sm:$0xff]
    %v2859 = vld [vmem:[#allocation11 + $0x470] sm:$0xff]
    %v2860 = vld [vmem:[#allocation11 + $0x478] sm:$0xf]
    %v2861 = vld [vmem:[#allocation11 + $0x47c] sm:$0xff]
    %v2862 = vld [vmem:[#allocation11 + $0x484] sm:$0xff]
    %v2863 = vld [vmem:[#allocation11 + $0x48c] sm:$0xff]
    %v2864 = vld [vmem:[#allocation11 + $0x494] sm:$0xf]
    %v2865 = vld [vmem:[#allocation11 + $0x498] sm:$0xff]
    %v2866 = vld [vmem:[#allocation11 + $0x4a0] sm:$0xff]
    %v2867 = vld [vmem:[#allocation11 + $0x4a8] sm:$0xff]
    %v2868 = vld [vmem:[#allocation11 + $0x4b0] sm:$0xf]
    %v2869 = vld [vmem:[#allocation11 + $0x4b4] sm:$0xff]
    %v2870 = vld [vmem:[#allocation11 + $0x4bc] sm:$0xff]
    %v2871 = vld [vmem:[#allocation11 + $0x4c4] sm:$0xff]
    %v2872 = vld [vmem:[#allocation11 + $0x4cc] sm:$0xf]
    %v2873 = vld [vmem:[#allocation11 + $0x4d0] sm:$0xff]
    %v2874 = vld [vmem:[#allocation11 + $0x4d8] sm:$0xff]
    %v2875 = vld [vmem:[#allocation11 + $0x4e0] sm:$0xff]
    %v2876 = vld [vmem:[#allocation11 + $0x4e8] sm:$0xf]
    %v2877 = vld [vmem:[#allocation11 + $0x4ec] sm:$0xff]
    %v2878 = vld [vmem:[#allocation11 + $0x4f4] sm:$0xff]
    %v2879 = vld [vmem:[#allocation11 + $0x4fc] sm:$0xff]
    %v2880 = vld [vmem:[#allocation11 + $0x504] sm:$0xf]
    %v2881 = vld [vmem:[#allocation11 + $0x508] sm:$0xff]
    %v2882 = vld [vmem:[#allocation11 + $0x510] sm:$0xff]
    %v2883 = vld [vmem:[#allocation11 + $0x518] sm:$0xff]
    %v2884 = vld [vmem:[#allocation11 + $0x520] sm:$0xf]
    %v2885 = vld [vmem:[#allocation11 + $0x524] sm:$0xff]
    %v2886 = vld [vmem:[#allocation11 + $0x52c] sm:$0xff]
    %v2887 = vld [vmem:[#allocation11 + $0x534] sm:$0xff]
    %v2888 = vld [vmem:[#allocation11 + $0x53c] sm:$0xf]
    %v2889 = vld [vmem:[#allocation11 + $0x540] sm:$0xff]
    %v2890 = vld [vmem:[#allocation11 + $0x548] sm:$0xff]
    %v2891 = vld [vmem:[#allocation11 + $0x550] sm:$0xff]
    %v2892 = vld [vmem:[#allocation11 + $0x558] sm:$0xf]
    %v2893 = vld [vmem:[#allocation11 + $0x55c] sm:$0xff]
    %v2894 = vld [vmem:[#allocation11 + $0x564] sm:$0xff]
    %v2895 = vld [vmem:[#allocation11 + $0x56c] sm:$0xff]
    %v2896 = vld [vmem:[#allocation11 + $0x574] sm:$0xf]
    %v2897 = vld [vmem:[#allocation11 + $0x578] sm:$0xff]
    %v2898 = vld [vmem:[#allocation11 + $0x580] sm:$0xff]
    %v2899 = vld [vmem:[#allocation11 + $0x588] sm:$0xff]
    %v2900 = vld [vmem:[#allocation11 + $0x590] sm:$0xf]
    %v2901 = vld [vmem:[#allocation11 + $0x594] sm:$0xff]
    %v2902 = vld [vmem:[#allocation11 + $0x59c] sm:$0xff]
    %v2903 = vld [vmem:[#allocation11 + $0x5a4] sm:$0xff]
    %v2904 = vld [vmem:[#allocation11 + $0x5ac] sm:$0xf]
    %v2905 = vld [vmem:[#allocation11 + $0x5b0] sm:$0xff]
    %v2906 = vld [vmem:[#allocation11 + $0x5b8] sm:$0xff]
    %v2907 = vld [vmem:[#allocation11 + $0x5c0] sm:$0xff]
    %v2908 = vld [vmem:[#allocation11 + $0x5c8] sm:$0xf]
    %v2909 = vld [vmem:[#allocation11 + $0x5cc] sm:$0xff]
    %v2910 = vld [vmem:[#allocation11 + $0x5d4] sm:$0xff]
    %v2911 = vld [vmem:[#allocation11 + $0x5dc] sm:$0xff]
    %v2912 = vld [vmem:[#allocation11 + $0x5e4] sm:$0xf]
    %v2913 = vld [vmem:[#allocation11 + $0x5e8] sm:$0xff]
    %v2914 = vld [vmem:[#allocation11 + $0x5f0] sm:$0xff]
    %v2915 = vld [vmem:[#allocation11 + $0x5f8] sm:$0xff]
    %v2916 = vld [vmem:[#allocation11 + $0x600] sm:$0xf]
    %v2917 = vld [vmem:[#allocation11 + $0x604] sm:$0xff]
    %v2918 = vld [vmem:[#allocation11 + $0x60c] sm:$0xff]
    %v2919 = vld [vmem:[#allocation11 + $0x614] sm:$0xff]
    %v2920 = vld [vmem:[#allocation11 + $0x61c] sm:$0xf]
    %v2921 = vld [vmem:[#allocation11 + $0x620] sm:$0xff]
    %v2922 = vld [vmem:[#allocation11 + $0x628] sm:$0xff]
    %v2923 = vld [vmem:[#allocation11 + $0x630] sm:$0xff]
    %v2924 = vld [vmem:[#allocation11 + $0x638] sm:$0xf]
    %v2925 = vld [vmem:[#allocation11 + $0x63c] sm:$0xff]
    %v2926 = vld [vmem:[#allocation11 + $0x644] sm:$0xff]
    %v2927 = vld [vmem:[#allocation11 + $0x64c] sm:$0xff]
    %v2928 = vld [vmem:[#allocation11 + $0x654] sm:$0xf]
    %v2929 = vld [vmem:[#allocation11 + $0x658] sm:$0xff]
    %v2930 = vld [vmem:[#allocation11 + $0x660] sm:$0xff]
    %v2931 = vld [vmem:[#allocation11 + $0x668] sm:$0xff]
    %v2932 = vld [vmem:[#allocation11 + $0x670] sm:$0xf]
    %v2933 = vld [vmem:[#allocation11 + $0x674] sm:$0xff]
    %v2934 = vld [vmem:[#allocation11 + $0x67c] sm:$0xff]
    %v2935 = vld [vmem:[#allocation11 + $0x684] sm:$0xff]
    %v2936 = vld [vmem:[#allocation11 + $0x68c] sm:$0xf]
    %v2937 = vld [vmem:[#allocation11 + $0x690] sm:$0xff]
    %v2938 = vld [vmem:[#allocation11 + $0x698] sm:$0xff]
    %v2939 = vld [vmem:[#allocation11 + $0x6a0] sm:$0xff]
    %v2940 = vld [vmem:[#allocation11 + $0x6a8] sm:$0xf]
    %v2941 = vld [vmem:[#allocation11 + $0x6ac] sm:$0xff]
    %v2942 = vld [vmem:[#allocation11 + $0x6b4] sm:$0xff]
    %v2943 = vld [vmem:[#allocation11 + $0x6bc] sm:$0xff]
    %v2944 = vld [vmem:[#allocation11 + $0x6c4] sm:$0xf]
    %v2945 = vld [vmem:[#allocation11 + $0x6c8] sm:$0xff]
    %v2946 = vld [vmem:[#allocation11 + $0x6d0] sm:$0xff]
    %v2947 = vld [vmem:[#allocation11 + $0x6d8] sm:$0xff]
    %v2948 = vld [vmem:[#allocation11 + $0x6e0] sm:$0xf]
    %v2949 = vld [vmem:[#allocation11 + $0x6e4] sm:$0xff]
    %v2950 = vld [vmem:[#allocation11 + $0x6ec] sm:$0xff]
    %v2951 = vld [vmem:[#allocation11 + $0x6f4] sm:$0xff]
    %v2952 = vld [vmem:[#allocation11 + $0x6fc] sm:$0xf]
    %v2953 = vld [vmem:[%s9] sm:$0xff]
    %v2955 = vlaneseq
    %v2956 = vshrl.u32 %v2955, 7
    %v2957 = vsub.s32 0, %v2956
    %v2958 = vrot.slane %v2953, %v2957
    %v2959 = vlaneseq
    %v2960 = vshrl.u32 %v2959, 7
    %v2961 = vsub.s32 1, %v2960
    %v2962 = vrot.slane %v2953, %v2961
    %v2963 = vlaneseq
    %v2964 = vshrl.u32 %v2963, 7
    %v2965 = vsub.s32 2, %v2964
    %v2966 = vrot.slane %v2953, %v2965
    %v2967 = vlaneseq
    %v2968 = vshrl.u32 %v2967, 7
    %v2969 = vsub.s32 3, %v2968
    %v2970 = vrot.slane %v2953, %v2969
    %v2971 = vlaneseq
    %v2972 = vshrl.u32 %v2971, 7
    %v2973 = vsub.s32 4, %v2972
    %v2974 = vrot.slane %v2953, %v2973
    %v2975 = vlaneseq
    %v2976 = vshrl.u32 %v2975, 7
    %v2977 = vsub.s32 5, %v2976
    %v2978 = vrot.slane %v2953, %v2977
    %v2979 = vlaneseq
    %v2980 = vshrl.u32 %v2979, 7
    %v2981 = vsub.s32 6, %v2980
    %v2982 = vrot.slane %v2953, %v2981
    %v3246 = vunpack.c.l.b16 %v2697
    %v3247 = vunpack.c.h.b16 %v2697
    %v3248 = vunpack.c.l.b16 %v2698
    %v3249 = vunpack.c.h.b16 %v2698
    %v3250 = vunpack.c.l.b16 %v2699
    %v3251 = vunpack.c.h.b16 %v2699
    %v3252 = vunpack.c.l.b16 %v2700
    %v3253 = vunpack.c.l.b16 %v2701
    %v3254 = vunpack.c.h.b16 %v2701
    %v3255 = vunpack.c.l.b16 %v2702
    %v3256 = vunpack.c.h.b16 %v2702
    %v3257 = vunpack.c.l.b16 %v2703
    %v3258 = vunpack.c.h.b16 %v2703
    %v3259 = vunpack.c.l.b16 %v2704
    %v3260 = vunpack.c.l.b16 %v2705
    %v3261 = vunpack.c.h.b16 %v2705
    %v3262 = vunpack.c.l.b16 %v2706
    %v3263 = vunpack.c.h.b16 %v2706
    %v3264 = vunpack.c.l.b16 %v2707
    %v3265 = vunpack.c.h.b16 %v2707
    %v3266 = vunpack.c.l.b16 %v2708
    %v3267 = vunpack.c.l.b16 %v2709
    %v3268 = vunpack.c.h.b16 %v2709
    %v3269 = vunpack.c.l.b16 %v2710
    %v3270 = vunpack.c.h.b16 %v2710
    %v3271 = vunpack.c.l.b16 %v2711
    %v3272 = vunpack.c.h.b16 %v2711
    %v3273 = vunpack.c.l.b16 %v2712
    %v3274 = vunpack.c.l.b16 %v2713
    %v3275 = vunpack.c.h.b16 %v2713
    %v3276 = vunpack.c.l.b16 %v2714
    %v3277 = vunpack.c.h.b16 %v2714
    %v3278 = vunpack.c.l.b16 %v2715
    %v3279 = vunpack.c.h.b16 %v2715
    %v3280 = vunpack.c.l.b16 %v2716
    %v3281 = vunpack.c.l.b16 %v2717
    %v3282 = vunpack.c.h.b16 %v2717
    %v3283 = vunpack.c.l.b16 %v2718
    %v3284 = vunpack.c.h.b16 %v2718
    %v3285 = vunpack.c.l.b16 %v2719
    %v3286 = vunpack.c.h.b16 %v2719
    %v3287 = vunpack.c.l.b16 %v2720
    %v3288 = vunpack.c.l.b16 %v2721
    %v3289 = vunpack.c.h.b16 %v2721
    %v3290 = vunpack.c.l.b16 %v2722
    %v3291 = vunpack.c.h.b16 %v2722
    %v3292 = vunpack.c.l.b16 %v2723
    %v3293 = vunpack.c.h.b16 %v2723
    %v3294 = vunpack.c.l.b16 %v2724
    %v3295 = vunpack.c.l.b16 %v2725
    %v3296 = vunpack.c.h.b16 %v2725
    %v3297 = vunpack.c.l.b16 %v2726
    %v3298 = vunpack.c.h.b16 %v2726
    %v3299 = vunpack.c.l.b16 %v2727
    %v3300 = vunpack.c.h.b16 %v2727
    %v3301 = vunpack.c.l.b16 %v2728
    %v3302 = vunpack.c.l.b16 %v2729
    %v3303 = vunpack.c.h.b16 %v2729
    %v3304 = vunpack.c.l.b16 %v2730
    %v3305 = vunpack.c.h.b16 %v2730
    %v3306 = vunpack.c.l.b16 %v2731
    %v3307 = vunpack.c.h.b16 %v2731
    %v3308 = vunpack.c.l.b16 %v2732
    %v3309 = vunpack.c.l.b16 %v2733
    %v3310 = vunpack.c.h.b16 %v2733
    %v3311 = vunpack.c.l.b16 %v2734
    %v3312 = vunpack.c.h.b16 %v2734
    %v3313 = vunpack.c.l.b16 %v2735
    %v3314 = vunpack.c.h.b16 %v2735
    %v3315 = vunpack.c.l.b16 %v2736
    %v3316 = vunpack.c.l.b16 %v2737
    %v3317 = vunpack.c.h.b16 %v2737
    %v3318 = vunpack.c.l.b16 %v2738
    %v3319 = vunpack.c.h.b16 %v2738
    %v3320 = vunpack.c.l.b16 %v2739
    %v3321 = vunpack.c.h.b16 %v2739
    %v3322 = vunpack.c.l.b16 %v2740
    %v3323 = vunpack.c.l.b16 %v2741
    %v3324 = vunpack.c.h.b16 %v2741
    %v3325 = vunpack.c.l.b16 %v2742
    %v3326 = vunpack.c.h.b16 %v2742
    %v3327 = vunpack.c.l.b16 %v2743
    %v3328 = vunpack.c.h.b16 %v2743
    %v3329 = vunpack.c.l.b16 %v2744
    %v3330 = vunpack.c.l.b16 %v2745
    %v3331 = vunpack.c.h.b16 %v2745
    %v3332 = vunpack.c.l.b16 %v2746
    %v3333 = vunpack.c.h.b16 %v2746
    %v3334 = vunpack.c.l.b16 %v2747
    %v3335 = vunpack.c.h.b16 %v2747
    %v3336 = vunpack.c.l.b16 %v2748
    %v3337 = vunpack.c.l.b16 %v2749
    %v3338 = vunpack.c.h.b16 %v2749
    %v3339 = vunpack.c.l.b16 %v2750
    %v3340 = vunpack.c.h.b16 %v2750
    %v3341 = vunpack.c.l.b16 %v2751
    %v3342 = vunpack.c.h.b16 %v2751
    %v3343 = vunpack.c.l.b16 %v2752
    %v3344 = vunpack.c.l.b16 %v2753
    %v3345 = vunpack.c.h.b16 %v2753
    %v3346 = vunpack.c.l.b16 %v2754
    %v3347 = vunpack.c.h.b16 %v2754
    %v3348 = vunpack.c.l.b16 %v2755
    %v3349 = vunpack.c.h.b16 %v2755
    %v3350 = vunpack.c.l.b16 %v2756
    %v3351 = vunpack.c.l.b16 %v2757
    %v3352 = vunpack.c.h.b16 %v2757
    %v3353 = vunpack.c.l.b16 %v2758
    %v3354 = vunpack.c.h.b16 %v2758
    %v3355 = vunpack.c.l.b16 %v2759
    %v3356 = vunpack.c.h.b16 %v2759
    %v3357 = vunpack.c.l.b16 %v2760
    %v3358 = vunpack.c.l.b16 %v2761
    %v3359 = vunpack.c.h.b16 %v2761
    %v3360 = vunpack.c.l.b16 %v2762
    %v3361 = vunpack.c.h.b16 %v2762
    %v3362 = vunpack.c.l.b16 %v2763
    %v3363 = vunpack.c.h.b16 %v2763
    %v3364 = vunpack.c.l.b16 %v2764
    %v3365 = vunpack.c.l.b16 %v2765
    %v3366 = vunpack.c.h.b16 %v2765
    %v3367 = vunpack.c.l.b16 %v2766
    %v3368 = vunpack.c.h.b16 %v2766
    %v3369 = vunpack.c.l.b16 %v2767
    %v3370 = vunpack.c.h.b16 %v2767
    %v3371 = vunpack.c.l.b16 %v2768
    %v3372 = vunpack.c.l.b16 %v2769
    %v3373 = vunpack.c.h.b16 %v2769
    %v3374 = vunpack.c.l.b16 %v2770
    %v3375 = vunpack.c.h.b16 %v2770
    %v3376 = vunpack.c.l.b16 %v2771
    %v3377 = vunpack.c.h.b16 %v2771
    %v3378 = vunpack.c.l.b16 %v2772
    %v3379 = vunpack.c.l.b16 %v2773
    %v3380 = vunpack.c.h.b16 %v2773
    %v3381 = vunpack.c.l.b16 %v2774
    %v3382 = vunpack.c.h.b16 %v2774
    %v3383 = vunpack.c.l.b16 %v2775
    %v3384 = vunpack.c.h.b16 %v2775
    %v3385 = vunpack.c.l.b16 %v2776
    %v3386 = vunpack.c.l.b16 %v2777
    %v3387 = vunpack.c.h.b16 %v2777
    %v3388 = vunpack.c.l.b16 %v2778
    %v3389 = vunpack.c.h.b16 %v2778
    %v3390 = vunpack.c.l.b16 %v2779
    %v3391 = vunpack.c.h.b16 %v2779
    %v3392 = vunpack.c.l.b16 %v2780
    %v3393 = vunpack.c.l.b16 %v2781
    %v3394 = vunpack.c.h.b16 %v2781
    %v3395 = vunpack.c.l.b16 %v2782
    %v3396 = vunpack.c.h.b16 %v2782
    %v3397 = vunpack.c.l.b16 %v2783
    %v3398 = vunpack.c.h.b16 %v2783
    %v3399 = vunpack.c.l.b16 %v2784
    %v3400 = vunpack.c.l.b16 %v2785
    %v3401 = vunpack.c.h.b16 %v2785
    %v3402 = vunpack.c.l.b16 %v2786
    %v3403 = vunpack.c.h.b16 %v2786
    %v3404 = vunpack.c.l.b16 %v2787
    %v3405 = vunpack.c.h.b16 %v2787
    %v3406 = vunpack.c.l.b16 %v2788
    %v3407 = vunpack.c.l.b16 %v2789
    %v3408 = vunpack.c.h.b16 %v2789
    %v3409 = vunpack.c.l.b16 %v2790
    %v3410 = vunpack.c.h.b16 %v2790
    %v3411 = vunpack.c.l.b16 %v2791
    %v3412 = vunpack.c.h.b16 %v2791
    %v3413 = vunpack.c.l.b16 %v2792
    %v3414 = vunpack.c.l.b16 %v2793
    %v3415 = vunpack.c.h.b16 %v2793
    %v3416 = vunpack.c.l.b16 %v2794
    %v3417 = vunpack.c.h.b16 %v2794
    %v3418 = vunpack.c.l.b16 %v2795
    %v3419 = vunpack.c.h.b16 %v2795
    %v3420 = vunpack.c.l.b16 %v2796
    %v3421 = vunpack.c.l.b16 %v2797
    %v3422 = vunpack.c.h.b16 %v2797
    %v3423 = vunpack.c.l.b16 %v2798
    %v3424 = vunpack.c.h.b16 %v2798
    %v3425 = vunpack.c.l.b16 %v2799
    %v3426 = vunpack.c.h.b16 %v2799
    %v3427 = vunpack.c.l.b16 %v2800
    %v3428 = vunpack.c.l.b16 %v2801
    %v3429 = vunpack.c.h.b16 %v2801
    %v3430 = vunpack.c.l.b16 %v2802
    %v3431 = vunpack.c.h.b16 %v2802
    %v3432 = vunpack.c.l.b16 %v2803
    %v3433 = vunpack.c.h.b16 %v2803
    %v3434 = vunpack.c.l.b16 %v2804
    %v3435 = vunpack.c.l.b16 %v2805
    %v3436 = vunpack.c.h.b16 %v2805
    %v3437 = vunpack.c.l.b16 %v2806
    %v3438 = vunpack.c.h.b16 %v2806
    %v3439 = vunpack.c.l.b16 %v2807
    %v3440 = vunpack.c.h.b16 %v2807
    %v3441 = vunpack.c.l.b16 %v2808
    %v3442 = vunpack.c.l.b16 %v2809
    %v3443 = vunpack.c.h.b16 %v2809
    %v3444 = vunpack.c.l.b16 %v2810
    %v3445 = vunpack.c.h.b16 %v2810
    %v3446 = vunpack.c.l.b16 %v2811
    %v3447 = vunpack.c.h.b16 %v2811
    %v3448 = vunpack.c.l.b16 %v2812
    %v3449 = vunpack.c.l.b16 %v2813
    %v3450 = vunpack.c.h.b16 %v2813
    %v3451 = vunpack.c.l.b16 %v2814
    %v3452 = vunpack.c.h.b16 %v2814
    %v3453 = vunpack.c.l.b16 %v2815
    %v3454 = vunpack.c.h.b16 %v2815
    %v3455 = vunpack.c.l.b16 %v2816
    %v3456 = vunpack.c.l.b16 %v2817
    %v3457 = vunpack.c.h.b16 %v2817
    %v3458 = vunpack.c.l.b16 %v2818
    %v3459 = vunpack.c.h.b16 %v2818
    %v3460 = vunpack.c.l.b16 %v2819
    %v3461 = vunpack.c.h.b16 %v2819
    %v3462 = vunpack.c.l.b16 %v2820
    %v3463 = vunpack.c.l.b16 %v2821
    %v3464 = vunpack.c.h.b16 %v2821
    %v3465 = vunpack.c.l.b16 %v2822
    %v3466 = vunpack.c.h.b16 %v2822
    %v3467 = vunpack.c.l.b16 %v2823
    %v3468 = vunpack.c.h.b16 %v2823
    %v3469 = vunpack.c.l.b16 %v2824
    %v3470 = vunpack.c.l.b16 %v2825
    %v3471 = vunpack.c.h.b16 %v2825
    %v3472 = vunpack.c.l.b16 %v2826
    %v3473 = vunpack.c.h.b16 %v2826
    %v3474 = vunpack.c.l.b16 %v2827
    %v3475 = vunpack.c.h.b16 %v2827
    %v3476 = vunpack.c.l.b16 %v2828
    %v3477 = vunpack.c.l.b16 %v2829
    %v3478 = vunpack.c.h.b16 %v2829
    %v3479 = vunpack.c.l.b16 %v2830
    %v3480 = vunpack.c.h.b16 %v2830
    %v3481 = vunpack.c.l.b16 %v2831
    %v3482 = vunpack.c.h.b16 %v2831
    %v3483 = vunpack.c.l.b16 %v2832
    %v3484 = vunpack.c.l.b16 %v2833
    %v3485 = vunpack.c.h.b16 %v2833
    %v3486 = vunpack.c.l.b16 %v2834
    %v3487 = vunpack.c.h.b16 %v2834
    %v3488 = vunpack.c.l.b16 %v2835
    %v3489 = vunpack.c.h.b16 %v2835
    %v3490 = vunpack.c.l.b16 %v2836
    %v3491 = vunpack.c.l.b16 %v2837
    %v3492 = vunpack.c.h.b16 %v2837
    %v3493 = vunpack.c.l.b16 %v2838
    %v3494 = vunpack.c.h.b16 %v2838
    %v3495 = vunpack.c.l.b16 %v2839
    %v3496 = vunpack.c.h.b16 %v2839
    %v3497 = vunpack.c.l.b16 %v2840
    %v3498 = vunpack.c.l.b16 %v2841
    %v3499 = vunpack.c.h.b16 %v2841
    %v3500 = vunpack.c.l.b16 %v2842
    %v3501 = vunpack.c.h.b16 %v2842
    %v3502 = vunpack.c.l.b16 %v2843
    %v3503 = vunpack.c.h.b16 %v2843
    %v3504 = vunpack.c.l.b16 %v2844
    %v3505 = vunpack.c.l.b16 %v2845
    %v3506 = vunpack.c.h.b16 %v2845
    %v3507 = vunpack.c.l.b16 %v2846
    %v3508 = vunpack.c.h.b16 %v2846
    %v3509 = vunpack.c.l.b16 %v2847
    %v3510 = vunpack.c.h.b16 %v2847
    %v3511 = vunpack.c.l.b16 %v2848
    %v3512 = vunpack.c.l.b16 %v2849
    %v3513 = vunpack.c.h.b16 %v2849
    %v3514 = vunpack.c.l.b16 %v2850
    %v3515 = vunpack.c.h.b16 %v2850
    %v3516 = vunpack.c.l.b16 %v2851
    %v3517 = vunpack.c.h.b16 %v2851
    %v3518 = vunpack.c.l.b16 %v2852
    %v3519 = vunpack.c.l.b16 %v2853
    %v3520 = vunpack.c.h.b16 %v2853
    %v3521 = vunpack.c.l.b16 %v2854
    %v3522 = vunpack.c.h.b16 %v2854
    %v3523 = vunpack.c.l.b16 %v2855
    %v3524 = vunpack.c.h.b16 %v2855
    %v3525 = vunpack.c.l.b16 %v2856
    %v3526 = vunpack.c.l.b16 %v2857
    %v3527 = vunpack.c.h.b16 %v2857
    %v3528 = vunpack.c.l.b16 %v2858
    %v3529 = vunpack.c.h.b16 %v2858
    %v3530 = vunpack.c.l.b16 %v2859
    %v3531 = vunpack.c.h.b16 %v2859
    %v3532 = vunpack.c.l.b16 %v2860
    %v3533 = vunpack.c.l.b16 %v2861
    %v3534 = vunpack.c.h.b16 %v2861
    %v3535 = vunpack.c.l.b16 %v2862
    %v3536 = vunpack.c.h.b16 %v2862
    %v3537 = vunpack.c.l.b16 %v2863
    %v3538 = vunpack.c.h.b16 %v2863
    %v3539 = vunpack.c.l.b16 %v2864
    %v3540 = vunpack.c.l.b16 %v2865
    %v3541 = vunpack.c.h.b16 %v2865
    %v3542 = vunpack.c.l.b16 %v2866
    %v3543 = vunpack.c.h.b16 %v2866
    %v3544 = vunpack.c.l.b16 %v2867
    %v3545 = vunpack.c.h.b16 %v2867
    %v3546 = vunpack.c.l.b16 %v2868
    %v3547 = vunpack.c.l.b16 %v2869
    %v3548 = vunpack.c.h.b16 %v2869
    %v3549 = vunpack.c.l.b16 %v2870
    %v3550 = vunpack.c.h.b16 %v2870
    %v3551 = vunpack.c.l.b16 %v2871
    %v3552 = vunpack.c.h.b16 %v2871
    %v3553 = vunpack.c.l.b16 %v2872
    %v3554 = vunpack.c.l.b16 %v2873
    %v3555 = vunpack.c.h.b16 %v2873
    %v3556 = vunpack.c.l.b16 %v2874
    %v3557 = vunpack.c.h.b16 %v2874
    %v3558 = vunpack.c.l.b16 %v2875
    %v3559 = vunpack.c.h.b16 %v2875
    %v3560 = vunpack.c.l.b16 %v2876
    %v3561 = vunpack.c.l.b16 %v2877
    %v3562 = vunpack.c.h.b16 %v2877
    %v3563 = vunpack.c.l.b16 %v2878
    %v3564 = vunpack.c.h.b16 %v2878
    %v3565 = vunpack.c.l.b16 %v2879
    %v3566 = vunpack.c.h.b16 %v2879
    %v3567 = vunpack.c.l.b16 %v2880
    %v3568 = vunpack.c.l.b16 %v2881
    %v3569 = vunpack.c.h.b16 %v2881
    %v3570 = vunpack.c.l.b16 %v2882
    %v3571 = vunpack.c.h.b16 %v2882
    %v3572 = vunpack.c.l.b16 %v2883
    %v3573 = vunpack.c.h.b16 %v2883
    %v3574 = vunpack.c.l.b16 %v2884
    %v3575 = vunpack.c.l.b16 %v2885
    %v3576 = vunpack.c.h.b16 %v2885
    %v3577 = vunpack.c.l.b16 %v2886
    %v3578 = vunpack.c.h.b16 %v2886
    %v3579 = vunpack.c.l.b16 %v2887
    %v3580 = vunpack.c.h.b16 %v2887
    %v3581 = vunpack.c.l.b16 %v2888
    %v3582 = vunpack.c.l.b16 %v2889
    %v3583 = vunpack.c.h.b16 %v2889
    %v3584 = vunpack.c.l.b16 %v2890
    %v3585 = vunpack.c.h.b16 %v2890
    %v3586 = vunpack.c.l.b16 %v2891
    %v3587 = vunpack.c.h.b16 %v2891
    %v3588 = vunpack.c.l.b16 %v2892
    %v3589 = vunpack.c.l.b16 %v2893
    %v3590 = vunpack.c.h.b16 %v2893
    %v3591 = vunpack.c.l.b16 %v2894
    %v3592 = vunpack.c.h.b16 %v2894
    %v3593 = vunpack.c.l.b16 %v2895
    %v3594 = vunpack.c.h.b16 %v2895
    %v3595 = vunpack.c.l.b16 %v2896
    %v3596 = vunpack.c.l.b16 %v2897
    %v3597 = vunpack.c.h.b16 %v2897
    %v3598 = vunpack.c.l.b16 %v2898
    %v3599 = vunpack.c.h.b16 %v2898
    %v3600 = vunpack.c.l.b16 %v2899
    %v3601 = vunpack.c.h.b16 %v2899
    %v3602 = vunpack.c.l.b16 %v2900
    %v3603 = vunpack.c.l.b16 %v2901
    %v3604 = vunpack.c.h.b16 %v2901
    %v3605 = vunpack.c.l.b16 %v2902
    %v3606 = vunpack.c.h.b16 %v2902
    %v3607 = vunpack.c.l.b16 %v2903
    %v3608 = vunpack.c.h.b16 %v2903
    %v3609 = vunpack.c.l.b16 %v2904
    %v3610 = vunpack.c.l.b16 %v2905
    %v3611 = vunpack.c.h.b16 %v2905
    %v3612 = vunpack.c.l.b16 %v2906
    %v3613 = vunpack.c.h.b16 %v2906
    %v3614 = vunpack.c.l.b16 %v2907
    %v3615 = vunpack.c.h.b16 %v2907
    %v3616 = vunpack.c.l.b16 %v2908
    %v3617 = vunpack.c.l.b16 %v2909
    %v3618 = vunpack.c.h.b16 %v2909
    %v3619 = vunpack.c.l.b16 %v2910
    %v3620 = vunpack.c.h.b16 %v2910
    %v3621 = vunpack.c.l.b16 %v2911
    %v3622 = vunpack.c.h.b16 %v2911
    %v3623 = vunpack.c.l.b16 %v2912
    %v3624 = vunpack.c.l.b16 %v2913
    %v3625 = vunpack.c.h.b16 %v2913
    %v3626 = vunpack.c.l.b16 %v2914
    %v3627 = vunpack.c.h.b16 %v2914
    %v3628 = vunpack.c.l.b16 %v2915
    %v3629 = vunpack.c.h.b16 %v2915
    %v3630 = vunpack.c.l.b16 %v2916
    %v3631 = vunpack.c.l.b16 %v2917
    %v3632 = vunpack.c.h.b16 %v2917
    %v3633 = vunpack.c.l.b16 %v2918
    %v3634 = vunpack.c.h.b16 %v2918
    %v3635 = vunpack.c.l.b16 %v2919
    %v3636 = vunpack.c.h.b16 %v2919
    %v3637 = vunpack.c.l.b16 %v2920
    %v3638 = vunpack.c.l.b16 %v2921
    %v3639 = vunpack.c.h.b16 %v2921
    %v3640 = vunpack.c.l.b16 %v2922
    %v3641 = vunpack.c.h.b16 %v2922
    %v3642 = vunpack.c.l.b16 %v2923
    %v3643 = vunpack.c.h.b16 %v2923
    %v3644 = vunpack.c.l.b16 %v2924
    %v3645 = vunpack.c.l.b16 %v2925
    %v3646 = vunpack.c.h.b16 %v2925
    %v3647 = vunpack.c.l.b16 %v2926
    %v3648 = vunpack.c.h.b16 %v2926
    %v3649 = vunpack.c.l.b16 %v2927
    %v3650 = vunpack.c.h.b16 %v2927
    %v3651 = vunpack.c.l.b16 %v2928
    %v3652 = vunpack.c.l.b16 %v2929
    %v3653 = vunpack.c.h.b16 %v2929
    %v3654 = vunpack.c.l.b16 %v2930
    %v3655 = vunpack.c.h.b16 %v2930
    %v3656 = vunpack.c.l.b16 %v2931
    %v3657 = vunpack.c.h.b16 %v2931
    %v3658 = vunpack.c.l.b16 %v2932
    %v3659 = vunpack.c.l.b16 %v2933
    %v3660 = vunpack.c.h.b16 %v2933
    %v3661 = vunpack.c.l.b16 %v2934
    %v3662 = vunpack.c.h.b16 %v2934
    %v3663 = vunpack.c.l.b16 %v2935
    %v3664 = vunpack.c.h.b16 %v2935
    %v3665 = vunpack.c.l.b16 %v2936
    %v3666 = vunpack.c.l.b16 %v2937
    %v3667 = vunpack.c.h.b16 %v2937
    %v3668 = vunpack.c.l.b16 %v2938
    %v3669 = vunpack.c.h.b16 %v2938
    %v3670 = vunpack.c.l.b16 %v2939
    %v3671 = vunpack.c.h.b16 %v2939
    %v3672 = vunpack.c.l.b16 %v2940
    %v3673 = vunpack.c.l.b16 %v2941
    %v3674 = vunpack.c.h.b16 %v2941
    %v3675 = vunpack.c.l.b16 %v2942
    %v3676 = vunpack.c.h.b16 %v2942
    %v3677 = vunpack.c.l.b16 %v2943
    %v3678 = vunpack.c.h.b16 %v2943
    %v3679 = vunpack.c.l.b16 %v2944
    %v3680 = vunpack.c.l.b16 %v2945
    %v3681 = vunpack.c.h.b16 %v2945
    %v3682 = vunpack.c.l.b16 %v2946
    %v3683 = vunpack.c.h.b16 %v2946
    %v3684 = vunpack.c.l.b16 %v2947
    %v3685 = vunpack.c.h.b16 %v2947
    %v3686 = vunpack.c.l.b16 %v2948
    %v3687 = vunpack.c.l.b16 %v2949
    %v3688 = vunpack.c.h.b16 %v2949
    %v3689 = vunpack.c.l.b16 %v2950
    %v3690 = vunpack.c.h.b16 %v2950
    %v3691 = vunpack.c.l.b16 %v2951
    %v3692 = vunpack.c.h.b16 %v2951
    %v3693 = vunpack.c.l.b16 %v2952
    %v3694 = vpack.c.b16 %v3253, %v3246
    %v3695 = vpack.c.b16 %v3254, %v3247
    %v3696 = vpack.c.b16 %v3255, %v3248
    %v3697 = vpack.c.b16 %v3256, %v3249
    %v3698 = vpack.c.b16 %v3257, %v3250
    %v3699 = vpack.c.b16 %v3258, %v3251
    %v3700 = vpack.c.b16 %v3259, %v3252
    %v3701 = vpack.c.b16 %v3267, %v3260
    %v3702 = vpack.c.b16 %v3268, %v3261
    %v3703 = vpack.c.b16 %v3269, %v3262
    %v3704 = vpack.c.b16 %v3270, %v3263
    %v3705 = vpack.c.b16 %v3271, %v3264
    %v3706 = vpack.c.b16 %v3272, %v3265
    %v3707 = vpack.c.b16 %v3273, %v3266
    %v3708 = vpack.c.b16 %v3281, %v3274
    %v3709 = vpack.c.b16 %v3282, %v3275
    %v3710 = vpack.c.b16 %v3283, %v3276
    %v3711 = vpack.c.b16 %v3284, %v3277
    %v3712 = vpack.c.b16 %v3285, %v3278
    %v3713 = vpack.c.b16 %v3286, %v3279
    %v3714 = vpack.c.b16 %v3287, %v3280
    %v3715 = vpack.c.b16 %v3295, %v3288
    %v3716 = vpack.c.b16 %v3296, %v3289
    %v3717 = vpack.c.b16 %v3297, %v3290
    %v3718 = vpack.c.b16 %v3298, %v3291
    %v3719 = vpack.c.b16 %v3299, %v3292
    %v3720 = vpack.c.b16 %v3300, %v3293
    %v3721 = vpack.c.b16 %v3301, %v3294
    %v3722 = vpack.c.b16 %v3309, %v3302
    %v3723 = vpack.c.b16 %v3310, %v3303
    %v3724 = vpack.c.b16 %v3311, %v3304
    %v3725 = vpack.c.b16 %v3312, %v3305
    %v3726 = vpack.c.b16 %v3313, %v3306
    %v3727 = vpack.c.b16 %v3314, %v3307
    %v3728 = vpack.c.b16 %v3315, %v3308
    %v3729 = vpack.c.b16 %v3323, %v3316
    %v3730 = vpack.c.b16 %v3324, %v3317
    %v3731 = vpack.c.b16 %v3325, %v3318
    %v3732 = vpack.c.b16 %v3326, %v3319
    %v3733 = vpack.c.b16 %v3327, %v3320
    %v3734 = vpack.c.b16 %v3328, %v3321
    %v3735 = vpack.c.b16 %v3329, %v3322
    %v3736 = vpack.c.b16 %v3337, %v3330
    %v3737 = vpack.c.b16 %v3338, %v3331
    %v3738 = vpack.c.b16 %v3339, %v3332
    %v3739 = vpack.c.b16 %v3340, %v3333
    %v3740 = vpack.c.b16 %v3341, %v3334
    %v3741 = vpack.c.b16 %v3342, %v3335
    %v3742 = vpack.c.b16 %v3343, %v3336
    %v3743 = vpack.c.b16 %v3351, %v3344
    %v3744 = vpack.c.b16 %v3352, %v3345
    %v3745 = vpack.c.b16 %v3353, %v3346
    %v3746 = vpack.c.b16 %v3354, %v3347
    %v3747 = vpack.c.b16 %v3355, %v3348
    %v3748 = vpack.c.b16 %v3356, %v3349
    %v3749 = vpack.c.b16 %v3357, %v3350
    %v3750 = vpack.c.b16 %v3365, %v3358
    %v3751 = vpack.c.b16 %v3366, %v3359
    %v3752 = vpack.c.b16 %v3367, %v3360
    %v3753 = vpack.c.b16 %v3368, %v3361
    %v3754 = vpack.c.b16 %v3369, %v3362
    %v3755 = vpack.c.b16 %v3370, %v3363
    %v3756 = vpack.c.b16 %v3371, %v3364
    %v3757 = vpack.c.b16 %v3379, %v3372
    %v3758 = vpack.c.b16 %v3380, %v3373
    %v3759 = vpack.c.b16 %v3381, %v3374
    %v3760 = vpack.c.b16 %v3382, %v3375
    %v3761 = vpack.c.b16 %v3383, %v3376
    %v3762 = vpack.c.b16 %v3384, %v3377
    %v3763 = vpack.c.b16 %v3385, %v3378
    %v3764 = vpack.c.b16 %v3393, %v3386
    %v3765 = vpack.c.b16 %v3394, %v3387
    %v3766 = vpack.c.b16 %v3395, %v3388
    %v3767 = vpack.c.b16 %v3396, %v3389
    %v3768 = vpack.c.b16 %v3397, %v3390
    %v3769 = vpack.c.b16 %v3398, %v3391
    %v3770 = vpack.c.b16 %v3399, %v3392
    %v3771 = vpack.c.b16 %v3407, %v3400
    %v3772 = vpack.c.b16 %v3408, %v3401
    %v3773 = vpack.c.b16 %v3409, %v3402
    %v3774 = vpack.c.b16 %v3410, %v3403
    %v3775 = vpack.c.b16 %v3411, %v3404
    %v3776 = vpack.c.b16 %v3412, %v3405
    %v3777 = vpack.c.b16 %v3413, %v3406
    %v3778 = vpack.c.b16 %v3421, %v3414
    %v3779 = vpack.c.b16 %v3422, %v3415
    %v3780 = vpack.c.b16 %v3423, %v3416
    %v3781 = vpack.c.b16 %v3424, %v3417
    %v3782 = vpack.c.b16 %v3425, %v3418
    %v3783 = vpack.c.b16 %v3426, %v3419
    %v3784 = vpack.c.b16 %v3427, %v3420
    %v3785 = vpack.c.b16 %v3435, %v3428
    %v3786 = vpack.c.b16 %v3436, %v3429
    %v3787 = vpack.c.b16 %v3437, %v3430
    %v3788 = vpack.c.b16 %v3438, %v3431
    %v3789 = vpack.c.b16 %v3439, %v3432
    %v3790 = vpack.c.b16 %v3440, %v3433
    %v3791 = vpack.c.b16 %v3441, %v3434
    %v3792 = vpack.c.b16 %v3449, %v3442
    %v3793 = vpack.c.b16 %v3450, %v3443
    %v3794 = vpack.c.b16 %v3451, %v3444
    %v3795 = vpack.c.b16 %v3452, %v3445
    %v3796 = vpack.c.b16 %v3453, %v3446
    %v3797 = vpack.c.b16 %v3454, %v3447
    %v3798 = vpack.c.b16 %v3455, %v3448
    %v3799 = vpack.c.b16 %v3463, %v3456
    %v3800 = vpack.c.b16 %v3464, %v3457
    %v3801 = vpack.c.b16 %v3465, %v3458
    %v3802 = vpack.c.b16 %v3466, %v3459
    %v3803 = vpack.c.b16 %v3467, %v3460
    %v3804 = vpack.c.b16 %v3468, %v3461
    %v3805 = vpack.c.b16 %v3469, %v3462
    %v3806 = vpack.c.b16 %v3477, %v3470
    %v3807 = vpack.c.b16 %v3478, %v3471
    %v3808 = vpack.c.b16 %v3479, %v3472
    %v3809 = vpack.c.b16 %v3480, %v3473
    %v3810 = vpack.c.b16 %v3481, %v3474
    %v3811 = vpack.c.b16 %v3482, %v3475
    %v3812 = vpack.c.b16 %v3483, %v3476
    %v3813 = vpack.c.b16 %v3491, %v3484
    %v3814 = vpack.c.b16 %v3492, %v3485
    %v3815 = vpack.c.b16 %v3493, %v3486
    %v3816 = vpack.c.b16 %v3494, %v3487
    %v3817 = vpack.c.b16 %v3495, %v3488
    %v3818 = vpack.c.b16 %v3496, %v3489
    %v3819 = vpack.c.b16 %v3497, %v3490
    %v3820 = vpack.c.b16 %v3505, %v3498
    %v3821 = vpack.c.b16 %v3506, %v3499
    %v3822 = vpack.c.b16 %v3507, %v3500
    %v3823 = vpack.c.b16 %v3508, %v3501
    %v3824 = vpack.c.b16 %v3509, %v3502
    %v3825 = vpack.c.b16 %v3510, %v3503
    %v3826 = vpack.c.b16 %v3511, %v3504
    %v3827 = vpack.c.b16 %v3519, %v3512
    %v3828 = vpack.c.b16 %v3520, %v3513
    %v3829 = vpack.c.b16 %v3521, %v3514
    %v3830 = vpack.c.b16 %v3522, %v3515
    %v3831 = vpack.c.b16 %v3523, %v3516
    %v3832 = vpack.c.b16 %v3524, %v3517
    %v3833 = vpack.c.b16 %v3525, %v3518
    %v3834 = vpack.c.b16 %v3533, %v3526
    %v3835 = vpack.c.b16 %v3534, %v3527
    %v3836 = vpack.c.b16 %v3535, %v3528
    %v3837 = vpack.c.b16 %v3536, %v3529
    %v3838 = vpack.c.b16 %v3537, %v3530
    %v3839 = vpack.c.b16 %v3538, %v3531
    %v3840 = vpack.c.b16 %v3539, %v3532
    %v3841 = vpack.c.b16 %v3547, %v3540
    %v3842 = vpack.c.b16 %v3548, %v3541
    %v3843 = vpack.c.b16 %v3549, %v3542
    %v3844 = vpack.c.b16 %v3550, %v3543
    %v3845 = vpack.c.b16 %v3551, %v3544
    %v3846 = vpack.c.b16 %v3552, %v3545
    %v3847 = vpack.c.b16 %v3553, %v3546
    %v3848 = vpack.c.b16 %v3561, %v3554
    %v3849 = vpack.c.b16 %v3562, %v3555
    %v3850 = vpack.c.b16 %v3563, %v3556
    %v3851 = vpack.c.b16 %v3564, %v3557
    %v3852 = vpack.c.b16 %v3565, %v3558
    %v3853 = vpack.c.b16 %v3566, %v3559
    %v3854 = vpack.c.b16 %v3567, %v3560
    %v3855 = vpack.c.b16 %v3575, %v3568
    %v3856 = vpack.c.b16 %v3576, %v3569
    %v3857 = vpack.c.b16 %v3577, %v3570
    %v3858 = vpack.c.b16 %v3578, %v3571
    %v3859 = vpack.c.b16 %v3579, %v3572
    %v3860 = vpack.c.b16 %v3580, %v3573
    %v3861 = vpack.c.b16 %v3581, %v3574
    %v3862 = vpack.c.b16 %v3589, %v3582
    %v3863 = vpack.c.b16 %v3590, %v3583
    %v3864 = vpack.c.b16 %v3591, %v3584
    %v3865 = vpack.c.b16 %v3592, %v3585
    %v3866 = vpack.c.b16 %v3593, %v3586
    %v3867 = vpack.c.b16 %v3594, %v3587
    %v3868 = vpack.c.b16 %v3595, %v3588
    %v3869 = vpack.c.b16 %v3603, %v3596
    %v3870 = vpack.c.b16 %v3604, %v3597
    %v3871 = vpack.c.b16 %v3605, %v3598
    %v3872 = vpack.c.b16 %v3606, %v3599
    %v3873 = vpack.c.b16 %v3607, %v3600
    %v3874 = vpack.c.b16 %v3608, %v3601
    %v3875 = vpack.c.b16 %v3609, %v3602
    %v3876 = vpack.c.b16 %v3617, %v3610
    %v3877 = vpack.c.b16 %v3618, %v3611
    %v3878 = vpack.c.b16 %v3619, %v3612
    %v3879 = vpack.c.b16 %v3620, %v3613
    %v3880 = vpack.c.b16 %v3621, %v3614
    %v3881 = vpack.c.b16 %v3622, %v3615
    %v3882 = vpack.c.b16 %v3623, %v3616
    %v3883 = vpack.c.b16 %v3631, %v3624
    %v3884 = vpack.c.b16 %v3632, %v3625
    %v3885 = vpack.c.b16 %v3633, %v3626
    %v3886 = vpack.c.b16 %v3634, %v3627
    %v3887 = vpack.c.b16 %v3635, %v3628
    %v3888 = vpack.c.b16 %v3636, %v3629
    %v3889 = vpack.c.b16 %v3637, %v3630
    %v3890 = vpack.c.b16 %v3645, %v3638
    %v3891 = vpack.c.b16 %v3646, %v3639
    %v3892 = vpack.c.b16 %v3647, %v3640
    %v3893 = vpack.c.b16 %v3648, %v3641
    %v3894 = vpack.c.b16 %v3649, %v3642
    %v3895 = vpack.c.b16 %v3650, %v3643
    %v3896 = vpack.c.b16 %v3651, %v3644
    %v3897 = vpack.c.b16 %v3659, %v3652
    %v3898 = vpack.c.b16 %v3660, %v3653
    %v3899 = vpack.c.b16 %v3661, %v3654
    %v3900 = vpack.c.b16 %v3662, %v3655
    %v3901 = vpack.c.b16 %v3663, %v3656
    %v3902 = vpack.c.b16 %v3664, %v3657
    %v3903 = vpack.c.b16 %v3665, %v3658
    %v3904 = vpack.c.b16 %v3673, %v3666
    %v3905 = vpack.c.b16 %v3674, %v3667
    %v3906 = vpack.c.b16 %v3675, %v3668
    %v3907 = vpack.c.b16 %v3676, %v3669
    %v3908 = vpack.c.b16 %v3677, %v3670
    %v3909 = vpack.c.b16 %v3678, %v3671
    %v3910 = vpack.c.b16 %v3679, %v3672
    %v3911 = vpack.c.b16 %v3687, %v3680
    %v3912 = vpack.c.b16 %v3688, %v3681
    %v3913 = vpack.c.b16 %v3689, %v3682
    %v3914 = vpack.c.b16 %v3690, %v3683
    %v3915 = vpack.c.b16 %v3691, %v3684
    %v3916 = vpack.c.b16 %v3692, %v3685
    %v3917 = vpack.c.b16 %v3693, %v3686
    %4142 = vmatprep.subr.bf16.mxu0 %v3695
    %4143 = vmatpush1.bf16.msra.mxu0 %v3694
    %4144 = vmatprep.subr.bf16.mxu0 %v3702
    %4145 = vmatpush1.bf16.msra.mxu0 %v3701
    %4146 = vmatprep.subr.bf16.mxu0 %v3709
    %4147 = vmatpush1.bf16.msra.mxu0 %v3708
    %4148 = vmatprep.subr.bf16.mxu0 %v3716
    %4149 = vmatpush1.bf16.msra.mxu0 %v3715
    %4150 = vmatprep.subr.bf16.mxu0 %v3723
    %4151 = vmatpush1.bf16.msra.mxu0 %v3722
    %4152 = vmatprep.subr.bf16.mxu0 %v3730
    %4153 = vmatpush1.bf16.msra.mxu0 %v3729
    %4154 = vmatprep.subr.bf16.mxu0 %v3737
    %4155 = vmatpush1.bf16.msra.mxu0 %v3736
    %4156 = vmatprep.subr.bf16.mxu0 %v3744
    %4157 = vmatpush1.bf16.msra.mxu0 %v3743
    %4158 = vmatprep.subr.bf16.mxu0 %v3751
    %4159 = vmatpush1.bf16.msra.mxu0 %v3750
    %4160 = vmatprep.subr.bf16.mxu0 %v3758
    %4161 = vmatpush1.bf16.msra.mxu0 %v3757
    %4162 = vmatprep.subr.bf16.mxu0 %v3765
    %4163 = vmatpush1.bf16.msra.mxu0 %v3764
    %4164 = vmatprep.subr.bf16.mxu0 %v3772
    %4165 = vmatpush1.bf16.msra.mxu0 %v3771
    %4166 = vmatprep.subr.bf16.mxu0 %v3779
    %4167 = vmatpush1.bf16.msra.mxu0 %v3778
    %4168 = vmatprep.subr.bf16.mxu0 %v3786
    %4169 = vmatpush1.bf16.msra.mxu0 %v3785
    %4170 = vmatprep.subr.bf16.mxu0 %v3793
    %4171 = vmatpush1.bf16.msra.mxu0 %v3792
    %4172 = vmatprep.subr.bf16.mxu0 %v3800
    %4173 = vmatpush1.bf16.msra.mxu0 %v3799
    %4174 = vmatprep.mubr.bf16.mxu0 %v2694
    %4175 = vmatmul.mubr.bf16.gmra.mrb[0].mxu0 %v2693
    %v4176 = vpop.f32.mrb[0].mxu0
    %v4177 = vadd.f32 %v2958, %v4176
    %v4178 = vpop.f32.mrb[0].mxu0
    %v4179 = vadd.f32 %v2962, %v4178
    %v4180 = vpop.f32.mrb[0].mxu0
    %v4181 = vadd.f32 %v2958, %v4180
    %v4182 = vpop.f32.mrb[0].mxu0
    %v4183 = vadd.f32 %v2962, %v4182
    %4184 = vdwg.mxu0
    %4185 = vmatprep.subr.bf16.mxu0 %v3807
    %4186 = vmatpush1.bf16.msra.mxu0 %v3806
    %4187 = vmatprep.subr.bf16.mxu0 %v3814
    %4188 = vmatpush1.bf16.msra.mxu0 %v3813
    %4189 = vmatprep.subr.bf16.mxu0 %v3821
    %4190 = vmatpush1.bf16.msra.mxu0 %v3820
    %4191 = vmatprep.subr.bf16.mxu0 %v3828
    %4192 = vmatpush1.bf16.msra.mxu0 %v3827
    %4193 = vmatprep.subr.bf16.mxu0 %v3835
    %4194 = vmatpush1.bf16.msra.mxu0 %v3834
    %4195 = vmatprep.subr.bf16.mxu0 %v3842
    %4196 = vmatpush1.bf16.msra.mxu0 %v3841
    %4197 = vmatprep.subr.bf16.mxu0 %v3849
    %4198 = vmatpush1.bf16.msra.mxu0 %v3848
    %4199 = vmatprep.subr.bf16.mxu0 %v3856
    %4200 = vmatpush1.bf16.msra.mxu0 %v3855
    %4201 = vmatprep.subr.bf16.mxu0 %v3863
    %4202 = vmatpush1.bf16.msra.mxu0 %v3862
    %4203 = vmatprep.subr.bf16.mxu0 %v3870
    %4204 = vmatpush1.bf16.msra.mxu0 %v3869
    %4205 = vmatprep.subr.bf16.mxu0 %v3877
    %4206 = vmatpush1.bf16.msra.mxu0 %v3876
    %4207 = vmatprep.subr.bf16.mxu0 %v3884
    %4208 = vmatpush1.bf16.msra.mxu0 %v3883
    %4209 = vmatprep.subr.bf16.mxu0 %v3891
    %4210 = vmatpush1.bf16.msra.mxu0 %v3890
    %4211 = vmatprep.subr.bf16.mxu0 %v3898
    %4212 = vmatpush1.bf16.msra.mxu0 %v3897
    %4213 = vmatprep.subr.bf16.mxu0 %v3905
    %4214 = vmatpush1.bf16.msra.mxu0 %v3904
    %4215 = vmatprep.subr.bf16.mxu0 %v3912
    %4216 = vmatpush1.bf16.msra.mxu0 %v3911
    %4217 = vmatprep.mubr.bf16.mxu0 %v2696
    %4218 = vmatmul.mubr.bf16.gmra.mrb[0].mxu0 %v2695
    %v4219 = vpop.f32.mrb[0].mxu0
    %v4220 = vadd.f32 %v4177, %v4219
    %v4221 = vpop.f32.mrb[0].mxu0
    %v4222 = vadd.f32 %v4179, %v4221
    %v4223 = vpop.f32.mrb[0].mxu0
    %v4224 = vadd.f32 %v4181, %v4223
    %v4225 = vpop.f32.mrb[0].mxu0
    %v4226 = vadd.f32 %v4183, %v4225
    %4227 = vdwg.mxu0
    %4228 = vmatprep.subr.bf16.mxu0 %v3697
    %4229 = vmatpush1.bf16.msra.mxu0 %v3696
    %4230 = vmatprep.subr.bf16.mxu0 %v3704
    %4231 = vmatpush1.bf16.msra.mxu0 %v3703
    %4232 = vmatprep.subr.bf16.mxu0 %v3711
    %4233 = vmatpush1.bf16.msra.mxu0 %v3710
    %4234 = vmatprep.subr.bf16.mxu0 %v3718
    %4235 = vmatpush1.bf16.msra.mxu0 %v3717
    %4236 = vmatprep.subr.bf16.mxu0 %v3725
    %4237 = vmatpush1.bf16.msra.mxu0 %v3724
    %4238 = vmatprep.subr.bf16.mxu0 %v3732
    %4239 = vmatpush1.bf16.msra.mxu0 %v3731
    %4240 = vmatprep.subr.bf16.mxu0 %v3739
    %4241 = vmatpush1.bf16.msra.mxu0 %v3738
    %4242 = vmatprep.subr.bf16.mxu0 %v3746
    %4243 = vmatpush1.bf16.msra.mxu0 %v3745
    %4244 = vmatprep.subr.bf16.mxu0 %v3753
    %4245 = vmatpush1.bf16.msra.mxu0 %v3752
    %4246 = vmatprep.subr.bf16.mxu0 %v3760
    %4247 = vmatpush1.bf16.msra.mxu0 %v3759
    %4248 = vmatprep.subr.bf16.mxu0 %v3767
    %4249 = vmatpush1.bf16.msra.mxu0 %v3766
    %4250 = vmatprep.subr.bf16.mxu0 %v3774
    %4251 = vmatpush1.bf16.msra.mxu0 %v3773
    %4252 = vmatprep.subr.bf16.mxu0 %v3781
    %4253 = vmatpush1.bf16.msra.mxu0 %v3780
    %4254 = vmatprep.subr.bf16.mxu0 %v3788
    %4255 = vmatpush1.bf16.msra.mxu0 %v3787
    %4256 = vmatprep.subr.bf16.mxu0 %v3795
    %4257 = vmatpush1.bf16.msra.mxu0 %v3794
    %4258 = vmatprep.subr.bf16.mxu0 %v3802
    %4259 = vmatpush1.bf16.msra.mxu0 %v3801
    %4260 = vmatprep.mubr.bf16.mxu0 %v2694
    %4261 = vmatmul.mubr.bf16.gmra.mrb[0].mxu0 %v2693
    %v4262 = vpop.f32.mrb[0].mxu0
    %v4263 = vadd.f32 %v2966, %v4262
    %v4264 = vpop.f32.mrb[0].mxu0
    %v4265 = vadd.f32 %v2970, %v4264
    %v4266 = vpop.f32.mrb[0].mxu0
    %v4267 = vadd.f32 %v2966, %v4266
    %v4268 = vpop.f32.mrb[0].mxu0
    %v4269 = vadd.f32 %v2970, %v4268
    %4270 = vdwg.mxu0
    %4271 = vmatprep.subr.bf16.mxu0 %v3809
    %4272 = vmatpush1.bf16.msra.mxu0 %v3808
    %4273 = vmatprep.subr.bf16.mxu0 %v3816
    %4274 = vmatpush1.bf16.msra.mxu0 %v3815
    %4275 = vmatprep.subr.bf16.mxu0 %v3823
    %4276 = vmatpush1.bf16.msra.mxu0 %v3822
    %4277 = vmatprep.subr.bf16.mxu0 %v3830
    %4278 = vmatpush1.bf16.msra.mxu0 %v3829
    %4279 = vmatprep.subr.bf16.mxu0 %v3837
    %4280 = vmatpush1.bf16.msra.mxu0 %v3836
    %4281 = vmatprep.subr.bf16.mxu0 %v3844
    %4282 = vmatpush1.bf16.msra.mxu0 %v3843
    %4283 = vmatprep.subr.bf16.mxu0 %v3851
    %4284 = vmatpush1.bf16.msra.mxu0 %v3850
    %4285 = vmatprep.subr.bf16.mxu0 %v3858
    %4286 = vmatpush1.bf16.msra.mxu0 %v3857
    %4287 = vmatprep.subr.bf16.mxu0 %v3865
    %4288 = vmatpush1.bf16.msra.mxu0 %v3864
    %4289 = vmatprep.subr.bf16.mxu0 %v3872
    %4290 = vmatpush1.bf16.msra.mxu0 %v3871
    %4291 = vmatprep.subr.bf16.mxu0 %v3879
    %4292 = vmatpush1.bf16.msra.mxu0 %v3878
    %4293 = vmatprep.subr.bf16.mxu0 %v3886
    %4294 = vmatpush1.bf16.msra.mxu0 %v3885
    %4295 = vmatprep.subr.bf16.mxu0 %v3893
    %4296 = vmatpush1.bf16.msra.mxu0 %v3892
    %4297 = vmatprep.subr.bf16.mxu0 %v3900
    %4298 = vmatpush1.bf16.msra.mxu0 %v3899
    %4299 = vmatprep.subr.bf16.mxu0 %v3907
    %4300 = vmatpush1.bf16.msra.mxu0 %v3906
    %4301 = vmatprep.subr.bf16.mxu0 %v3914
    %4302 = vmatpush1.bf16.msra.mxu0 %v3913
    %4303 = vmatprep.mubr.bf16.mxu0 %v2696
    %4304 = vmatmul.mubr.bf16.gmra.mrb[0].mxu0 %v2695
    %v4305 = vpop.f32.mrb[0].mxu0
    %v4306 = vadd.f32 %v4263, %v4305
    %v4307 = vpop.f32.mrb[0].mxu0
    %v4308 = vadd.f32 %v4265, %v4307
    %v4309 = vpop.f32.mrb[0].mxu0
    %v4310 = vadd.f32 %v4267, %v4309
    %v4311 = vpop.f32.mrb[0].mxu0
    %v4312 = vadd.f32 %v4269, %v4311
    %4313 = vdwg.mxu0
    %4314 = vmatprep.subr.bf16.mxu0 %v3699
    %4315 = vmatpush1.bf16.msra.mxu0 %v3698
    %4316 = vmatprep.subr.bf16.mxu0 %v3706
    %4317 = vmatpush1.bf16.msra.mxu0 %v3705
    %4318 = vmatprep.subr.bf16.mxu0 %v3713
    %4319 = vmatpush1.bf16.msra.mxu0 %v3712
    %4320 = vmatprep.subr.bf16.mxu0 %v3720
    %4321 = vmatpush1.bf16.msra.mxu0 %v3719
    %4322 = vmatprep.subr.bf16.mxu0 %v3727
    %4323 = vmatpush1.bf16.msra.mxu0 %v3726
    %4324 = vmatprep.subr.bf16.mxu0 %v3734
    %4325 = vmatpush1.bf16.msra.mxu0 %v3733
    %4326 = vmatprep.subr.bf16.mxu0 %v3741
    %4327 = vmatpush1.bf16.msra.mxu0 %v3740
    %4328 = vmatprep.subr.bf16.mxu0 %v3748
    %4329 = vmatpush1.bf16.msra.mxu0 %v3747
    %4330 = vmatprep.subr.bf16.mxu0 %v3755
    %4331 = vmatpush1.bf16.msra.mxu0 %v3754
    %4332 = vmatprep.subr.bf16.mxu0 %v3762
    %4333 = vmatpush1.bf16.msra.mxu0 %v3761
    %4334 = vmatprep.subr.bf16.mxu0 %v3769
    %4335 = vmatpush1.bf16.msra.mxu0 %v3768
    %4336 = vmatprep.subr.bf16.mxu0 %v3776
    %4337 = vmatpush1.bf16.msra.mxu0 %v3775
    %4338 = vmatprep.subr.bf16.mxu0 %v3783
    %4339 = vmatpush1.bf16.msra.mxu0 %v3782
    %4340 = vmatprep.subr.bf16.mxu0 %v3790
    %4341 = vmatpush1.bf16.msra.mxu0 %v3789
    %4342 = vmatprep.subr.bf16.mxu0 %v3797
    %4343 = vmatpush1.bf16.msra.mxu0 %v3796
    %4344 = vmatprep.subr.bf16.mxu0 %v3804
    %4345 = vmatpush1.bf16.msra.mxu0 %v3803
    %4346 = vmatprep.mubr.bf16.mxu0 %v2694
    %4347 = vmatmul.mubr.bf16.gmra.mrb[0].mxu0 %v2693
    %v4348 = vpop.f32.mrb[0].mxu0
    %v4349 = vadd.f32 %v2974, %v4348
    %v4350 = vpop.f32.mrb[0].mxu0
    %v4351 = vadd.f32 %v2978, %v4350
    %v4352 = vpop.f32.mrb[0].mxu0
    %v4353 = vadd.f32 %v2974, %v4352
    %v4354 = vpop.f32.mrb[0].mxu0
    %v4355 = vadd.f32 %v2978, %v4354
    %4356 = vdwg.mxu0
    %4357 = vmatprep.subr.bf16.mxu0 %v3811
    %4358 = vmatpush1.bf16.msra.mxu0 %v3810
    %4359 = vmatprep.subr.bf16.mxu0 %v3818
    %4360 = vmatpush1.bf16.msra.mxu0 %v3817
    %4361 = vmatprep.subr.bf16.mxu0 %v3825
    %4362 = vmatpush1.bf16.msra.mxu0 %v3824
    %4363 = vmatprep.subr.bf16.mxu0 %v3832
    %4364 = vmatpush1.bf16.msra.mxu0 %v3831
    %4365 = vmatprep.subr.bf16.mxu0 %v3839
    %4366 = vmatpush1.bf16.msra.mxu0 %v3838
    %4367 = vmatprep.subr.bf16.mxu0 %v3846
    %4368 = vmatpush1.bf16.msra.mxu0 %v3845
    %4369 = vmatprep.subr.bf16.mxu0 %v3853
    %4370 = vmatpush1.bf16.msra.mxu0 %v3852
    %4371 = vmatprep.subr.bf16.mxu0 %v3860
    %4372 = vmatpush1.bf16.msra.mxu0 %v3859
    %4373 = vmatprep.subr.bf16.mxu0 %v3867
    %4374 = vmatpush1.bf16.msra.mxu0 %v3866
    %4375 = vmatprep.subr.bf16.mxu0 %v3874
    %4376 = vmatpush1.bf16.msra.mxu0 %v3873
    %4377 = vmatprep.subr.bf16.mxu0 %v3881
    %4378 = vmatpush1.bf16.msra.mxu0 %v3880
    %4379 = vmatprep.subr.bf16.mxu0 %v3888
    %4380 = vmatpush1.bf16.msra.mxu0 %v3887
    %4381 = vmatprep.subr.bf16.mxu0 %v3895
    %4382 = vmatpush1.bf16.msra.mxu0 %v3894
    %4383 = vmatprep.subr.bf16.mxu0 %v3902
    %4384 = vmatpush1.bf16.msra.mxu0 %v3901
    %4385 = vmatprep.subr.bf16.mxu0 %v3909
    %4386 = vmatpush1.bf16.msra.mxu0 %v3908
    %4387 = vmatprep.subr.bf16.mxu0 %v3916
    %4388 = vmatpush1.bf16.msra.mxu0 %v3915
    %4389 = vmatprep.mubr.bf16.mxu0 %v2696
    %4390 = vmatmul.mubr.bf16.gmra.mrb[0].mxu0 %v2695
    %v4391 = vpop.f32.mrb[0].mxu0
    %v4392 = vadd.f32 %v4349, %v4391
    %v4393 = vpop.f32.mrb[0].mxu0
    %v4394 = vadd.f32 %v4351, %v4393
    %v4395 = vpop.f32.mrb[0].mxu0
    %v4396 = vadd.f32 %v4353, %v4395
    %v4397 = vpop.f32.mrb[0].mxu0
    %v4398 = vadd.f32 %v4355, %v4397
    %4399 = vdwg.mxu0
    %4400 = vmatprep.subr.bf16.mxu0 0
    %4401 = vmatpush1.bf16.msra.mxu0 %v3700
    %4402 = vmatprep.subr.bf16.mxu0 0
    %4403 = vmatpush1.bf16.msra.mxu0 %v3707
    %4404 = vmatprep.subr.bf16.mxu0 0
    %4405 = vmatpush1.bf16.msra.mxu0 %v3714
    %4406 = vmatprep.subr.bf16.mxu0 0
    %4407 = vmatpush1.bf16.msra.mxu0 %v3721
    %4408 = vmatprep.subr.bf16.mxu0 0
    %4409 = vmatpush1.bf16.msra.mxu0 %v3728
    %4410 = vmatprep.subr.bf16.mxu0 0
    %4411 = vmatpush1.bf16.msra.mxu0 %v3735
    %4412 = vmatprep.subr.bf16.mxu0 0
    %4413 = vmatpush1.bf16.msra.mxu0 %v3742
    %4414 = vmatprep.subr.bf16.mxu0 0
    %4415 = vmatpush1.bf16.msra.mxu0 %v3749
    %4416 = vmatprep.subr.bf16.mxu0 0
    %4417 = vmatpush1.bf16.msra.mxu0 %v3756
    %4418 = vmatprep.subr.bf16.mxu0 0
    %4419 = vmatpush1.bf16.msra.mxu0 %v3763
    %4420 = vmatprep.subr.bf16.mxu0 0
    %4421 = vmatpush1.bf16.msra.mxu0 %v3770
    %4422 = vmatprep.subr.bf16.mxu0 0
    %4423 = vmatpush1.bf16.msra.mxu0 %v3777
    %4424 = vmatprep.subr.bf16.mxu0 0
    %4425 = vmatpush1.bf16.msra.mxu0 %v3784
    %4426 = vmatprep.subr.bf16.mxu0 0
    %4427 = vmatpush1.bf16.msra.mxu0 %v3791
    %4428 = vmatprep.subr.bf16.mxu0 0
    %4429 = vmatpush1.bf16.msra.mxu0 %v3798
    %4430 = vmatprep.subr.bf16.mxu0 0
    %4431 = vmatpush1.bf16.msra.mxu0 %v3805
    %4432 = vmatprep.mubr.bf16.mxu0 %v2694
    %4433 = vmatmul.mubr.bf16.gmra.mrb[0].mxu0 %v2693
    %v4434 = vpop.f32.mrb[0].mxu0
    %v4435 = vadd.f32 %v2982, %v4434
    %v4436 = vpop.f32.mrb[0].mxu0
    %v4437 = vpop.f32.mrb[0].mxu0
    %v4438 = vadd.f32 %v2982, %v4437
    %v4439 = vpop.f32.mrb[0].mxu0
    %4440 = vdwg.mxu0
    %4441 = vmatprep.subr.bf16.mxu0 0
    %4442 = vmatpush1.bf16.msra.mxu0 %v3812
    %4443 = vmatprep.subr.bf16.mxu0 0
    %4444 = vmatpush1.bf16.msra.mxu0 %v3819
    %4445 = vmatprep.subr.bf16.mxu0 0
    %4446 = vmatpush1.bf16.msra.mxu0 %v3826
    %4447 = vmatprep.subr.bf16.mxu0 0
    %4448 = vmatpush1.bf16.msra.mxu0 %v3833
    %4449 = vmatprep.subr.bf16.mxu0 0
    %4450 = vmatpush1.bf16.msra.mxu0 %v3840
    %4451 = vmatprep.subr.bf16.mxu0 0
    %4452 = vmatpush1.bf16.msra.mxu0 %v3847
    %4453 = vmatprep.subr.bf16.mxu0 0
    %4454 = vmatpush1.bf16.msra.mxu0 %v3854
    %4455 = vmatprep.subr.bf16.mxu0 0
    %4456 = vmatpush1.bf16.msra.mxu0 %v3861
    %4457 = vmatprep.subr.bf16.mxu0 0
    %4458 = vmatpush1.bf16.msra.mxu0 %v3868
    %4459 = vmatprep.subr.bf16.mxu0 0
    %4460 = vmatpush1.bf16.msra.mxu0 %v3875
    %4461 = vmatprep.subr.bf16.mxu0 0
    %4462 = vmatpush1.bf16.msra.mxu0 %v3882
    %4463 = vmatprep.subr.bf16.mxu0 0
    %4464 = vmatpush1.bf16.msra.mxu0 %v3889
    %4465 = vmatprep.subr.bf16.mxu0 0
    %4466 = vmatpush1.bf16.msra.mxu0 %v3896
    %4467 = vmatprep.subr.bf16.mxu0 0
    %4468 = vmatpush1.bf16.msra.mxu0 %v3903
    %4469 = vmatprep.subr.bf16.mxu0 0
    %4470 = vmatpush1.bf16.msra.mxu0 %v3910
    %4471 = vmatprep.subr.bf16.mxu0 0
    %4472 = vmatpush1.bf16.msra.mxu0 %v3917
    %4473 = vmatprep.mubr.bf16.mxu0 %v2696
    %4474 = vmatmul.mubr.bf16.gmra.mrb[0].mxu0 %v2695
    %v4475 = vpop.f32.mrb[0].mxu0
    %v4476 = vadd.f32 %v4435, %v4475
    %v4477 = vpop.f32.mrb[0].mxu0
    %v4478 = vpop.f32.mrb[0].mxu0
    %v4479 = vadd.f32 %v4438, %v4478
    %v4480 = vpop.f32.mrb[0].mxu0
    %4481 = vdwg.mxu0
    %v4482 = vtanh.pop %v4220
    %v4483 = vtanh.pop %v4222
    %v4484 = vtanh.pop %v4306
    %v4485 = vtanh.pop %v4308
    %v4486 = vtanh.pop %v4392
    %v4487 = vtanh.pop %v4394
    %v4488 = vtanh.pop %v4476
    %v4489 = vtanh.pop %v4224
    %v4490 = vtanh.pop %v4226
    %v4491 = vtanh.pop %v4310
    %v4492 = vtanh.pop %v4312
    %v4493 = vtanh.pop %v4396
    %v4494 = vtanh.pop %v4398
    %v4495 = vtanh.pop %v4479
    %4496 = vst [vmem:[#allocation13] sm:$0xff] %v4482
    %4497 = vst [vmem:[#allocation13 + $0x8] sm:$0xff] %v4483
    %4498 = vst [vmem:[#allocation13 + $0x10] sm:$0xff] %v4484
    %4499 = vst [vmem:[#allocation13 + $0x18] sm:$0xff] %v4485
    %4500 = vst [vmem:[#allocation13 + $0x20] sm:$0xff] %v4486
    %4501 = vst [vmem:[#allocation13 + $0x28] sm:$0xff] %v4487
    %4502 = vst [vmem:[#allocation13 + $0x30] sm:$0xff] %v4488
    %4503 = vst [vmem:[#allocation13 + $0x38] sm:$0xff] %v4489
    %4504 = vst [vmem:[#allocation13 + $0x40] sm:$0xff] %v4490
    %4505 = vst [vmem:[#allocation13 + $0x48] sm:$0xff] %v4491
    %4506 = vst [vmem:[#allocation13 + $0x50] sm:$0xff] %v4492
    %4507 = vst [vmem:[#allocation13 + $0x58] sm:$0xff] %v4493
    %4508 = vst [vmem:[#allocation13 + $0x60] sm:$0xff] %v4494
    %4509 = vst [vmem:[#allocation13 + $0x68] sm:$0xff] %v4495
    %4510 = vst [vmem:[#allocation14] sm:$0xff] %v2362
    %4511 = vst [vmem:[#allocation14 + $0x8] sm:$0xff] %v2364
    %4512 = vst [vmem:[#allocation14 + $0x10] sm:$0xff] %v2366
    %4513 = vst [vmem:[#allocation14 + $0x18] sm:$0xff] %v2368
    // Predicated region
    $region66: #{tpu_custom_call.1} parent=1 // pred_check
      _
    $region67: #{tpu_custom_call.1} parent=1 // pred_check_branch
      %4515 = sbr.rel (0) target = $region69
    $region68: #{tpu_custom_call.1} parent=1 // pred_region
      %s4517 = ssub.s32 1792, 1792
      %4518 = vsyncadd [#allocation4], %s4517
      %s4519 = sshll.u32 [#allocation13], 4
      %s4520 = int_to_ptr.vmem [resolvable:$true] %s4519
      %4525 = dma.vmem_to_hbm [thread:$0]  %s4520, 1792, %s10, [#allocation4], 896, 896, 56
    $region69: #{tpu_custom_call.1} parent=1 // pred_fallthru
      _
    // Predicated region
    $region70: #{tpu_custom_call.1} parent=1 // pred_check
      _
    $region71: #{tpu_custom_call.1} parent=1 // pred_check_branch
      %4527 = sbr.rel (0) target = $region73
    $region72: #{tpu_custom_call.1} parent=1 // pred_region
      %s4529 = ssub.s32 512, 512
      %4530 = vsyncadd [#allocation15], %s4529
      %s4531 = sshll.u32 [#allocation14], 4
      %s4532 = int_to_ptr.vmem [resolvable:$true] %s4531
      %4537 = dma.vmem_to_hbm [thread:$0]  %s4532, 512, %s11, [#allocation15], 256, 256, 16
    $region73: #{tpu_custom_call.1} parent=1 // pred_fallthru
      _
    // Predicated region
    $region74: #{tpu_custom_call.1} parent=1 // pred_check
      _
    $region75: #{tpu_custom_call.1} parent=1 // pred_check_branch
      %4539 = sbr.rel (0) target = $region77
    $region76: #{tpu_custom_call.1} parent=1 // pred_region
      %4540 = dma.done [#allocation4], 1792
    $region77: #{tpu_custom_call.1} parent=1 // pred_fallthru
      _
    // Predicated region
    $region78: #{tpu_custom_call.1} parent=1 // pred_check
      _
    $region79: #{tpu_custom_call.1} parent=1 // pred_check_branch
      %4542 = sbr.rel (0) target = $region81
    $region80: #{tpu_custom_call.1} parent=1 // pred_region
      %4543 = dma.done [#allocation15], 512
    $region81: #{tpu_custom_call.1} parent=1 // pred_fallthru
      _
    %4544 = vsyncpa [#allocation3], 1
    %4545 = vsyncpa [#allocation6], 1
    %4546 = vsyncpa [#allocation9], 1
    %4547 = vsyncpa [#allocation12], 1
    %4548 = vsyncpa [#allocation4], 1
    %4549 = vsyncpa [#allocation15], 1

</llo_original>
